<compile_context>
chip_gen: v7x
topology: tpu7x:2x2x1
jax: 0.10.0
libtpu: 0.0.40
codegen_flags: <defaults>
</compile_context>

<pallas_src>
import jax
import jax.numpy as jnp
from jax.experimental import pallas as pl
from jax.experimental.pallas import tpu as pltpu


def _round_up(a, m):
    return ((a + m - 1) // m) * m


def _cdiv(a, b):
    return (a + b - 1) // b


def se1dcnn_kernel(x_ref, w1_ref, b1_ref, s1a_ref, s1b_ref,
                   w2_ref, b2_ref, s2a_ref, s2b_ref,
                   wfc_ref, bfc_ref, out_ref):
    n_out, TB = out_ref.shape
    C = x_ref.shape[1]                 # C = L * TB, column c = l*TB + b (l-major)
    L = C // TB
    act = w2_ref.dtype                 # activation / MXU operand dtype (f32 or bf16)
    f32 = jnp.float32

    # Lane shifts by TB columns == shift by one position along L for every
    # sample at once; zero fill covers the pad=1 boundaries (l==0 / l==L-1).
    def shift_prev(a):                 # a[:, c] <- a[:, c - TB]
        return jnp.concatenate(
            [jnp.zeros((a.shape[0], TB), a.dtype), a[:, :C - TB]], axis=1)

    def shift_next(a):                 # a[:, c] <- a[:, c + TB]
        return jnp.concatenate(
            [a[:, TB:], jnp.zeros((a.shape[0], TB), a.dtype)], axis=1)

    def pool_mean(a):                  # (ch, C) -> (ch, TB): per-sample mean over L
        acc = a[:, 0:TB].astype(f32)
        for l in range(1, L):
            acc = acc + a[:, l * TB:(l + 1) * TB].astype(f32)
        return acc * (1.0 / L)

    # ---- conv1: Conv1d(1 -> H, k=3, pad=1) + ReLU (C_in == 1 => 3 broadcast FMAs) ----
    x = x_ref[...].astype(act)                             # (1, C)
    xp, xn = shift_prev(x), shift_next(x)
    h1 = (xp * w1_ref[0] + x * w1_ref[1] + xn * w1_ref[2]  # (1,C)*(H,1) -> (H, C)
          + b1_ref[...])
    h1 = jnp.maximum(h1, 0.0)                              # (H, C), act dtype

    # ---- SE block 1: per-sample mean over L, two small matmuls, sigmoid gate ----
    y = pool_mean(h1)                                      # (H, TB) f32
    y = jnp.maximum(jnp.dot(s1a_ref[...], y.astype(act),
                            preferred_element_type=f32), 0.0)          # (H/16, TB)
    g1 = jax.nn.sigmoid(jnp.dot(s1b_ref[...], y.astype(act),
                                preferred_element_type=f32)).astype(act)  # (H, TB)

    # Gate applied per l-block while (re)building the conv2 input -- no tiled
    # gate tensor is ever materialized.
    h1g = jnp.concatenate(
        [h1[:, l * TB:(l + 1) * TB] * g1 for l in range(L)], axis=1)   # (H, C)

    # ---- conv2: Conv1d(H -> O, k=3, pad=1) + ReLU as three K=H matmuls whose
    #      (O, C) outputs are tap-shifted and accumulated (no 3H concat). ----
    q0 = jnp.dot(w2_ref[0], h1g, preferred_element_type=f32)           # tap k=0 (l-1)
    q1 = jnp.dot(w2_ref[1], h1g, preferred_element_type=f32)           # tap k=1 (l)
    q2 = jnp.dot(w2_ref[2], h1g, preferred_element_type=f32)           # tap k=2 (l+1)
    h2 = shift_prev(q0) + q1 + shift_next(q2) + b2_ref[...]            # (O, C) f32
    h2 = jnp.maximum(h2, 0.0).astype(act)

    # ---- SE block 2 ----
    z = pool_mean(h2)                                                  # (O, TB) f32
    z = jnp.maximum(jnp.dot(s2a_ref[...], z.astype(act),
                            preferred_element_type=f32), 0.0)
    g2 = jax.nn.sigmoid(jnp.dot(s2b_ref[...], z.astype(act),
                                preferred_element_type=f32)).astype(act)  # (O, TB)

    # ---- SE2 gate + PyTorch view(B, -1) fused into one rearrangement:
    #      rows ordered l*O + o, batch stays on lanes. ----
    h2r = jnp.concatenate(
        [h2[:, l * TB:(l + 1) * TB] * g2 for l in range(L)], axis=0)   # (L*O, TB)

    # ---- final FC: single deep-K matmul, lane-dense (N, TB) output block ----
    out = jnp.dot(wfc_ref[...], h2r, preferred_element_type=f32) + bfc_ref[...]
    out_ref[...] = out.astype(out_ref.dtype)


def se1dcnn_prepack(params, matmul_dtype=jnp.float32):
    """One-time weight layout plumbing (hoisted out of the per-call path)."""
    H = params["conv1_w"].shape[0]
    O = params["conv2_w"].shape[0]
    N = params["fc_w"].shape[0]
    L = params["fc_w"].shape[1] // O
    mm = matmul_dtype

    w1p = params["conv1_w"][:, 0, :].T.reshape(3, H, 1).astype(mm)      # (3, H, 1)
    b1p = params["conv1_b"].reshape(H, 1).astype(mm)
    s1a = params["se1_fc1_w"].astype(mm)                                # (H/16, H)
    s1b = params["se1_fc2_w"].astype(mm)                                # (H, H/16)
    w2p = jnp.transpose(params["conv2_w"], (2, 0, 1)).astype(mm)        # (3, O, H)
    b2p = params["conv2_b"].reshape(O, 1).astype(jnp.float32)
    s2a = params["se2_fc1_w"].astype(mm)                                # (O/16, O)
    s2b = params["se2_fc2_w"].astype(mm)                                # (O, O/16)
    # PyTorch flatten is over (O, L): fc_w[n, o*L + l] -> wfc[n, l*O + o]
    wfcp = jnp.transpose(params["fc_w"].reshape(N, O, L),
                         (0, 2, 1)).reshape(N, L * O).astype(mm)        # (N, L*O)
    bfcp = params["fc_b"].reshape(N, 1).astype(jnp.float32)

    return dict(w1=w1p, b1=b1p, s1a=s1a, s1b=s1b, w2=w2p, b2=b2p,
                s2a=s2a, s2b=s2b, wfc=wfcp, bfc=bfcp,
                meta=dict(H=H, O=O, N=N, L=L, dtype=mm))


def _choose_tb(B, tb_max, min_tiles):
    TB = min(tb_max, _round_up(B, 8))
    if min_tiles > 1 and B > 128:
        # v7x: keep >= min_tiles grid steps so both TensorCores get batch tiles.
        TB = min(TB, max(128, _round_up(_cdiv(B, min_tiles), 128)))
    if TB < B:
        TB = _round_up(TB, 128)        # lane-dense blocks whenever the grid tiles
    return TB


def se1dcnn_forward(x, packed, *, tb_max=256, min_tiles=1):
    meta = packed["meta"]
    H, O, N, L, mm = meta["H"], meta["O"], meta["N"], meta["L"], meta["dtype"]
    B, L_in = x.shape
    assert L_in == L

    TB = _choose_tb(B, tb_max, min_tiles)
    nb = _cdiv(B, TB)
    Bp = nb * TB

    # Input layout plumbing (tiny, plain JAX): per tile, column = l*TB + b_local.
    xf = x.astype(jnp.float32)
    if Bp != B:
        xf = jnp.concatenate([xf, jnp.zeros((Bp - B, L), jnp.float32)], axis=0)
    x_t = (xf.reshape(nb, TB, L).transpose(0, 2, 1)
             .reshape(nb, 1, L * TB).astype(mm))

    weights = [packed["w1"], packed["b1"], packed["s1a"], packed["s1b"],
               packed["w2"], packed["b2"], packed["s2a"], packed["s2b"],
               packed["wfc"], packed["bfc"]]

    def const_spec(a):
        nd = a.ndim
        return pl.BlockSpec(a.shape, lambda i, _nd=nd: (0,) * _nd)

    R1 = packed["s1a"].shape[0]
    R2 = packed["s2a"].shape[0]
    flops = int(Bp) * (2 * 3 * H * L + 4 * H * R1
                       + 2 * 3 * H * O * L + 4 * O * R2 + 2 * L * O * N)
    transcendentals = int(Bp) * (H + O)
    weight_bytes = sum(int(a.size) * a.dtype.itemsize for a in weights)
    bytes_accessed = (int(x_t.size) * x_t.dtype.itemsize
                      + int(Bp) * N * 4 + nb * weight_bytes)

    out = pl.pallas_call(
        se1dcnn_kernel,
        out_shape=jax.ShapeDtypeStruct((N, Bp), jnp.float32),
        grid=(nb,),
        in_specs=[
            pl.BlockSpec((None, 1, L * TB), lambda i: (i, 0, 0)),   # x tile (1, L*TB)
            const_spec(packed["w1"]), const_spec(packed["b1"]),
            const_spec(packed["s1a"]), const_spec(packed["s1b"]),
            const_spec(packed["w2"]), const_spec(packed["b2"]),
            const_spec(packed["s2a"]), const_spec(packed["s2b"]),
            const_spec(packed["wfc"]), const_spec(packed["bfc"]),
        ],
        out_specs=pl.BlockSpec((N, TB), lambda i: (0, i)),          # lane-dense output
        compiler_params=pltpu.CompilerParams(
            dimension_semantics=("parallel",),       # 2 TCs on v7x split the batch grid
            vmem_limit_bytes=40 * 1024 * 1024),      # explicit budget (v5e default is 16 MiB)
        cost_estimate=pl.CostEstimate(flops=flops,
                                      transcendentals=transcendentals,
                                      bytes_accessed=bytes_accessed),
    )(x_t, *weights)

    return out.T[:B]                                              # (B, N)


def reference_forward(x, params):
    """Pure-jnp reference matching the PyTorch forward exactly (NCL layout)."""
    B, L = x.shape
    h = x[:, None, :].astype(jnp.float32)                         # (B, 1, L)

    def conv1d(h, w, b):
        hp = jnp.pad(h, ((0, 0), (0, 0), (1, 1)))
        out = jnp.zeros((B, w.shape[0], L), jnp.float32)
        for k in range(3):
            out = out + jnp.einsum('oc,bcl->bol', w[:, :, k], hp[:, :, k:k + L])
        return out + b[None, :, None]

    def se(h, fc1_w, fc2_w):
        y = jnp.mean(h, axis=-1)
        y = jax.nn.relu(y @ fc1_w.T)
        y = jax.nn.sigmoid(y @ fc2_w.T)
        return h * y[:, :, None]

    h = jax.nn.relu(conv1d(h, params["conv1_w"], params["conv1_b"]))
    h = se(h, params["se1_fc1_w"], params["se1_fc2_w"])
    h = jax.nn.relu(conv1d(h, params["conv2_w"], params["conv2_b"]))
    h = se(h, params["se2_fc1_w"], params["se2_fc2_w"])
    h = h.reshape(B, -1)
    return h @ params["fc_w"].T + params["fc_b"]


if __name__ == "__main__":
    B, L, H, N = 6, 16, 64, 8            # batch, input_dim, hidden_dim, n_clusters
    O, R1, R2 = H // 2, H // 16, (H // 2) // 16

    key = jax.random.PRNGKey(0)
    ks = jax.random.split(key, 12)
    params = {
        "conv1_w":   0.1 * jax.random.normal(ks[0], (H, 1, 3), jnp.float32),
        "conv1_b":   0.1 * jax.random.normal(ks[1], (H,), jnp.float32),
        "se1_fc1_w": 0.1 * jax.random.normal(ks[2], (R1, H), jnp.float32),
        "se1_fc2_w": 0.1 * jax.random.normal(ks[3], (H, R1), jnp.float32),
        "conv2_w":   0.1 * jax.random.normal(ks[4], (O, H, 3), jnp.float32),
        "conv2_b":   0.1 * jax.random.normal(ks[5], (O,), jnp.float32),
        "se2_fc1_w": 0.1 * jax.random.normal(ks[6], (R2, O), jnp.float32),
        "se2_fc2_w": 0.1 * jax.random.normal(ks[7], (O, R2), jnp.float32),
        "fc_w":      0.1 * jax.random.normal(ks[8], (N, O * L), jnp.float32),
        "fc_b":      0.1 * jax.random.normal(ks[9], (N,), jnp.float32),
    }
    x = jax.random.normal(ks[10], (B, L), jnp.float32)

    ref = reference_forward(x, params)

    # f32 MXU / elementwise path: tight tolerance.
    packed_f32 = se1dcnn_prepack(params, jnp.float32)
    out_f32 = se1dcnn_forward(x, packed_f32)
    jax.block_until_ready(out_f32)
    assert out_f32.shape == (B, N)
    assert jnp.allclose(out_f32, ref, atol=2e-4, rtol=2e-4), (out_f32, ref)

    # bf16 operands + bf16 elementwise activations, f32 accumulation
    # (recommended on v6e/v7x; keep f32 on v5e): loosened tolerance.
    packed_bf16 = se1dcnn_prepack(params, jnp.bfloat16)
    out_bf16 = se1dcnn_forward(x, packed_bf16)
    jax.block_until_ready(out_bf16)
    assert jnp.allclose(out_bf16, ref, atol=5e-2, rtol=5e-2), (out_bf16, ref)

    # Multi-tile / padded-batch path (TB=128, nb=3, Bp=384) exercising the grid,
    # lane-dense blocks and the min_tiles>=2 (v7x two-TensorCore) heuristic.
    xb = jax.random.normal(ks[11], (300, L), jnp.float32)
    refb = reference_forward(xb, params)
    outb = se1dcnn_forward(xb, packed_f32, tb_max=128, min_tiles=2)
    jax.block_until_ready(outb)
    assert outb.shape == (300, N)
    assert jnp.allclose(outb, refb, atol=2e-4, rtol=2e-4), (outb, refb)

    print("KERNEL_OK")
</pallas_src>

<mosaic_0001>
module attributes {stable_mosaic.version = 11 : i64} {
  func.func @se1dcnn_kernel(%arg0: i32, %arg1: memref<1x1x128xf32, #tpu.memory_space<vmem>>, %arg2: memref<3x64x1xf32, #tpu.memory_space<vmem>>, %arg3: memref<64x1xf32, #tpu.memory_space<vmem>>, %arg4: memref<4x64xf32, #tpu.memory_space<vmem>>, %arg5: memref<64x4xf32, #tpu.memory_space<vmem>>, %arg6: memref<3x32x64xf32, #tpu.memory_space<vmem>>, %arg7: memref<32x1xf32, #tpu.memory_space<vmem>>, %arg8: memref<2x32xf32, #tpu.memory_space<vmem>>, %arg9: memref<32x2xf32, #tpu.memory_space<vmem>>, %arg10: memref<8x512xf32, #tpu.memory_space<vmem>>, %arg11: memref<8x1xf32, #tpu.memory_space<vmem>>, %arg12: memref<8x8xf32, #tpu.memory_space<vmem>>) attributes {dimension_semantics = [#tpu.dimension_semantics<parallel>], iteration_bounds = array<i64: 1>, scalar_prefetch = 0 : i64, scratch_operands = 0 : i64, tpu.core_type = #tpu.core_type<tc>, window_params = [{transform_indices = @transform_0, window_bounds = array<i64: 1, 1, 128>}, {pipeline_mode = #tpu.pipeline_mode<synchronous>, transform_indices = @transform_1, window_bounds = array<i64: 3, 64, 1>}, {pipeline_mode = #tpu.pipeline_mode<synchronous>, transform_indices = @transform_2, window_bounds = array<i64: 64, 1>}, {pipeline_mode = #tpu.pipeline_mode<synchronous>, transform_indices = @transform_3, window_bounds = array<i64: 4, 64>}, {pipeline_mode = #tpu.pipeline_mode<synchronous>, transform_indices = @transform_4, window_bounds = array<i64: 64, 4>}, {pipeline_mode = #tpu.pipeline_mode<synchronous>, transform_indices = @transform_5, window_bounds = array<i64: 3, 32, 64>}, {pipeline_mode = #tpu.pipeline_mode<synchronous>, transform_indices = @transform_6, window_bounds = array<i64: 32, 1>}, {pipeline_mode = #tpu.pipeline_mode<synchronous>, transform_indices = @transform_7, window_bounds = array<i64: 2, 32>}, {pipeline_mode = #tpu.pipeline_mode<synchronous>, transform_indices = @transform_8, window_bounds = array<i64: 32, 2>}, {pipeline_mode = #tpu.pipeline_mode<synchronous>, transform_indices = @transform_9, window_bounds = array<i64: 8, 512>}, {pipeline_mode = #tpu.pipeline_mode<synchronous>, transform_indices = @transform_10, window_bounds = array<i64: 8, 1>}, {transform_indices = @transform_11, window_bounds = array<i64: 8, 8>}]} {
    %c0 = arith.constant 0 : index
    %c0_0 = arith.constant 0 : index
    %c0_1 = arith.constant 0 : index
    %0 = vector.load %arg1[%c0, %c0_0, %c0_1] : memref<1x1x128xf32, #tpu.memory_space<vmem>>, vector<1x1x128xf32>
    %1 = vector.shape_cast %0 : vector<1x1x128xf32> to vector<1x128xf32>
    %cst = arith.constant 0.000000e+00 : f32
    %2 = vector.broadcast %cst : f32 to vector<1x8xf32>
    %3 = vector.extract_strided_slice %1 {offsets = [0, 0], sizes = [1, 120], strides = [1, 1]} : vector<1x128xf32> to vector<1x120xf32>
    %4 = tpu.concatenate %2, %3 in 1 : vector<1x8xf32>, vector<1x120xf32> -> vector<1x128xf32>
    %5 = vector.extract_strided_slice %1 {offsets = [0, 8], sizes = [1, 120], strides = [1, 1]} : vector<1x128xf32> to vector<1x120xf32>
    %cst_2 = arith.constant 0.000000e+00 : f32
    %6 = vector.broadcast %cst_2 : f32 to vector<1x8xf32>
    %7 = tpu.concatenate %5, %6 in 1 : vector<1x120xf32>, vector<1x8xf32> -> vector<1x128xf32>
    %c0_3 = arith.constant 0 : index
    %c0_4 = arith.constant 0 : index
    %c0_5 = arith.constant 0 : index
    %8 = vector.load %arg2[%c0_3, %c0_4, %c0_5] : memref<3x64x1xf32, #tpu.memory_space<vmem>>, vector<1x64x1xf32>
    %9 = vector.shape_cast %8 : vector<1x64x1xf32> to vector<64x1xf32>
    %10 = vector.broadcast %4 : vector<1x128xf32> to vector<64x128xf32>
    %11 = vector.broadcast %9 : vector<64x1xf32> to vector<64x128xf32>
    %12 = arith.mulf %10, %11 : vector<64x128xf32>
    %c1 = arith.constant 1 : index
    %c0_6 = arith.constant 0 : index
    %c0_7 = arith.constant 0 : index
    %13 = vector.load %arg2[%c1, %c0_6, %c0_7] : memref<3x64x1xf32, #tpu.memory_space<vmem>>, vector<1x64x1xf32>
    %14 = vector.shape_cast %13 : vector<1x64x1xf32> to vector<64x1xf32>
    %15 = vector.broadcast %1 : vector<1x128xf32> to vector<64x128xf32>
    %16 = vector.broadcast %14 : vector<64x1xf32> to vector<64x128xf32>
    %17 = arith.mulf %15, %16 : vector<64x128xf32>
    %18 = arith.addf %12, %17 : vector<64x128xf32>
    %c2 = arith.constant 2 : index
    %c0_8 = arith.constant 0 : index
    %c0_9 = arith.constant 0 : index
    %19 = vector.load %arg2[%c2, %c0_8, %c0_9] : memref<3x64x1xf32, #tpu.memory_space<vmem>>, vector<1x64x1xf32>
    %20 = vector.shape_cast %19 : vector<1x64x1xf32> to vector<64x1xf32>
    %21 = vector.broadcast %7 : vector<1x128xf32> to vector<64x128xf32>
    %22 = vector.broadcast %20 : vector<64x1xf32> to vector<64x128xf32>
    %23 = arith.mulf %21, %22 : vector<64x128xf32>
    %24 = arith.addf %18, %23 : vector<64x128xf32>
    %c0_10 = arith.constant 0 : index
    %c0_11 = arith.constant 0 : index
    %25 = vector.load %arg3[%c0_10, %c0_11] : memref<64x1xf32, #tpu.memory_space<vmem>>, vector<64x1xf32>
    %26 = vector.broadcast %25 : vector<64x1xf32> to vector<64x128xf32>
    %27 = arith.addf %24, %26 : vector<64x128xf32>
    %cst_12 = arith.constant 0.000000e+00 : f32
    %28 = vector.broadcast %cst_12 : f32 to vector<64x128xf32>
    %29 = arith.maximumf %27, %28 : vector<64x128xf32>
    %30 = vector.extract_strided_slice %29 {offsets = [0, 0], sizes = [64, 8], strides = [1, 1]} : vector<64x128xf32> to vector<64x8xf32>
    %31 = vector.extract_strided_slice %29 {offsets = [0, 8], sizes = [64, 8], strides = [1, 1]} : vector<64x128xf32> to vector<64x8xf32>
    %32 = arith.addf %30, %31 : vector<64x8xf32>
    %33 = vector.extract_strided_slice %29 {offsets = [0, 16], sizes = [64, 8], strides = [1, 1]} : vector<64x128xf32> to vector<64x8xf32>
    %34 = arith.addf %32, %33 : vector<64x8xf32>
    %35 = vector.extract_strided_slice %29 {offsets = [0, 24], sizes = [64, 8], strides = [1, 1]} : vector<64x128xf32> to vector<64x8xf32>
    %36 = arith.addf %34, %35 : vector<64x8xf32>
    %37 = vector.extract_strided_slice %29 {offsets = [0, 32], sizes = [64, 8], strides = [1, 1]} : vector<64x128xf32> to vector<64x8xf32>
    %38 = arith.addf %36, %37 : vector<64x8xf32>
    %39 = vector.extract_strided_slice %29 {offsets = [0, 40], sizes = [64, 8], strides = [1, 1]} : vector<64x128xf32> to vector<64x8xf32>
    %40 = arith.addf %38, %39 : vector<64x8xf32>
    %41 = vector.extract_strided_slice %29 {offsets = [0, 48], sizes = [64, 8], strides = [1, 1]} : vector<64x128xf32> to vector<64x8xf32>
    %42 = arith.addf %40, %41 : vector<64x8xf32>
    %43 = vector.extract_strided_slice %29 {offsets = [0, 56], sizes = [64, 8], strides = [1, 1]} : vector<64x128xf32> to vector<64x8xf32>
    %44 = arith.addf %42, %43 : vector<64x8xf32>
    %45 = vector.extract_strided_slice %29 {offsets = [0, 64], sizes = [64, 8], strides = [1, 1]} : vector<64x128xf32> to vector<64x8xf32>
    %46 = arith.addf %44, %45 : vector<64x8xf32>
    %47 = vector.extract_strided_slice %29 {offsets = [0, 72], sizes = [64, 8], strides = [1, 1]} : vector<64x128xf32> to vector<64x8xf32>
    %48 = arith.addf %46, %47 : vector<64x8xf32>
    %49 = vector.extract_strided_slice %29 {offsets = [0, 80], sizes = [64, 8], strides = [1, 1]} : vector<64x128xf32> to vector<64x8xf32>
    %50 = arith.addf %48, %49 : vector<64x8xf32>
    %51 = vector.extract_strided_slice %29 {offsets = [0, 88], sizes = [64, 8], strides = [1, 1]} : vector<64x128xf32> to vector<64x8xf32>
    %52 = arith.addf %50, %51 : vector<64x8xf32>
    %53 = vector.extract_strided_slice %29 {offsets = [0, 96], sizes = [64, 8], strides = [1, 1]} : vector<64x128xf32> to vector<64x8xf32>
    %54 = arith.addf %52, %53 : vector<64x8xf32>
    %55 = vector.extract_strided_slice %29 {offsets = [0, 104], sizes = [64, 8], strides = [1, 1]} : vector<64x128xf32> to vector<64x8xf32>
    %56 = arith.addf %54, %55 : vector<64x8xf32>
    %57 = vector.extract_strided_slice %29 {offsets = [0, 112], sizes = [64, 8], strides = [1, 1]} : vector<64x128xf32> to vector<64x8xf32>
    %58 = arith.addf %56, %57 : vector<64x8xf32>
    %59 = vector.extract_strided_slice %29 {offsets = [0, 120], sizes = [64, 8], strides = [1, 1]} : vector<64x128xf32> to vector<64x8xf32>
    %60 = arith.addf %58, %59 : vector<64x8xf32>
    %cst_13 = arith.constant 6.250000e-02 : f32
    %61 = vector.broadcast %cst_13 : f32 to vector<64x8xf32>
    %62 = arith.mulf %60, %61 : vector<64x8xf32>
    %c0_14 = arith.constant 0 : index
    %c0_15 = arith.constant 0 : index
    %63 = vector.load %arg4[%c0_14, %c0_15] : memref<4x64xf32, #tpu.memory_space<vmem>>, vector<4x64xf32>
    %cst_16 = arith.constant dense<0.000000e+00> : vector<4x8xf32>
    %64 = tpu.matmul %63, %62, %cst_16 {dimension_numbers = #tpu.dot_dimension_numbers<[1], [0], [0], [1], [0, 0, 1, 1], [], []>} : vector<4x64xf32>, vector<64x8xf32>, vector<4x8xf32> -> vector<4x8xf32>
    %cst_17 = arith.constant 0.000000e+00 : f32
    %65 = vector.broadcast %cst_17 : f32 to vector<4x8xf32>
    %66 = arith.maximumf %64, %65 : vector<4x8xf32>
    %c0_18 = arith.constant 0 : index
    %c0_19 = arith.constant 0 : index
    %67 = vector.load %arg5[%c0_18, %c0_19] : memref<64x4xf32, #tpu.memory_space<vmem>>, vector<64x4xf32>
    %cst_20 = arith.constant dense<0.000000e+00> : vector<64x8xf32>
    %68 = tpu.matmul %67, %66, %cst_20 {dimension_numbers = #tpu.dot_dimension_numbers<[1], [0], [0], [1], [0, 0, 1, 1], [], []>} : vector<64x4xf32>, vector<4x8xf32>, vector<64x8xf32> -> vector<64x8xf32>
    %69 = arith.negf %68 : vector<64x8xf32>
    %70 = math.exp %69 : vector<64x8xf32>
    %cst_21 = arith.constant 1.000000e+00 : f32
    %71 = vector.broadcast %cst_21 : f32 to vector<64x8xf32>
    %72 = arith.addf %71, %70 : vector<64x8xf32>
    %73 = arith.divf %71, %72 : vector<64x8xf32>
    %74 = vector.extract_strided_slice %29 {offsets = [0, 0], sizes = [64, 8], strides = [1, 1]} : vector<64x128xf32> to vector<64x8xf32>
    %75 = arith.mulf %74, %73 : vector<64x8xf32>
    %76 = vector.extract_strided_slice %29 {offsets = [0, 8], sizes = [64, 8], strides = [1, 1]} : vector<64x128xf32> to vector<64x8xf32>
    %77 = arith.mulf %76, %73 : vector<64x8xf32>
    %78 = vector.extract_strided_slice %29 {offsets = [0, 16], sizes = [64, 8], strides = [1, 1]} : vector<64x128xf32> to vector<64x8xf32>
    %79 = arith.mulf %78, %73 : vector<64x8xf32>
    %80 = vector.extract_strided_slice %29 {offsets = [0, 24], sizes = [64, 8], strides = [1, 1]} : vector<64x128xf32> to vector<64x8xf32>
    %81 = arith.mulf %80, %73 : vector<64x8xf32>
    %82 = vector.extract_strided_slice %29 {offsets = [0, 32], sizes = [64, 8], strides = [1, 1]} : vector<64x128xf32> to vector<64x8xf32>
    %83 = arith.mulf %82, %73 : vector<64x8xf32>
    %84 = vector.extract_strided_slice %29 {offsets = [0, 40], sizes = [64, 8], strides = [1, 1]} : vector<64x128xf32> to vector<64x8xf32>
    %85 = arith.mulf %84, %73 : vector<64x8xf32>
    %86 = vector.extract_strided_slice %29 {offsets = [0, 48], sizes = [64, 8], strides = [1, 1]} : vector<64x128xf32> to vector<64x8xf32>
    %87 = arith.mulf %86, %73 : vector<64x8xf32>
    %88 = vector.extract_strided_slice %29 {offsets = [0, 56], sizes = [64, 8], strides = [1, 1]} : vector<64x128xf32> to vector<64x8xf32>
    %89 = arith.mulf %88, %73 : vector<64x8xf32>
    %90 = vector.extract_strided_slice %29 {offsets = [0, 64], sizes = [64, 8], strides = [1, 1]} : vector<64x128xf32> to vector<64x8xf32>
    %91 = arith.mulf %90, %73 : vector<64x8xf32>
    %92 = vector.extract_strided_slice %29 {offsets = [0, 72], sizes = [64, 8], strides = [1, 1]} : vector<64x128xf32> to vector<64x8xf32>
    %93 = arith.mulf %92, %73 : vector<64x8xf32>
    %94 = vector.extract_strided_slice %29 {offsets = [0, 80], sizes = [64, 8], strides = [1, 1]} : vector<64x128xf32> to vector<64x8xf32>
    %95 = arith.mulf %94, %73 : vector<64x8xf32>
    %96 = vector.extract_strided_slice %29 {offsets = [0, 88], sizes = [64, 8], strides = [1, 1]} : vector<64x128xf32> to vector<64x8xf32>
    %97 = arith.mulf %96, %73 : vector<64x8xf32>
    %98 = vector.extract_strided_slice %29 {offsets = [0, 96], sizes = [64, 8], strides = [1, 1]} : vector<64x128xf32> to vector<64x8xf32>
    %99 = arith.mulf %98, %73 : vector<64x8xf32>
    %100 = vector.extract_strided_slice %29 {offsets = [0, 104], sizes = [64, 8], strides = [1, 1]} : vector<64x128xf32> to vector<64x8xf32>
    %101 = arith.mulf %100, %73 : vector<64x8xf32>
    %102 = vector.extract_strided_slice %29 {offsets = [0, 112], sizes = [64, 8], strides = [1, 1]} : vector<64x128xf32> to vector<64x8xf32>
    %103 = arith.mulf %102, %73 : vector<64x8xf32>
    %104 = vector.extract_strided_slice %29 {offsets = [0, 120], sizes = [64, 8], strides = [1, 1]} : vector<64x128xf32> to vector<64x8xf32>
    %105 = arith.mulf %104, %73 : vector<64x8xf32>
    %106 = tpu.concatenate %75, %77, %79, %81, %83, %85, %87, %89, %91, %93, %95, %97, %99, %101, %103, %105 in 1 : vector<64x8xf32>, vector<64x8xf32>, vector<64x8xf32>, vector<64x8xf32>, vector<64x8xf32>, vector<64x8xf32>, vector<64x8xf32>, vector<64x8xf32>, vector<64x8xf32>, vector<64x8xf32>, vector<64x8xf32>, vector<64x8xf32>, vector<64x8xf32>, vector<64x8xf32>, vector<64x8xf32>, vector<64x8xf32> -> vector<64x128xf32>
    %c0_22 = arith.constant 0 : index
    %c0_23 = arith.constant 0 : index
    %c0_24 = arith.constant 0 : index
    %107 = vector.load %arg6[%c0_22, %c0_23, %c0_24] : memref<3x32x64xf32, #tpu.memory_space<vmem>>, vector<1x32x64xf32>
    %108 = vector.shape_cast %107 : vector<1x32x64xf32> to vector<32x64xf32>
    %cst_25 = arith.constant dense<0.000000e+00> : vector<32x128xf32>
    %109 = tpu.matmul %108, %106, %cst_25 {dimension_numbers = #tpu.dot_dimension_numbers<[1], [0], [0], [1], [0, 0, 1, 1], [], []>} : vector<32x64xf32>, vector<64x128xf32>, vector<32x128xf32> -> vector<32x128xf32>
    %c1_26 = arith.constant 1 : index
    %c0_27 = arith.constant 0 : index
    %c0_28 = arith.constant 0 : index
    %110 = vector.load %arg6[%c1_26, %c0_27, %c0_28] : memref<3x32x64xf32, #tpu.memory_space<vmem>>, vector<1x32x64xf32>
    %111 = vector.shape_cast %110 : vector<1x32x64xf32> to vector<32x64xf32>
    %cst_29 = arith.constant dense<0.000000e+00> : vector<32x128xf32>
    %112 = tpu.matmul %111, %106, %cst_29 {dimension_numbers = #tpu.dot_dimension_numbers<[1], [0], [0], [1], [0, 0, 1, 1], [], []>} : vector<32x64xf32>, vector<64x128xf32>, vector<32x128xf32> -> vector<32x128xf32>
    %c2_30 = arith.constant 2 : index
    %c0_31 = arith.constant 0 : index
    %c0_32 = arith.constant 0 : index
    %113 = vector.load %arg6[%c2_30, %c0_31, %c0_32] : memref<3x32x64xf32, #tpu.memory_space<vmem>>, vector<1x32x64xf32>
    %114 = vector.shape_cast %113 : vector<1x32x64xf32> to vector<32x64xf32>
    %cst_33 = arith.constant dense<0.000000e+00> : vector<32x128xf32>
    %115 = tpu.matmul %114, %106, %cst_33 {dimension_numbers = #tpu.dot_dimension_numbers<[1], [0], [0], [1], [0, 0, 1, 1], [], []>} : vector<32x64xf32>, vector<64x128xf32>, vector<32x128xf32> -> vector<32x128xf32>
    %cst_34 = arith.constant 0.000000e+00 : f32
    %116 = vector.broadcast %cst_34 : f32 to vector<32x8xf32>
    %117 = vector.extract_strided_slice %109 {offsets = [0, 0], sizes = [32, 120], strides = [1, 1]} : vector<32x128xf32> to vector<32x120xf32>
    %118 = tpu.concatenate %116, %117 in 1 : vector<32x8xf32>, vector<32x120xf32> -> vector<32x128xf32>
    %119 = arith.addf %118, %112 : vector<32x128xf32>
    %120 = vector.extract_strided_slice %115 {offsets = [0, 8], sizes = [32, 120], strides = [1, 1]} : vector<32x128xf32> to vector<32x120xf32>
    %cst_35 = arith.constant 0.000000e+00 : f32
    %121 = vector.broadcast %cst_35 : f32 to vector<32x8xf32>
    %122 = tpu.concatenate %120, %121 in 1 : vector<32x120xf32>, vector<32x8xf32> -> vector<32x128xf32>
    %123 = arith.addf %119, %122 : vector<32x128xf32>
    %c0_36 = arith.constant 0 : index
    %c0_37 = arith.constant 0 : index
    %124 = vector.load %arg7[%c0_36, %c0_37] : memref<32x1xf32, #tpu.memory_space<vmem>>, vector<32x1xf32>
    %125 = vector.broadcast %124 : vector<32x1xf32> to vector<32x128xf32>
    %126 = arith.addf %123, %125 : vector<32x128xf32>
    %cst_38 = arith.constant 0.000000e+00 : f32
    %127 = vector.broadcast %cst_38 : f32 to vector<32x128xf32>
    %128 = arith.maximumf %126, %127 : vector<32x128xf32>
    %129 = vector.extract_strided_slice %128 {offsets = [0, 0], sizes = [32, 8], strides = [1, 1]} : vector<32x128xf32> to vector<32x8xf32>
    %130 = vector.extract_strided_slice %128 {offsets = [0, 8], sizes = [32, 8], strides = [1, 1]} : vector<32x128xf32> to vector<32x8xf32>
    %131 = arith.addf %129, %130 : vector<32x8xf32>
    %132 = vector.extract_strided_slice %128 {offsets = [0, 16], sizes = [32, 8], strides = [1, 1]} : vector<32x128xf32> to vector<32x8xf32>
    %133 = arith.addf %131, %132 : vector<32x8xf32>
    %134 = vector.extract_strided_slice %128 {offsets = [0, 24], sizes = [32, 8], strides = [1, 1]} : vector<32x128xf32> to vector<32x8xf32>
    %135 = arith.addf %133, %134 : vector<32x8xf32>
    %136 = vector.extract_strided_slice %128 {offsets = [0, 32], sizes = [32, 8], strides = [1, 1]} : vector<32x128xf32> to vector<32x8xf32>
    %137 = arith.addf %135, %136 : vector<32x8xf32>
    %138 = vector.extract_strided_slice %128 {offsets = [0, 40], sizes = [32, 8], strides = [1, 1]} : vector<32x128xf32> to vector<32x8xf32>
    %139 = arith.addf %137, %138 : vector<32x8xf32>
    %140 = vector.extract_strided_slice %128 {offsets = [0, 48], sizes = [32, 8], strides = [1, 1]} : vector<32x128xf32> to vector<32x8xf32>
    %141 = arith.addf %139, %140 : vector<32x8xf32>
    %142 = vector.extract_strided_slice %128 {offsets = [0, 56], sizes = [32, 8], strides = [1, 1]} : vector<32x128xf32> to vector<32x8xf32>
    %143 = arith.addf %141, %142 : vector<32x8xf32>
    %144 = vector.extract_strided_slice %128 {offsets = [0, 64], sizes = [32, 8], strides = [1, 1]} : vector<32x128xf32> to vector<32x8xf32>
    %145 = arith.addf %143, %144 : vector<32x8xf32>
    %146 = vector.extract_strided_slice %128 {offsets = [0, 72], sizes = [32, 8], strides = [1, 1]} : vector<32x128xf32> to vector<32x8xf32>
    %147 = arith.addf %145, %146 : vector<32x8xf32>
    %148 = vector.extract_strided_slice %128 {offsets = [0, 80], sizes = [32, 8], strides = [1, 1]} : vector<32x128xf32> to vector<32x8xf32>
    %149 = arith.addf %147, %148 : vector<32x8xf32>
    %150 = vector.extract_strided_slice %128 {offsets = [0, 88], sizes = [32, 8], strides = [1, 1]} : vector<32x128xf32> to vector<32x8xf32>
    %151 = arith.addf %149, %150 : vector<32x8xf32>
    %152 = vector.extract_strided_slice %128 {offsets = [0, 96], sizes = [32, 8], strides = [1, 1]} : vector<32x128xf32> to vector<32x8xf32>
    %153 = arith.addf %151, %152 : vector<32x8xf32>
    %154 = vector.extract_strided_slice %128 {offsets = [0, 104], sizes = [32, 8], strides = [1, 1]} : vector<32x128xf32> to vector<32x8xf32>
    %155 = arith.addf %153, %154 : vector<32x8xf32>
    %156 = vector.extract_strided_slice %128 {offsets = [0, 112], sizes = [32, 8], strides = [1, 1]} : vector<32x128xf32> to vector<32x8xf32>
    %157 = arith.addf %155, %156 : vector<32x8xf32>
    %158 = vector.extract_strided_slice %128 {offsets = [0, 120], sizes = [32, 8], strides = [1, 1]} : vector<32x128xf32> to vector<32x8xf32>
    %159 = arith.addf %157, %158 : vector<32x8xf32>
    %cst_39 = arith.constant 6.250000e-02 : f32
    %160 = vector.broadcast %cst_39 : f32 to vector<32x8xf32>
    %161 = arith.mulf %159, %160 : vector<32x8xf32>
    %c0_40 = arith.constant 0 : index
    %c0_41 = arith.constant 0 : index
    %162 = vector.load %arg8[%c0_40, %c0_41] : memref<2x32xf32, #tpu.memory_space<vmem>>, vector<2x32xf32>
    %cst_42 = arith.constant dense<0.000000e+00> : vector<2x8xf32>
    %163 = tpu.matmul %162, %161, %cst_42 {dimension_numbers = #tpu.dot_dimension_numbers<[1], [0], [0], [1], [0, 0, 1, 1], [], []>} : vector<2x32xf32>, vector<32x8xf32>, vector<2x8xf32> -> vector<2x8xf32>
    %cst_43 = arith.constant 0.000000e+00 : f32
    %164 = vector.broadcast %cst_43 : f32 to vector<2x8xf32>
    %165 = arith.maximumf %163, %164 : vector<2x8xf32>
    %c0_44 = arith.constant 0 : index
    %c0_45 = arith.constant 0 : index
    %166 = vector.load %arg9[%c0_44, %c0_45] : memref<32x2xf32, #tpu.memory_space<vmem>>, vector<32x2xf32>
    %cst_46 = arith.constant dense<0.000000e+00> : vector<32x8xf32>
    %167 = tpu.matmul %166, %165, %cst_46 {dimension_numbers = #tpu.dot_dimension_numbers<[1], [0], [0], [1], [0, 0, 1, 1], [], []>} : vector<32x2xf32>, vector<2x8xf32>, vector<32x8xf32> -> vector<32x8xf32>
    %168 = arith.negf %167 : vector<32x8xf32>
    %169 = math.exp %168 : vector<32x8xf32>
    %cst_47 = arith.constant 1.000000e+00 : f32
    %170 = vector.broadcast %cst_47 : f32 to vector<32x8xf32>
    %171 = arith.addf %170, %169 : vector<32x8xf32>
    %172 = arith.divf %170, %171 : vector<32x8xf32>
    %173 = vector.extract_strided_slice %128 {offsets = [0, 0], sizes = [32, 8], strides = [1, 1]} : vector<32x128xf32> to vector<32x8xf32>
    %174 = arith.mulf %173, %172 : vector<32x8xf32>
    %175 = vector.extract_strided_slice %128 {offsets = [0, 8], sizes = [32, 8], strides = [1, 1]} : vector<32x128xf32> to vector<32x8xf32>
    %176 = arith.mulf %175, %172 : vector<32x8xf32>
    %177 = vector.extract_strided_slice %128 {offsets = [0, 16], sizes = [32, 8], strides = [1, 1]} : vector<32x128xf32> to vector<32x8xf32>
    %178 = arith.mulf %177, %172 : vector<32x8xf32>
    %179 = vector.extract_strided_slice %128 {offsets = [0, 24], sizes = [32, 8], strides = [1, 1]} : vector<32x128xf32> to vector<32x8xf32>
    %180 = arith.mulf %179, %172 : vector<32x8xf32>
    %181 = vector.extract_strided_slice %128 {offsets = [0, 32], sizes = [32, 8], strides = [1, 1]} : vector<32x128xf32> to vector<32x8xf32>
    %182 = arith.mulf %181, %172 : vector<32x8xf32>
    %183 = vector.extract_strided_slice %128 {offsets = [0, 40], sizes = [32, 8], strides = [1, 1]} : vector<32x128xf32> to vector<32x8xf32>
    %184 = arith.mulf %183, %172 : vector<32x8xf32>
    %185 = vector.extract_strided_slice %128 {offsets = [0, 48], sizes = [32, 8], strides = [1, 1]} : vector<32x128xf32> to vector<32x8xf32>
    %186 = arith.mulf %185, %172 : vector<32x8xf32>
    %187 = vector.extract_strided_slice %128 {offsets = [0, 56], sizes = [32, 8], strides = [1, 1]} : vector<32x128xf32> to vector<32x8xf32>
    %188 = arith.mulf %187, %172 : vector<32x8xf32>
    %189 = vector.extract_strided_slice %128 {offsets = [0, 64], sizes = [32, 8], strides = [1, 1]} : vector<32x128xf32> to vector<32x8xf32>
    %190 = arith.mulf %189, %172 : vector<32x8xf32>
    %191 = vector.extract_strided_slice %128 {offsets = [0, 72], sizes = [32, 8], strides = [1, 1]} : vector<32x128xf32> to vector<32x8xf32>
    %192 = arith.mulf %191, %172 : vector<32x8xf32>
    %193 = vector.extract_strided_slice %128 {offsets = [0, 80], sizes = [32, 8], strides = [1, 1]} : vector<32x128xf32> to vector<32x8xf32>
    %194 = arith.mulf %193, %172 : vector<32x8xf32>
    %195 = vector.extract_strided_slice %128 {offsets = [0, 88], sizes = [32, 8], strides = [1, 1]} : vector<32x128xf32> to vector<32x8xf32>
    %196 = arith.mulf %195, %172 : vector<32x8xf32>
    %197 = vector.extract_strided_slice %128 {offsets = [0, 96], sizes = [32, 8], strides = [1, 1]} : vector<32x128xf32> to vector<32x8xf32>
    %198 = arith.mulf %197, %172 : vector<32x8xf32>
    %199 = vector.extract_strided_slice %128 {offsets = [0, 104], sizes = [32, 8], strides = [1, 1]} : vector<32x128xf32> to vector<32x8xf32>
    %200 = arith.mulf %199, %172 : vector<32x8xf32>
    %201 = vector.extract_strided_slice %128 {offsets = [0, 112], sizes = [32, 8], strides = [1, 1]} : vector<32x128xf32> to vector<32x8xf32>
    %202 = arith.mulf %201, %172 : vector<32x8xf32>
    %203 = vector.extract_strided_slice %128 {offsets = [0, 120], sizes = [32, 8], strides = [1, 1]} : vector<32x128xf32> to vector<32x8xf32>
    %204 = arith.mulf %203, %172 : vector<32x8xf32>
    %205 = tpu.concatenate %174, %176, %178, %180, %182, %184, %186, %188, %190, %192, %194, %196, %198, %200, %202, %204 in 0 : vector<32x8xf32>, vector<32x8xf32>, vector<32x8xf32>, vector<32x8xf32>, vector<32x8xf32>, vector<32x8xf32>, vector<32x8xf32>, vector<32x8xf32>, vector<32x8xf32>, vector<32x8xf32>, vector<32x8xf32>, vector<32x8xf32>, vector<32x8xf32>, vector<32x8xf32>, vector<32x8xf32>, vector<32x8xf32> -> vector<512x8xf32>
    %c0_48 = arith.constant 0 : index
    %c0_49 = arith.constant 0 : index
    %206 = vector.load %arg10[%c0_48, %c0_49] : memref<8x512xf32, #tpu.memory_space<vmem>>, vector<8x512xf32>
    %cst_50 = arith.constant dense<0.000000e+00> : vector<8x8xf32>
    %207 = tpu.matmul %206, %205, %cst_50 {dimension_numbers = #tpu.dot_dimension_numbers<[1], [0], [0], [1], [0, 0, 1, 1], [], []>} : vector<8x512xf32>, vector<512x8xf32>, vector<8x8xf32> -> vector<8x8xf32>
    %c0_51 = arith.constant 0 : index
    %c0_52 = arith.constant 0 : index
    %208 = vector.load %arg11[%c0_51, %c0_52] : memref<8x1xf32, #tpu.memory_space<vmem>>, vector<8x1xf32>
    %209 = vector.broadcast %208 : vector<8x1xf32> to vector<8x8xf32>
    %210 = arith.addf %207, %209 : vector<8x8xf32>
    %c0_53 = arith.constant 0 : index
    %c0_54 = arith.constant 0 : index
    %211 = vector.load %arg12[%c0_53, %c0_54] : memref<8x8xf32, #tpu.memory_space<vmem>>, vector<8x8xf32>
    tpu.vector_store %arg12[%c0_53, %c0_54], %210 {strides = array<i32>} : memref<8x8xf32, #tpu.memory_space<vmem>>, vector<8x8xf32>,
    return
  }
  func.func @transform_0(%arg0: i32) -> (i32, i32, i32) {
    %c0_i32 = arith.constant 0 : i32
    %c0_i32_0 = arith.constant 0 : i32
    %c0_i32_1 = arith.constant 0 : i32
    return %arg0, %c0_i32, %c0_i32_0 : i32, i32, i32
  }
  func.func @transform_1(%arg0: i32) -> (i32, i32, i32) {
    %c0_i32 = arith.constant 0 : i32
    %c0_i32_0 = arith.constant 0 : i32
    %c0_i32_1 = arith.constant 0 : i32
    %c0_i32_2 = arith.constant 0 : i32
    return %c0_i32, %c0_i32_0, %c0_i32_1 : i32, i32, i32
  }
  func.func @transform_2(%arg0: i32) -> (i32, i32) {
    %c0_i32 = arith.constant 0 : i32
    %c0_i32_0 = arith.constant 0 : i32
    %c0_i32_1 = arith.constant 0 : i32
    return %c0_i32, %c0_i32_0 : i32, i32
  }
  func.func @transform_3(%arg0: i32) -> (i32, i32) {
    %c0_i32 = arith.constant 0 : i32
    %c0_i32_0 = arith.constant 0 : i32
    %c0_i32_1 = arith.constant 0 : i32
    return %c0_i32, %c0_i32_0 : i32, i32
  }
  func.func @transform_4(%arg0: i32) -> (i32, i32) {
    %c0_i32 = arith.constant 0 : i32
    %c0_i32_0 = arith.constant 0 : i32
    %c0_i32_1 = arith.constant 0 : i32
    return %c0_i32, %c0_i32_0 : i32, i32
  }
  func.func @transform_5(%arg0: i32) -> (i32, i32, i32) {
    %c0_i32 = arith.constant 0 : i32
    %c0_i32_0 = arith.constant 0 : i32
    %c0_i32_1 = arith.constant 0 : i32
    %c0_i32_2 = arith.constant 0 : i32
    return %c0_i32, %c0_i32_0, %c0_i32_1 : i32, i32, i32
  }
  func.func @transform_6(%arg0: i32) -> (i32, i32) {
    %c0_i32 = arith.constant 0 : i32
    %c0_i32_0 = arith.constant 0 : i32
    %c0_i32_1 = arith.constant 0 : i32
    return %c0_i32, %c0_i32_0 : i32, i32
  }
  func.func @transform_7(%arg0: i32) -> (i32, i32) {
    %c0_i32 = arith.constant 0 : i32
    %c0_i32_0 = arith.constant 0 : i32
    %c0_i32_1 = arith.constant 0 : i32
    return %c0_i32, %c0_i32_0 : i32, i32
  }
  func.func @transform_8(%arg0: i32) -> (i32, i32) {
    %c0_i32 = arith.constant 0 : i32
    %c0_i32_0 = arith.constant 0 : i32
    %c0_i32_1 = arith.constant 0 : i32
    return %c0_i32, %c0_i32_0 : i32, i32
  }
  func.func @transform_9(%arg0: i32) -> (i32, i32) {
    %c0_i32 = arith.constant 0 : i32
    %c0_i32_0 = arith.constant 0 : i32
    %c0_i32_1 = arith.constant 0 : i32
    return %c0_i32, %c0_i32_0 : i32, i32
  }
  func.func @transform_10(%arg0: i32) -> (i32, i32) {
    %c0_i32 = arith.constant 0 : i32
    %c0_i32_0 = arith.constant 0 : i32
    %c0_i32_1 = arith.constant 0 : i32
    return %c0_i32, %c0_i32_0 : i32, i32
  }
  func.func @transform_11(%arg0: i32) -> (i32, i32) {
    %c0_i32 = arith.constant 0 : i32
    %c0_i32_0 = arith.constant 0 : i32
    return %c0_i32, %arg0 : i32, i32
  }
}

</mosaic_0001>

<llo_original>
// kernel: tpu_custom_call.1
$region0: #{tpu_custom_call.1}
  #allocation0 [shape = 'u32[]', space=smem, size = 0x4, offset = 0x4, fixed_abs, tag = 'smem constant byte address 0x4 - core index']
  #allocation1 [shape = 'u32[144,128]{1,0:T(1,128)}', space=vmem, size = 0x12000, scoped, tag = 'internal scratch']
  %s0 = inlined_call_operand.vmem [shape: f32[1,1,128], index: 0, kind: input, shape index: {}]
  %s1 = inlined_call_operand.vmem [shape: f32[3,64,1], index: 1, kind: input, shape index: {}]
  %s2 = inlined_call_operand.vmem [shape: f32[64,1], index: 2, kind: input, shape index: {}]
  %s3 = inlined_call_operand.vmem [shape: f32[4,64], index: 3, kind: input, shape index: {}]
  %s4 = inlined_call_operand.vmem [shape: f32[64,4], index: 4, kind: input, shape index: {}]
  %s5 = inlined_call_operand.vmem [shape: f32[3,32,64], index: 5, kind: input, shape index: {}]
  %s6 = inlined_call_operand.vmem [shape: f32[32,1], index: 6, kind: input, shape index: {}]
  %s7 = inlined_call_operand.vmem [shape: f32[2,32], index: 7, kind: input, shape index: {}]
  %s8 = inlined_call_operand.vmem [shape: f32[32,2], index: 8, kind: input, shape index: {}]
  %s9 = inlined_call_operand.vmem [shape: f32[8,512], index: 9, kind: input, shape index: {}]
  %s10 = inlined_call_operand.vmem [shape: f32[8,1], index: 10, kind: input, shape index: {}]
  %s11 = inlined_call_operand.hbm [shape: f32[8,8], index: 11, kind: output, shape index: {}]
  %s12 = sld [smem:[#allocation0]]
  $region54: #{tpu_custom_call.1} parent=0
    _
  %s14 = ssub.s32 1, %s12
  %s15 = scalar_select 0, %s14, %s12
  $region1: #{tpu_custom_call.1} parent=0
    #allocation2 [shape = 'u8[4096]{0}', space=vmem, size = 0x1000, scoped, tag = 'output window, operand 0, single buffered']
    #allocation3 [shape = 's32[1]{0}', space=sflag, size = 0x4, scoped, tag = 'scoped memory for tpu_custom_call.1']
    %16 = vsyncpa [#allocation3], 0
    // Predicated region
    $region2: #{tpu_custom_call.1} parent=1 // pred_check
      _
    $region3: #{tpu_custom_call.1} parent=1 // pred_check_branch
      %18 = sbr.rel (0) target = $region5
    $region4: #{tpu_custom_call.1} parent=1 // pred_region
      _
    $region5: #{tpu_custom_call.1} parent=1 // pred_fallthru
      _
    // Predicated region
    $region6: #{tpu_custom_call.1} parent=1 // pred_check
      _
    $region7: #{tpu_custom_call.1} parent=1 // pred_check_branch
      %20 = sbr.rel (0) target = $region9
    $region8: #{tpu_custom_call.1} parent=1 // pred_region
      _
    $region9: #{tpu_custom_call.1} parent=1 // pred_fallthru
      _
    // Predicated region
    $region10: #{tpu_custom_call.1} parent=1 // pred_check
      _
    $region11: #{tpu_custom_call.1} parent=1 // pred_check_branch
      %22 = sbr.rel (0) target = $region13
    $region12: #{tpu_custom_call.1} parent=1 // pred_region
      _
    $region13: #{tpu_custom_call.1} parent=1 // pred_fallthru
      _
    // Predicated region
    $region14: #{tpu_custom_call.1} parent=1 // pred_check
      _
    $region15: #{tpu_custom_call.1} parent=1 // pred_check_branch
      %24 = sbr.rel (0) target = $region17
    $region16: #{tpu_custom_call.1} parent=1 // pred_region
      _
    $region17: #{tpu_custom_call.1} parent=1 // pred_fallthru
      _
    // Predicated region
    $region18: #{tpu_custom_call.1} parent=1 // pred_check
      _
    $region19: #{tpu_custom_call.1} parent=1 // pred_check_branch
      %26 = sbr.rel (0) target = $region21
    $region20: #{tpu_custom_call.1} parent=1 // pred_region
      _
    $region21: #{tpu_custom_call.1} parent=1 // pred_fallthru
      _
    // Predicated region
    $region22: #{tpu_custom_call.1} parent=1 // pred_check
      _
    $region23: #{tpu_custom_call.1} parent=1 // pred_check_branch
      %28 = sbr.rel (0) target = $region25
    $region24: #{tpu_custom_call.1} parent=1 // pred_region
      _
    $region25: #{tpu_custom_call.1} parent=1 // pred_fallthru
      _
    // Predicated region
    $region26: #{tpu_custom_call.1} parent=1 // pred_check
      _
    $region27: #{tpu_custom_call.1} parent=1 // pred_check_branch
      %30 = sbr.rel (0) target = $region29
    $region28: #{tpu_custom_call.1} parent=1 // pred_region
      _
    $region29: #{tpu_custom_call.1} parent=1 // pred_fallthru
      _
    // Predicated region
    $region30: #{tpu_custom_call.1} parent=1 // pred_check
      _
    $region31: #{tpu_custom_call.1} parent=1 // pred_check_branch
      %32 = sbr.rel (0) target = $region33
    $region32: #{tpu_custom_call.1} parent=1 // pred_region
      _
    $region33: #{tpu_custom_call.1} parent=1 // pred_fallthru
      _
    // Predicated region
    $region34: #{tpu_custom_call.1} parent=1 // pred_check
      _
    $region35: #{tpu_custom_call.1} parent=1 // pred_check_branch
      %34 = sbr.rel (0) target = $region37
    $region36: #{tpu_custom_call.1} parent=1 // pred_region
      _
    $region37: #{tpu_custom_call.1} parent=1 // pred_fallthru
      _
    // Predicated region
    $region38: #{tpu_custom_call.1} parent=1 // pred_check
      _
    $region39: #{tpu_custom_call.1} parent=1 // pred_check_branch
      %36 = sbr.rel (0) target = $region41
    $region40: #{tpu_custom_call.1} parent=1 // pred_region
      _
    $region41: #{tpu_custom_call.1} parent=1 // pred_fallthru
      _
    // Predicated region
    $region42: #{tpu_custom_call.1} parent=1 // pred_check
      _
    $region43: #{tpu_custom_call.1} parent=1 // pred_check_branch
      %38 = sbr.rel (0) target = $region45
    $region44: #{tpu_custom_call.1} parent=1 // pred_region
      _
    $region45: #{tpu_custom_call.1} parent=1 // pred_fallthru
      _
    %v39 = vld [vmem:[%s0] sm:$0x1]
    %v41 = vlaneseq
    %v42 = vshrl.u32 %v41, 7
    %v43 = vsub.s32 0, %v42
    %v44 = vrot.slane %v39, %v43
    %45 = vrot.lane.b32.xlu0 %v44, 8
    %v46 = vpop.permute.xlu0 %45
    %vm48 = vcmask 64512
    %v49 = vsel %vm48, 0.0, %v46
    %50 = vrot.lane.b32.xlu0 %v44, 120
    %v51 = vpop.permute.xlu0 %50
    %vm53 = vcmask 982016
    %v54 = vsel %vm53, %v51, 0.0
    %v55 = vld [vmem:[%s1] sm:$0xff]
    %v56 = vld [vmem:[%s1 + $0x8] sm:$0xff]
    %v57 = vld [vmem:[%s1 + $0x10] sm:$0xff]
    %v58 = vld [vmem:[%s1 + $0x18] sm:$0xff]
    %v59 = vld [vmem:[%s1 + $0x20] sm:$0xff]
    %v60 = vld [vmem:[%s1 + $0x28] sm:$0xff]
    %v61 = vld [vmem:[%s1 + $0x30] sm:$0xff]
    %v62 = vld [vmem:[%s1 + $0x38] sm:$0xff]
    %v63 = vlaneseq
    %v64 = vshrl.u32 %v63, 7
    %v65 = vsub.s32 0, %v64
    %v66 = vrot.slane %v49, %v65
    %68 = vset.pattern.permute.xlu0 0
    %69 = vperm.xlu0 %68, %v55
    %v70 = vpop.permute.xlu0 %69
    %73 = vset.pattern.permute.xlu0 0
    %74 = vperm.xlu0 %73, %v56
    %v75 = vpop.permute.xlu0 %74
    %78 = vset.pattern.permute.xlu0 0
    %79 = vperm.xlu0 %78, %v57
    %v80 = vpop.permute.xlu0 %79
    %83 = vset.pattern.permute.xlu0 0
    %84 = vperm.xlu0 %83, %v58
    %v85 = vpop.permute.xlu0 %84
    %88 = vset.pattern.permute.xlu0 0
    %89 = vperm.xlu0 %88, %v59
    %v90 = vpop.permute.xlu0 %89
    %93 = vset.pattern.permute.xlu0 0
    %94 = vperm.xlu0 %93, %v60
    %v95 = vpop.permute.xlu0 %94
    %98 = vset.pattern.permute.xlu0 0
    %99 = vperm.xlu0 %98, %v61
    %v100 = vpop.permute.xlu0 %99
    %103 = vset.pattern.permute.xlu0 0
    %104 = vperm.xlu0 %103, %v62
    %v105 = vpop.permute.xlu0 %104
    %v107 = vmul.f32 %v66, %v70
    %v108 = vmul.f32 %v66, %v75
    %v109 = vmul.f32 %v66, %v80
    %v110 = vmul.f32 %v66, %v85
    %v111 = vmul.f32 %v66, %v90
    %v112 = vmul.f32 %v66, %v95
    %v113 = vmul.f32 %v66, %v100
    %v114 = vmul.f32 %v66, %v105
    %s115 = scalar_lea.vmem %s1, 64
    %v116 = vld [vmem:[%s115] sm:$0xff]
    %v117 = vld [vmem:[%s115 + $0x8] sm:$0xff]
    %v118 = vld [vmem:[%s115 + $0x10] sm:$0xff]
    %v119 = vld [vmem:[%s115 + $0x18] sm:$0xff]
    %v120 = vld [vmem:[%s115 + $0x20] sm:$0xff]
    %v121 = vld [vmem:[%s115 + $0x28] sm:$0xff]
    %v122 = vld [vmem:[%s115 + $0x30] sm:$0xff]
    %v123 = vld [vmem:[%s115 + $0x38] sm:$0xff]
    %126 = vset.pattern.permute.xlu0 0
    %127 = vperm.xlu0 %126, %v116
    %v128 = vpop.permute.xlu0 %127
    %131 = vset.pattern.permute.xlu0 0
    %132 = vperm.xlu0 %131, %v117
    %v133 = vpop.permute.xlu0 %132
    %136 = vset.pattern.permute.xlu0 0
    %137 = vperm.xlu0 %136, %v118
    %v138 = vpop.permute.xlu0 %137
    %141 = vset.pattern.permute.xlu0 0
    %142 = vperm.xlu0 %141, %v119
    %v143 = vpop.permute.xlu0 %142
    %146 = vset.pattern.permute.xlu0 0
    %147 = vperm.xlu0 %146, %v120
    %v148 = vpop.permute.xlu0 %147
    %151 = vset.pattern.permute.xlu0 0
    %152 = vperm.xlu0 %151, %v121
    %v153 = vpop.permute.xlu0 %152
    %156 = vset.pattern.permute.xlu0 0
    %157 = vperm.xlu0 %156, %v122
    %v158 = vpop.permute.xlu0 %157
    %161 = vset.pattern.permute.xlu0 0
    %162 = vperm.xlu0 %161, %v123
    %v163 = vpop.permute.xlu0 %162
    %v165 = vmul.f32 %v44, %v128
    %v166 = vmul.f32 %v44, %v133
    %v167 = vmul.f32 %v44, %v138
    %v168 = vmul.f32 %v44, %v143
    %v169 = vmul.f32 %v44, %v148
    %v170 = vmul.f32 %v44, %v153
    %v171 = vmul.f32 %v44, %v158
    %v172 = vmul.f32 %v44, %v163
    %v173 = vadd.f32 %v107, %v165
    %v174 = vadd.f32 %v108, %v166
    %v175 = vadd.f32 %v109, %v167
    %v176 = vadd.f32 %v110, %v168
    %v177 = vadd.f32 %v111, %v169
    %v178 = vadd.f32 %v112, %v170
    %v179 = vadd.f32 %v113, %v171
    %v180 = vadd.f32 %v114, %v172
    %s181 = scalar_lea.vmem %s1, 128
    %v182 = vld [vmem:[%s181] sm:$0xff]
    %v183 = vld [vmem:[%s181 + $0x8] sm:$0xff]
    %v184 = vld [vmem:[%s181 + $0x10] sm:$0xff]
    %v185 = vld [vmem:[%s181 + $0x18] sm:$0xff]
    %v186 = vld [vmem:[%s181 + $0x20] sm:$0xff]
    %v187 = vld [vmem:[%s181 + $0x28] sm:$0xff]
    %v188 = vld [vmem:[%s181 + $0x30] sm:$0xff]
    %v189 = vld [vmem:[%s181 + $0x38] sm:$0xff]
    %v190 = vlaneseq
    %v191 = vshrl.u32 %v190, 7
    %v192 = vsub.s32 0, %v191
    %v193 = vrot.slane %v54, %v192
    %195 = vset.pattern.permute.xlu0 0
    %196 = vperm.xlu0 %195, %v182
    %v197 = vpop.permute.xlu0 %196
    %200 = vset.pattern.permute.xlu0 0
    %201 = vperm.xlu0 %200, %v183
    %v202 = vpop.permute.xlu0 %201
    %205 = vset.pattern.permute.xlu0 0
    %206 = vperm.xlu0 %205, %v184
    %v207 = vpop.permute.xlu0 %206
    %210 = vset.pattern.permute.xlu0 0
    %211 = vperm.xlu0 %210, %v185
    %v212 = vpop.permute.xlu0 %211
    %215 = vset.pattern.permute.xlu0 0
    %216 = vperm.xlu0 %215, %v186
    %v217 = vpop.permute.xlu0 %216
    %220 = vset.pattern.permute.xlu0 0
    %221 = vperm.xlu0 %220, %v187
    %v222 = vpop.permute.xlu0 %221
    %225 = vset.pattern.permute.xlu0 0
    %226 = vperm.xlu0 %225, %v188
    %v227 = vpop.permute.xlu0 %226
    %230 = vset.pattern.permute.xlu0 0
    %231 = vperm.xlu0 %230, %v189
    %v232 = vpop.permute.xlu0 %231
    %v234 = vmul.f32 %v193, %v197
    %v235 = vmul.f32 %v193, %v202
    %v236 = vmul.f32 %v193, %v207
    %v237 = vmul.f32 %v193, %v212
    %v238 = vmul.f32 %v193, %v217
    %v239 = vmul.f32 %v193, %v222
    %v240 = vmul.f32 %v193, %v227
    %v241 = vmul.f32 %v193, %v232
    %v242 = vadd.f32 %v173, %v234
    %v243 = vadd.f32 %v174, %v235
    %v244 = vadd.f32 %v175, %v236
    %v245 = vadd.f32 %v176, %v237
    %v246 = vadd.f32 %v177, %v238
    %v247 = vadd.f32 %v178, %v239
    %v248 = vadd.f32 %v179, %v240
    %v249 = vadd.f32 %v180, %v241
    %v250 = vld [vmem:[%s2] sm:$0xff]
    %v251 = vld [vmem:[%s2 + $0x8] sm:$0xff]
    %v252 = vld [vmem:[%s2 + $0x10] sm:$0xff]
    %v253 = vld [vmem:[%s2 + $0x18] sm:$0xff]
    %v254 = vld [vmem:[%s2 + $0x20] sm:$0xff]
    %v255 = vld [vmem:[%s2 + $0x28] sm:$0xff]
    %v256 = vld [vmem:[%s2 + $0x30] sm:$0xff]
    %v257 = vld [vmem:[%s2 + $0x38] sm:$0xff]
    %259 = vset.pattern.permute.xlu0 0
    %260 = vperm.xlu0 %259, %v250
    %v261 = vpop.permute.xlu0 %260
    %264 = vset.pattern.permute.xlu0 0
    %265 = vperm.xlu0 %264, %v251
    %v266 = vpop.permute.xlu0 %265
    %269 = vset.pattern.permute.xlu0 0
    %270 = vperm.xlu0 %269, %v252
    %v271 = vpop.permute.xlu0 %270
    %274 = vset.pattern.permute.xlu0 0
    %275 = vperm.xlu0 %274, %v253
    %v276 = vpop.permute.xlu0 %275
    %279 = vset.pattern.permute.xlu0 0
    %280 = vperm.xlu0 %279, %v254
    %v281 = vpop.permute.xlu0 %280
    %284 = vset.pattern.permute.xlu0 0
    %285 = vperm.xlu0 %284, %v255
    %v286 = vpop.permute.xlu0 %285
    %289 = vset.pattern.permute.xlu0 0
    %290 = vperm.xlu0 %289, %v256
    %v291 = vpop.permute.xlu0 %290
    %294 = vset.pattern.permute.xlu0 0
    %295 = vperm.xlu0 %294, %v257
    %v296 = vpop.permute.xlu0 %295
    %v298 = vadd.f32 %v242, %v261
    %v299 = vadd.f32 %v243, %v266
    %v300 = vadd.f32 %v244, %v271
    %v301 = vadd.f32 %v245, %v276
    %v302 = vadd.f32 %v246, %v281
    %v303 = vadd.f32 %v247, %v286
    %v304 = vadd.f32 %v248, %v291
    %v305 = vadd.f32 %v249, %v296
    %v306 = vmax.f32 %v298, 0.0
    %v307 = vmax.f32 %v299, 0.0
    %v308 = vmax.f32 %v300, 0.0
    %v309 = vmax.f32 %v301, 0.0
    %v310 = vmax.f32 %v302, 0.0
    %v311 = vmax.f32 %v303, 0.0
    %v312 = vmax.f32 %v304, 0.0
    %v313 = vmax.f32 %v305, 0.0
    %322 = vrot.lane.b32.xlu0 %v306, 120
    %v323 = vpop.permute.xlu0 %322
    %324 = vrot.lane.b32.xlu0 %v307, 120
    %v325 = vpop.permute.xlu0 %324
    %326 = vrot.lane.b32.xlu0 %v308, 120
    %v327 = vpop.permute.xlu0 %326
    %328 = vrot.lane.b32.xlu0 %v309, 120
    %v329 = vpop.permute.xlu0 %328
    %330 = vrot.lane.b32.xlu0 %v310, 120
    %v331 = vpop.permute.xlu0 %330
    %332 = vrot.lane.b32.xlu0 %v311, 120
    %v333 = vpop.permute.xlu0 %332
    %334 = vrot.lane.b32.xlu0 %v312, 120
    %v335 = vpop.permute.xlu0 %334
    %336 = vrot.lane.b32.xlu0 %v313, 120
    %v337 = vpop.permute.xlu0 %336
    %v346 = vadd.f32 %v306, %v323
    %v347 = vadd.f32 %v307, %v325
    %v348 = vadd.f32 %v308, %v327
    %v349 = vadd.f32 %v309, %v329
    %v350 = vadd.f32 %v310, %v331
    %v351 = vadd.f32 %v311, %v333
    %v352 = vadd.f32 %v312, %v335
    %v353 = vadd.f32 %v313, %v337
    %354 = vrot.lane.b32.xlu0 %v306, 112
    %v355 = vpop.permute.xlu0 %354
    %356 = vrot.lane.b32.xlu0 %v307, 112
    %v357 = vpop.permute.xlu0 %356
    %358 = vrot.lane.b32.xlu0 %v308, 112
    %v359 = vpop.permute.xlu0 %358
    %360 = vrot.lane.b32.xlu0 %v309, 112
    %v361 = vpop.permute.xlu0 %360
    %362 = vrot.lane.b32.xlu0 %v310, 112
    %v363 = vpop.permute.xlu0 %362
    %364 = vrot.lane.b32.xlu0 %v311, 112
    %v365 = vpop.permute.xlu0 %364
    %366 = vrot.lane.b32.xlu0 %v312, 112
    %v367 = vpop.permute.xlu0 %366
    %368 = vrot.lane.b32.xlu0 %v313, 112
    %v369 = vpop.permute.xlu0 %368
    %v378 = vadd.f32 %v346, %v355
    %v379 = vadd.f32 %v347, %v357
    %v380 = vadd.f32 %v348, %v359
    %v381 = vadd.f32 %v349, %v361
    %v382 = vadd.f32 %v350, %v363
    %v383 = vadd.f32 %v351, %v365
    %v384 = vadd.f32 %v352, %v367
    %v385 = vadd.f32 %v353, %v369
    %386 = vrot.lane.b32.xlu0 %v306, 104
    %v387 = vpop.permute.xlu0 %386
    %388 = vrot.lane.b32.xlu0 %v307, 104
    %v389 = vpop.permute.xlu0 %388
    %390 = vrot.lane.b32.xlu0 %v308, 104
    %v391 = vpop.permute.xlu0 %390
    %392 = vrot.lane.b32.xlu0 %v309, 104
    %v393 = vpop.permute.xlu0 %392
    %394 = vrot.lane.b32.xlu0 %v310, 104
    %v395 = vpop.permute.xlu0 %394
    %396 = vrot.lane.b32.xlu0 %v311, 104
    %v397 = vpop.permute.xlu0 %396
    %398 = vrot.lane.b32.xlu0 %v312, 104
    %v399 = vpop.permute.xlu0 %398
    %400 = vrot.lane.b32.xlu0 %v313, 104
    %v401 = vpop.permute.xlu0 %400
    %v410 = vadd.f32 %v378, %v387
    %v411 = vadd.f32 %v379, %v389
    %v412 = vadd.f32 %v380, %v391
    %v413 = vadd.f32 %v381, %v393
    %v414 = vadd.f32 %v382, %v395
    %v415 = vadd.f32 %v383, %v397
    %v416 = vadd.f32 %v384, %v399
    %v417 = vadd.f32 %v385, %v401
    %418 = vrot.lane.b32.xlu0 %v306, 96
    %v419 = vpop.permute.xlu0 %418
    %420 = vrot.lane.b32.xlu0 %v307, 96
    %v421 = vpop.permute.xlu0 %420
    %422 = vrot.lane.b32.xlu0 %v308, 96
    %v423 = vpop.permute.xlu0 %422
    %424 = vrot.lane.b32.xlu0 %v309, 96
    %v425 = vpop.permute.xlu0 %424
    %426 = vrot.lane.b32.xlu0 %v310, 96
    %v427 = vpop.permute.xlu0 %426
    %428 = vrot.lane.b32.xlu0 %v311, 96
    %v429 = vpop.permute.xlu0 %428
    %430 = vrot.lane.b32.xlu0 %v312, 96
    %v431 = vpop.permute.xlu0 %430
    %432 = vrot.lane.b32.xlu0 %v313, 96
    %v433 = vpop.permute.xlu0 %432
    %v442 = vadd.f32 %v410, %v419
    %v443 = vadd.f32 %v411, %v421
    %v444 = vadd.f32 %v412, %v423
    %v445 = vadd.f32 %v413, %v425
    %v446 = vadd.f32 %v414, %v427
    %v447 = vadd.f32 %v415, %v429
    %v448 = vadd.f32 %v416, %v431
    %v449 = vadd.f32 %v417, %v433
    %450 = vrot.lane.b32.xlu0 %v306, 88
    %v451 = vpop.permute.xlu0 %450
    %452 = vrot.lane.b32.xlu0 %v307, 88
    %v453 = vpop.permute.xlu0 %452
    %454 = vrot.lane.b32.xlu0 %v308, 88
    %v455 = vpop.permute.xlu0 %454
    %456 = vrot.lane.b32.xlu0 %v309, 88
    %v457 = vpop.permute.xlu0 %456
    %458 = vrot.lane.b32.xlu0 %v310, 88
    %v459 = vpop.permute.xlu0 %458
    %460 = vrot.lane.b32.xlu0 %v311, 88
    %v461 = vpop.permute.xlu0 %460
    %462 = vrot.lane.b32.xlu0 %v312, 88
    %v463 = vpop.permute.xlu0 %462
    %464 = vrot.lane.b32.xlu0 %v313, 88
    %v465 = vpop.permute.xlu0 %464
    %v474 = vadd.f32 %v442, %v451
    %v475 = vadd.f32 %v443, %v453
    %v476 = vadd.f32 %v444, %v455
    %v477 = vadd.f32 %v445, %v457
    %v478 = vadd.f32 %v446, %v459
    %v479 = vadd.f32 %v447, %v461
    %v480 = vadd.f32 %v448, %v463
    %v481 = vadd.f32 %v449, %v465
    %482 = vrot.lane.b32.xlu0 %v306, 80
    %v483 = vpop.permute.xlu0 %482
    %484 = vrot.lane.b32.xlu0 %v307, 80
    %v485 = vpop.permute.xlu0 %484
    %486 = vrot.lane.b32.xlu0 %v308, 80
    %v487 = vpop.permute.xlu0 %486
    %488 = vrot.lane.b32.xlu0 %v309, 80
    %v489 = vpop.permute.xlu0 %488
    %490 = vrot.lane.b32.xlu0 %v310, 80
    %v491 = vpop.permute.xlu0 %490
    %492 = vrot.lane.b32.xlu0 %v311, 80
    %v493 = vpop.permute.xlu0 %492
    %494 = vrot.lane.b32.xlu0 %v312, 80
    %v495 = vpop.permute.xlu0 %494
    %496 = vrot.lane.b32.xlu0 %v313, 80
    %v497 = vpop.permute.xlu0 %496
    %v506 = vadd.f32 %v474, %v483
    %v507 = vadd.f32 %v475, %v485
    %v508 = vadd.f32 %v476, %v487
    %v509 = vadd.f32 %v477, %v489
    %v510 = vadd.f32 %v478, %v491
    %v511 = vadd.f32 %v479, %v493
    %v512 = vadd.f32 %v480, %v495
    %v513 = vadd.f32 %v481, %v497
    %514 = vrot.lane.b32.xlu0 %v306, 72
    %v515 = vpop.permute.xlu0 %514
    %516 = vrot.lane.b32.xlu0 %v307, 72
    %v517 = vpop.permute.xlu0 %516
    %518 = vrot.lane.b32.xlu0 %v308, 72
    %v519 = vpop.permute.xlu0 %518
    %520 = vrot.lane.b32.xlu0 %v309, 72
    %v521 = vpop.permute.xlu0 %520
    %522 = vrot.lane.b32.xlu0 %v310, 72
    %v523 = vpop.permute.xlu0 %522
    %524 = vrot.lane.b32.xlu0 %v311, 72
    %v525 = vpop.permute.xlu0 %524
    %526 = vrot.lane.b32.xlu0 %v312, 72
    %v527 = vpop.permute.xlu0 %526
    %528 = vrot.lane.b32.xlu0 %v313, 72
    %v529 = vpop.permute.xlu0 %528
    %v538 = vadd.f32 %v506, %v515
    %v539 = vadd.f32 %v507, %v517
    %v540 = vadd.f32 %v508, %v519
    %v541 = vadd.f32 %v509, %v521
    %v542 = vadd.f32 %v510, %v523
    %v543 = vadd.f32 %v511, %v525
    %v544 = vadd.f32 %v512, %v527
    %v545 = vadd.f32 %v513, %v529
    %546 = vrot.lane.b32.xlu0 %v306, 64
    %v547 = vpop.permute.xlu0 %546
    %548 = vrot.lane.b32.xlu0 %v307, 64
    %v549 = vpop.permute.xlu0 %548
    %550 = vrot.lane.b32.xlu0 %v308, 64
    %v551 = vpop.permute.xlu0 %550
    %552 = vrot.lane.b32.xlu0 %v309, 64
    %v553 = vpop.permute.xlu0 %552
    %554 = vrot.lane.b32.xlu0 %v310, 64
    %v555 = vpop.permute.xlu0 %554
    %556 = vrot.lane.b32.xlu0 %v311, 64
    %v557 = vpop.permute.xlu0 %556
    %558 = vrot.lane.b32.xlu0 %v312, 64
    %v559 = vpop.permute.xlu0 %558
    %560 = vrot.lane.b32.xlu0 %v313, 64
    %v561 = vpop.permute.xlu0 %560
    %v570 = vadd.f32 %v538, %v547
    %v571 = vadd.f32 %v539, %v549
    %v572 = vadd.f32 %v540, %v551
    %v573 = vadd.f32 %v541, %v553
    %v574 = vadd.f32 %v542, %v555
    %v575 = vadd.f32 %v543, %v557
    %v576 = vadd.f32 %v544, %v559
    %v577 = vadd.f32 %v545, %v561
    %578 = vrot.lane.b32.xlu0 %v306, 56
    %v579 = vpop.permute.xlu0 %578
    %580 = vrot.lane.b32.xlu0 %v307, 56
    %v581 = vpop.permute.xlu0 %580
    %582 = vrot.lane.b32.xlu0 %v308, 56
    %v583 = vpop.permute.xlu0 %582
    %584 = vrot.lane.b32.xlu0 %v309, 56
    %v585 = vpop.permute.xlu0 %584
    %586 = vrot.lane.b32.xlu0 %v310, 56
    %v587 = vpop.permute.xlu0 %586
    %588 = vrot.lane.b32.xlu0 %v311, 56
    %v589 = vpop.permute.xlu0 %588
    %590 = vrot.lane.b32.xlu0 %v312, 56
    %v591 = vpop.permute.xlu0 %590
    %592 = vrot.lane.b32.xlu0 %v313, 56
    %v593 = vpop.permute.xlu0 %592
    %v602 = vadd.f32 %v570, %v579
    %v603 = vadd.f32 %v571, %v581
    %v604 = vadd.f32 %v572, %v583
    %v605 = vadd.f32 %v573, %v585
    %v606 = vadd.f32 %v574, %v587
    %v607 = vadd.f32 %v575, %v589
    %v608 = vadd.f32 %v576, %v591
    %v609 = vadd.f32 %v577, %v593
    %610 = vrot.lane.b32.xlu0 %v306, 48
    %v611 = vpop.permute.xlu0 %610
    %612 = vrot.lane.b32.xlu0 %v307, 48
    %v613 = vpop.permute.xlu0 %612
    %614 = vrot.lane.b32.xlu0 %v308, 48
    %v615 = vpop.permute.xlu0 %614
    %616 = vrot.lane.b32.xlu0 %v309, 48
    %v617 = vpop.permute.xlu0 %616
    %618 = vrot.lane.b32.xlu0 %v310, 48
    %v619 = vpop.permute.xlu0 %618
    %620 = vrot.lane.b32.xlu0 %v311, 48
    %v621 = vpop.permute.xlu0 %620
    %622 = vrot.lane.b32.xlu0 %v312, 48
    %v623 = vpop.permute.xlu0 %622
    %624 = vrot.lane.b32.xlu0 %v313, 48
    %v625 = vpop.permute.xlu0 %624
    %v634 = vadd.f32 %v602, %v611
    %v635 = vadd.f32 %v603, %v613
    %v636 = vadd.f32 %v604, %v615
    %v637 = vadd.f32 %v605, %v617
    %v638 = vadd.f32 %v606, %v619
    %v639 = vadd.f32 %v607, %v621
    %v640 = vadd.f32 %v608, %v623
    %v641 = vadd.f32 %v609, %v625
    %642 = vrot.lane.b32.xlu0 %v306, 40
    %v643 = vpop.permute.xlu0 %642
    %644 = vrot.lane.b32.xlu0 %v307, 40
    %v645 = vpop.permute.xlu0 %644
    %646 = vrot.lane.b32.xlu0 %v308, 40
    %v647 = vpop.permute.xlu0 %646
    %648 = vrot.lane.b32.xlu0 %v309, 40
    %v649 = vpop.permute.xlu0 %648
    %650 = vrot.lane.b32.xlu0 %v310, 40
    %v651 = vpop.permute.xlu0 %650
    %652 = vrot.lane.b32.xlu0 %v311, 40
    %v653 = vpop.permute.xlu0 %652
    %654 = vrot.lane.b32.xlu0 %v312, 40
    %v655 = vpop.permute.xlu0 %654
    %656 = vrot.lane.b32.xlu0 %v313, 40
    %v657 = vpop.permute.xlu0 %656
    %v666 = vadd.f32 %v634, %v643
    %v667 = vadd.f32 %v635, %v645
    %v668 = vadd.f32 %v636, %v647
    %v669 = vadd.f32 %v637, %v649
    %v670 = vadd.f32 %v638, %v651
    %v671 = vadd.f32 %v639, %v653
    %v672 = vadd.f32 %v640, %v655
    %v673 = vadd.f32 %v641, %v657
    %674 = vrot.lane.b32.xlu0 %v306, 32
    %v675 = vpop.permute.xlu0 %674
    %676 = vrot.lane.b32.xlu0 %v307, 32
    %v677 = vpop.permute.xlu0 %676
    %678 = vrot.lane.b32.xlu0 %v308, 32
    %v679 = vpop.permute.xlu0 %678
    %680 = vrot.lane.b32.xlu0 %v309, 32
    %v681 = vpop.permute.xlu0 %680
    %682 = vrot.lane.b32.xlu0 %v310, 32
    %v683 = vpop.permute.xlu0 %682
    %684 = vrot.lane.b32.xlu0 %v311, 32
    %v685 = vpop.permute.xlu0 %684
    %686 = vrot.lane.b32.xlu0 %v312, 32
    %v687 = vpop.permute.xlu0 %686
    %688 = vrot.lane.b32.xlu0 %v313, 32
    %v689 = vpop.permute.xlu0 %688
    %v698 = vadd.f32 %v666, %v675
    %v699 = vadd.f32 %v667, %v677
    %v700 = vadd.f32 %v668, %v679
    %v701 = vadd.f32 %v669, %v681
    %v702 = vadd.f32 %v670, %v683
    %v703 = vadd.f32 %v671, %v685
    %v704 = vadd.f32 %v672, %v687
    %v705 = vadd.f32 %v673, %v689
    %706 = vrot.lane.b32.xlu0 %v306, 24
    %v707 = vpop.permute.xlu0 %706
    %708 = vrot.lane.b32.xlu0 %v307, 24
    %v709 = vpop.permute.xlu0 %708
    %710 = vrot.lane.b32.xlu0 %v308, 24
    %v711 = vpop.permute.xlu0 %710
    %712 = vrot.lane.b32.xlu0 %v309, 24
    %v713 = vpop.permute.xlu0 %712
    %714 = vrot.lane.b32.xlu0 %v310, 24
    %v715 = vpop.permute.xlu0 %714
    %716 = vrot.lane.b32.xlu0 %v311, 24
    %v717 = vpop.permute.xlu0 %716
    %718 = vrot.lane.b32.xlu0 %v312, 24
    %v719 = vpop.permute.xlu0 %718
    %720 = vrot.lane.b32.xlu0 %v313, 24
    %v721 = vpop.permute.xlu0 %720
    %v730 = vadd.f32 %v698, %v707
    %v731 = vadd.f32 %v699, %v709
    %v732 = vadd.f32 %v700, %v711
    %v733 = vadd.f32 %v701, %v713
    %v734 = vadd.f32 %v702, %v715
    %v735 = vadd.f32 %v703, %v717
    %v736 = vadd.f32 %v704, %v719
    %v737 = vadd.f32 %v705, %v721
    %738 = vrot.lane.b32.xlu0 %v306, 16
    %v739 = vpop.permute.xlu0 %738
    %740 = vrot.lane.b32.xlu0 %v307, 16
    %v741 = vpop.permute.xlu0 %740
    %742 = vrot.lane.b32.xlu0 %v308, 16
    %v743 = vpop.permute.xlu0 %742
    %744 = vrot.lane.b32.xlu0 %v309, 16
    %v745 = vpop.permute.xlu0 %744
    %746 = vrot.lane.b32.xlu0 %v310, 16
    %v747 = vpop.permute.xlu0 %746
    %748 = vrot.lane.b32.xlu0 %v311, 16
    %v749 = vpop.permute.xlu0 %748
    %750 = vrot.lane.b32.xlu0 %v312, 16
    %v751 = vpop.permute.xlu0 %750
    %752 = vrot.lane.b32.xlu0 %v313, 16
    %v753 = vpop.permute.xlu0 %752
    %v762 = vadd.f32 %v730, %v739
    %v763 = vadd.f32 %v731, %v741
    %v764 = vadd.f32 %v732, %v743
    %v765 = vadd.f32 %v733, %v745
    %v766 = vadd.f32 %v734, %v747
    %v767 = vadd.f32 %v735, %v749
    %v768 = vadd.f32 %v736, %v751
    %v769 = vadd.f32 %v737, %v753
    %770 = vrot.lane.b32.xlu0 %v306, 8
    %v771 = vpop.permute.xlu0 %770
    %772 = vrot.lane.b32.xlu0 %v307, 8
    %v773 = vpop.permute.xlu0 %772
    %774 = vrot.lane.b32.xlu0 %v308, 8
    %v775 = vpop.permute.xlu0 %774
    %776 = vrot.lane.b32.xlu0 %v309, 8
    %v777 = vpop.permute.xlu0 %776
    %778 = vrot.lane.b32.xlu0 %v310, 8
    %v779 = vpop.permute.xlu0 %778
    %780 = vrot.lane.b32.xlu0 %v311, 8
    %v781 = vpop.permute.xlu0 %780
    %782 = vrot.lane.b32.xlu0 %v312, 8
    %v783 = vpop.permute.xlu0 %782
    %784 = vrot.lane.b32.xlu0 %v313, 8
    %v785 = vpop.permute.xlu0 %784
    %v794 = vadd.f32 %v762, %v771
    %v795 = vadd.f32 %v763, %v773
    %v796 = vadd.f32 %v764, %v775
    %v797 = vadd.f32 %v765, %v777
    %v798 = vadd.f32 %v766, %v779
    %v799 = vadd.f32 %v767, %v781
    %v800 = vadd.f32 %v768, %v783
    %v801 = vadd.f32 %v769, %v785
    %v802 = vmul.f32 %v794, 0.0625
    %v803 = vmul.f32 %v795, 0.0625
    %v804 = vmul.f32 %v796, 0.0625
    %v805 = vmul.f32 %v797, 0.0625
    %v806 = vmul.f32 %v798, 0.0625
    %v807 = vmul.f32 %v799, 0.0625
    %v808 = vmul.f32 %v800, 0.0625
    %v809 = vmul.f32 %v801, 0.0625
    %v810 = vld [vmem:[%s3] sm:$0xf]
    %vm811 = vcmask 523264
    %v813 = vsel %vm811, %v810, 0
    %815 = vmatprep.subr.mxu0 0.0
    %816 = vmatpush1.msra.mxu0 %v802
    %817 = vmatprep.subr.mxu0 0.0
    %818 = vmatpush1.msra.mxu0 %v803
    %819 = vmatprep.subr.mxu0 0.0
    %820 = vmatpush1.msra.mxu0 %v804
    %821 = vmatprep.subr.mxu0 0.0
    %822 = vmatpush1.msra.mxu0 %v805
    %823 = vmatprep.subr.mxu0 0.0
    %824 = vmatpush1.msra.mxu0 %v806
    %825 = vmatprep.subr.mxu0 0.0
    %826 = vmatpush1.msra.mxu0 %v807
    %827 = vmatprep.subr.mxu0 0.0
    %828 = vmatpush1.msra.mxu0 %v808
    %829 = vmatprep.subr.mxu0 0.0
    %830 = vmatpush1.msra.mxu0 %v809
    %831 = vmatprep.subr.mxu0 0.0
    %832 = vmatpush1.msra.mxu0 0.0
    %833 = vmatprep.subr.mxu0 0.0
    %834 = vmatpush1.msra.mxu0 0.0
    %835 = vmatprep.subr.mxu0 0.0
    %836 = vmatpush1.msra.mxu0 0.0
    %837 = vmatprep.subr.mxu0 0.0
    %838 = vmatpush1.msra.mxu0 0.0
    %839 = vmatprep.subr.mxu0 0.0
    %840 = vmatpush1.msra.mxu0 0.0
    %841 = vmatprep.subr.mxu0 0.0
    %842 = vmatpush1.msra.mxu0 0.0
    %843 = vmatprep.subr.mxu0 0.0
    %844 = vmatpush1.msra.mxu0 0.0
    %845 = vmatprep.subr.mxu0 0.0
    %846 = vmatpush1.msra.mxu0 0.0
    %847 = vmatprep.subr.mxu0 0.0
    %848 = vmatpush1.msra.mxu0 0.0
    %849 = vmatprep.subr.mxu0 0.0
    %850 = vmatpush1.msra.mxu0 0.0
    %851 = vmatprep.subr.mxu0 0.0
    %852 = vmatpush1.msra.mxu0 0.0
    %853 = vmatprep.subr.mxu0 0.0
    %854 = vmatpush1.msra.mxu0 0.0
    %855 = vmatprep.subr.mxu0 0.0
    %856 = vmatpush1.msra.mxu0 0.0
    %857 = vmatprep.subr.mxu0 0.0
    %858 = vmatpush1.msra.mxu0 0.0
    %859 = vmatprep.subr.mxu0 0.0
    %860 = vmatpush1.msra.mxu0 0.0
    %861 = vmatprep.subr.mxu0 0.0
    %862 = vmatpush1.msra.mxu0 0.0
    %863 = vmatprep.subr.mxu0 0.0
    %864 = vmatpush1.msra.mxu0 0.0
    %865 = vmatprep.subr.mxu0 0.0
    %866 = vmatpush1.msra.mxu0 0.0
    %867 = vmatprep.subr.mxu0 0.0
    %868 = vmatpush1.msra.mxu0 0.0
    %869 = vmatprep.subr.mxu0 0.0
    %870 = vmatpush1.msra.mxu0 0.0
    %871 = vmatprep.subr.mxu0 0.0
    %872 = vmatpush1.msra.mxu0 0.0
    %873 = vmatprep.subr.mxu0 0.0
    %874 = vmatpush1.msra.mxu0 0.0
    %875 = vmatprep.subr.mxu0 0.0
    %876 = vmatpush1.msra.mxu0 0.0
    %877 = vmatprep.subr.mxu0 0.0
    %878 = vmatpush1.msra.mxu0 0.0
    %879 = vmatprep.mubr.f32.mxu0 0.0
    %880 = vmatmul.mubr.f32.gmra.mrb[0].mxu0 %v813
    %v881 = vpop.f32.mrb[0].mxu0
    %v882 = vadd.f32 0.0, %v881
    %v883 = vpop.f32.mrb[0].mxu0
    %884 = vdwg.mxu0
    %v885 = vmax.f32 %v882, 0.0
    %v886 = vld [vmem:[%s4] sm:$0xff]
    %v887 = vld [vmem:[%s4 + $0x8] sm:$0xff]
    %v888 = vld [vmem:[%s4 + $0x10] sm:$0xff]
    %v889 = vld [vmem:[%s4 + $0x18] sm:$0xff]
    %v890 = vld [vmem:[%s4 + $0x20] sm:$0xff]
    %v891 = vld [vmem:[%s4 + $0x28] sm:$0xff]
    %v892 = vld [vmem:[%s4 + $0x30] sm:$0xff]
    %v893 = vld [vmem:[%s4 + $0x38] sm:$0xff]
    %vm894 = vcmask 31744
    %v896 = vsel %vm894, %v886, 0
    %v899 = vsel %vm894, %v887, 0
    %v902 = vsel %vm894, %v888, 0
    %v905 = vsel %vm894, %v889, 0
    %v908 = vsel %vm894, %v890, 0
    %v911 = vsel %vm894, %v891, 0
    %v914 = vsel %vm894, %v892, 0
    %v917 = vsel %vm894, %v893, 0
    %vm919 = vcmask 1043456
    %v921 = vsel %vm919, %v885, 0
    %923 = vmatprep.subr.mxu0 0.0
    %924 = vmatpush1.msra.mxu0 %v921
    %925 = vmatprep.subr.mxu0 0.0
    %926 = vmatpush1.msra.mxu0 0.0
    %927 = vmatprep.subr.mxu0 0.0
    %928 = vmatpush1.msra.mxu0 0.0
    %929 = vmatprep.subr.mxu0 0.0
    %930 = vmatpush1.msra.mxu0 0.0
    %931 = vmatprep.subr.mxu0 0.0
    %932 = vmatpush1.msra.mxu0 0.0
    %933 = vmatprep.subr.mxu0 0.0
    %934 = vmatpush1.msra.mxu0 0.0
    %935 = vmatprep.subr.mxu0 0.0
    %936 = vmatpush1.msra.mxu0 0.0
    %937 = vmatprep.subr.mxu0 0.0
    %938 = vmatpush1.msra.mxu0 0.0
    %939 = vmatprep.subr.mxu0 0.0
    %940 = vmatpush1.msra.mxu0 0.0
    %941 = vmatprep.subr.mxu0 0.0
    %942 = vmatpush1.msra.mxu0 0.0
    %943 = vmatprep.subr.mxu0 0.0
    %944 = vmatpush1.msra.mxu0 0.0
    %945 = vmatprep.subr.mxu0 0.0
    %946 = vmatpush1.msra.mxu0 0.0
    %947 = vmatprep.subr.mxu0 0.0
    %948 = vmatpush1.msra.mxu0 0.0
    %949 = vmatprep.subr.mxu0 0.0
    %950 = vmatpush1.msra.mxu0 0.0
    %951 = vmatprep.subr.mxu0 0.0
    %952 = vmatpush1.msra.mxu0 0.0
    %953 = vmatprep.subr.mxu0 0.0
    %954 = vmatpush1.msra.mxu0 0.0
    %955 = vmatprep.subr.mxu0 0.0
    %956 = vmatpush1.msra.mxu0 0.0
    %957 = vmatprep.subr.mxu0 0.0
    %958 = vmatpush1.msra.mxu0 0.0
    %959 = vmatprep.subr.mxu0 0.0
    %960 = vmatpush1.msra.mxu0 0.0
    %961 = vmatprep.subr.mxu0 0.0
    %962 = vmatpush1.msra.mxu0 0.0
    %963 = vmatprep.subr.mxu0 0.0
    %964 = vmatpush1.msra.mxu0 0.0
    %965 = vmatprep.subr.mxu0 0.0
    %966 = vmatpush1.msra.mxu0 0.0
    %967 = vmatprep.subr.mxu0 0.0
    %968 = vmatpush1.msra.mxu0 0.0
    %969 = vmatprep.subr.mxu0 0.0
    %970 = vmatpush1.msra.mxu0 0.0
    %971 = vmatprep.subr.mxu0 0.0
    %972 = vmatpush1.msra.mxu0 0.0
    %973 = vmatprep.subr.mxu0 0.0
    %974 = vmatpush1.msra.mxu0 0.0
    %975 = vmatprep.subr.mxu0 0.0
    %976 = vmatpush1.msra.mxu0 0.0
    %977 = vmatprep.subr.mxu0 0.0
    %978 = vmatpush1.msra.mxu0 0.0
    %979 = vmatprep.subr.mxu0 0.0
    %980 = vmatpush1.msra.mxu0 0.0
    %981 = vmatprep.subr.mxu0 0.0
    %982 = vmatpush1.msra.mxu0 0.0
    %983 = vmatprep.subr.mxu0 0.0
    %984 = vmatpush1.msra.mxu0 0.0
    %985 = vmatprep.subr.mxu0 0.0
    %986 = vmatpush1.msra.mxu0 0.0
    %987 = vmatprep.mubr.f32.mxu0 0.0
    %988 = vmatmul.mubr.f32.gmra.mrb[0].mxu0 %v896
    %v989 = vpop.f32.mrb[0].mxu0
    %v990 = vadd.f32 0.0, %v989
    %v991 = vpop.f32.mrb[0].mxu0
    %992 = vmatprep.mubr.f32.mxu0 0.0
    %993 = vmatmul.mubr.f32.gmra.mrb[0].mxu0 %v899
    %v994 = vpop.f32.mrb[0].mxu0
    %v995 = vadd.f32 0.0, %v994
    %v996 = vpop.f32.mrb[0].mxu0
    %997 = vmatprep.mubr.f32.mxu0 0.0
    %998 = vmatmul.mubr.f32.gmra.mrb[0].mxu0 %v902
    %v999 = vpop.f32.mrb[0].mxu0
    %v1000 = vadd.f32 0.0, %v999
    %v1001 = vpop.f32.mrb[0].mxu0
    %1002 = vmatprep.mubr.f32.mxu0 0.0
    %1003 = vmatmul.mubr.f32.gmra.mrb[0].mxu0 %v905
    %v1004 = vpop.f32.mrb[0].mxu0
    %v1005 = vadd.f32 0.0, %v1004
    %v1006 = vpop.f32.mrb[0].mxu0
    %1007 = vmatprep.mubr.f32.mxu0 0.0
    %1008 = vmatmul.mubr.f32.gmra.mrb[0].mxu0 %v908
    %v1009 = vpop.f32.mrb[0].mxu0
    %v1010 = vadd.f32 0.0, %v1009
    %v1011 = vpop.f32.mrb[0].mxu0
    %1012 = vmatprep.mubr.f32.mxu0 0.0
    %1013 = vmatmul.mubr.f32.gmra.mrb[0].mxu0 %v911
    %v1014 = vpop.f32.mrb[0].mxu0
    %v1015 = vadd.f32 0.0, %v1014
    %v1016 = vpop.f32.mrb[0].mxu0
    %1017 = vmatprep.mubr.f32.mxu0 0.0
    %1018 = vmatmul.mubr.f32.gmra.mrb[0].mxu0 %v914
    %v1019 = vpop.f32.mrb[0].mxu0
    %v1020 = vadd.f32 0.0, %v1019
    %v1021 = vpop.f32.mrb[0].mxu0
    %1022 = vmatprep.mubr.f32.mxu0 0.0
    %1023 = vmatmul.mubr.f32.gmra.mrb[0].mxu0 %v917
    %v1024 = vpop.f32.mrb[0].mxu0
    %v1025 = vadd.f32 0.0, %v1024
    %v1026 = vpop.f32.mrb[0].mxu0
    %1027 = vdwg.mxu0
    %v1028 = vxor.u32 %v990, 2147483648
    %v1029 = vxor.u32 %v995, 2147483648
    %v1030 = vxor.u32 %v1000, 2147483648
    %v1031 = vxor.u32 %v1005, 2147483648
    %v1032 = vxor.u32 %v1010, 2147483648
    %v1033 = vxor.u32 %v1015, 2147483648
    %v1034 = vxor.u32 %v1020, 2147483648
    %v1035 = vxor.u32 %v1025, 2147483648
    %v1036 = vmul.f32 %v1028, 1.442695
    %v1037 = vpow.pop %v1036
    %v1038 = vmul.f32 %v1029, 1.442695
    %v1039 = vpow.pop %v1038
    %v1040 = vmul.f32 %v1030, 1.442695
    %v1041 = vpow.pop %v1040
    %v1042 = vmul.f32 %v1031, 1.442695
    %v1043 = vpow.pop %v1042
    %v1044 = vmul.f32 %v1032, 1.442695
    %v1045 = vpow.pop %v1044
    %v1046 = vmul.f32 %v1033, 1.442695
    %v1047 = vpow.pop %v1046
    %v1048 = vmul.f32 %v1034, 1.442695
    %v1049 = vpow.pop %v1048
    %v1050 = vmul.f32 %v1035, 1.442695
    %v1051 = vpow.pop %v1050
    %v1052 = vadd.f32 %v1037, 1.0
    %v1053 = vadd.f32 %v1039, 1.0
    %v1054 = vadd.f32 %v1041, 1.0
    %v1055 = vadd.f32 %v1043, 1.0
    %v1056 = vadd.f32 %v1045, 1.0
    %v1057 = vadd.f32 %v1047, 1.0
    %v1058 = vadd.f32 %v1049, 1.0
    %v1059 = vadd.f32 %v1051, 1.0
    %v1060 = vrcp.pop %v1052
    %v1061 = vmul.f32 1.0, %v1060
    %v1062 = vrcp.pop %v1053
    %v1063 = vmul.f32 1.0, %v1062
    %v1064 = vrcp.pop %v1054
    %v1065 = vmul.f32 1.0, %v1064
    %v1066 = vrcp.pop %v1055
    %v1067 = vmul.f32 1.0, %v1066
    %v1068 = vrcp.pop %v1056
    %v1069 = vmul.f32 1.0, %v1068
    %v1070 = vrcp.pop %v1057
    %v1071 = vmul.f32 1.0, %v1070
    %v1072 = vrcp.pop %v1058
    %v1073 = vmul.f32 1.0, %v1072
    %v1074 = vrcp.pop %v1059
    %v1075 = vmul.f32 1.0, %v1074
    %v1076 = vmul.f32 %v306, %v1061
    %v1077 = vmul.f32 %v307, %v1063
    %v1078 = vmul.f32 %v308, %v1065
    %v1079 = vmul.f32 %v309, %v1067
    %v1080 = vmul.f32 %v310, %v1069
    %v1081 = vmul.f32 %v311, %v1071
    %v1082 = vmul.f32 %v312, %v1073
    %v1083 = vmul.f32 %v313, %v1075
    %1092 = vrot.lane.b32.xlu0 %v1061, 8
    %v1093 = vpop.permute.xlu0 %1092
    %1094 = vrot.lane.b32.xlu0 %v1063, 8
    %v1095 = vpop.permute.xlu0 %1094
    %1096 = vrot.lane.b32.xlu0 %v1065, 8
    %v1097 = vpop.permute.xlu0 %1096
    %1098 = vrot.lane.b32.xlu0 %v1067, 8
    %v1099 = vpop.permute.xlu0 %1098
    %1100 = vrot.lane.b32.xlu0 %v1069, 8
    %v1101 = vpop.permute.xlu0 %1100
    %1102 = vrot.lane.b32.xlu0 %v1071, 8
    %v1103 = vpop.permute.xlu0 %1102
    %1104 = vrot.lane.b32.xlu0 %v1073, 8
    %v1105 = vpop.permute.xlu0 %1104
    %1106 = vrot.lane.b32.xlu0 %v1075, 8
    %v1107 = vpop.permute.xlu0 %1106
    %v1116 = vmul.f32 %v306, %v1093
    %v1117 = vmul.f32 %v307, %v1095
    %v1118 = vmul.f32 %v308, %v1097
    %v1119 = vmul.f32 %v309, %v1099
    %v1120 = vmul.f32 %v310, %v1101
    %v1121 = vmul.f32 %v311, %v1103
    %v1122 = vmul.f32 %v312, %v1105
    %v1123 = vmul.f32 %v313, %v1107
    %1124 = vrot.lane.b32.xlu0 %v1061, 16
    %v1125 = vpop.permute.xlu0 %1124
    %1126 = vrot.lane.b32.xlu0 %v1063, 16
    %v1127 = vpop.permute.xlu0 %1126
    %1128 = vrot.lane.b32.xlu0 %v1065, 16
    %v1129 = vpop.permute.xlu0 %1128
    %1130 = vrot.lane.b32.xlu0 %v1067, 16
    %v1131 = vpop.permute.xlu0 %1130
    %1132 = vrot.lane.b32.xlu0 %v1069, 16
    %v1133 = vpop.permute.xlu0 %1132
    %1134 = vrot.lane.b32.xlu0 %v1071, 16
    %v1135 = vpop.permute.xlu0 %1134
    %1136 = vrot.lane.b32.xlu0 %v1073, 16
    %v1137 = vpop.permute.xlu0 %1136
    %1138 = vrot.lane.b32.xlu0 %v1075, 16
    %v1139 = vpop.permute.xlu0 %1138
    %v1148 = vmul.f32 %v306, %v1125
    %v1149 = vmul.f32 %v307, %v1127
    %v1150 = vmul.f32 %v308, %v1129
    %v1151 = vmul.f32 %v309, %v1131
    %v1152 = vmul.f32 %v310, %v1133
    %v1153 = vmul.f32 %v311, %v1135
    %v1154 = vmul.f32 %v312, %v1137
    %v1155 = vmul.f32 %v313, %v1139
    %1156 = vrot.lane.b32.xlu0 %v1061, 24
    %v1157 = vpop.permute.xlu0 %1156
    %1158 = vrot.lane.b32.xlu0 %v1063, 24
    %v1159 = vpop.permute.xlu0 %1158
    %1160 = vrot.lane.b32.xlu0 %v1065, 24
    %v1161 = vpop.permute.xlu0 %1160
    %1162 = vrot.lane.b32.xlu0 %v1067, 24
    %v1163 = vpop.permute.xlu0 %1162
    %1164 = vrot.lane.b32.xlu0 %v1069, 24
    %v1165 = vpop.permute.xlu0 %1164
    %1166 = vrot.lane.b32.xlu0 %v1071, 24
    %v1167 = vpop.permute.xlu0 %1166
    %1168 = vrot.lane.b32.xlu0 %v1073, 24
    %v1169 = vpop.permute.xlu0 %1168
    %1170 = vrot.lane.b32.xlu0 %v1075, 24
    %v1171 = vpop.permute.xlu0 %1170
    %v1180 = vmul.f32 %v306, %v1157
    %v1181 = vmul.f32 %v307, %v1159
    %v1182 = vmul.f32 %v308, %v1161
    %v1183 = vmul.f32 %v309, %v1163
    %v1184 = vmul.f32 %v310, %v1165
    %v1185 = vmul.f32 %v311, %v1167
    %v1186 = vmul.f32 %v312, %v1169
    %v1187 = vmul.f32 %v313, %v1171
    %1188 = vrot.lane.b32.xlu0 %v1061, 32
    %v1189 = vpop.permute.xlu0 %1188
    %1190 = vrot.lane.b32.xlu0 %v1063, 32
    %v1191 = vpop.permute.xlu0 %1190
    %1192 = vrot.lane.b32.xlu0 %v1065, 32
    %v1193 = vpop.permute.xlu0 %1192
    %1194 = vrot.lane.b32.xlu0 %v1067, 32
    %v1195 = vpop.permute.xlu0 %1194
    %1196 = vrot.lane.b32.xlu0 %v1069, 32
    %v1197 = vpop.permute.xlu0 %1196
    %1198 = vrot.lane.b32.xlu0 %v1071, 32
    %v1199 = vpop.permute.xlu0 %1198
    %1200 = vrot.lane.b32.xlu0 %v1073, 32
    %v1201 = vpop.permute.xlu0 %1200
    %1202 = vrot.lane.b32.xlu0 %v1075, 32
    %v1203 = vpop.permute.xlu0 %1202
    %v1212 = vmul.f32 %v306, %v1189
    %v1213 = vmul.f32 %v307, %v1191
    %v1214 = vmul.f32 %v308, %v1193
    %v1215 = vmul.f32 %v309, %v1195
    %v1216 = vmul.f32 %v310, %v1197
    %v1217 = vmul.f32 %v311, %v1199
    %v1218 = vmul.f32 %v312, %v1201
    %v1219 = vmul.f32 %v313, %v1203
    %1220 = vrot.lane.b32.xlu0 %v1061, 40
    %v1221 = vpop.permute.xlu0 %1220
    %1222 = vrot.lane.b32.xlu0 %v1063, 40
    %v1223 = vpop.permute.xlu0 %1222
    %1224 = vrot.lane.b32.xlu0 %v1065, 40
    %v1225 = vpop.permute.xlu0 %1224
    %1226 = vrot.lane.b32.xlu0 %v1067, 40
    %v1227 = vpop.permute.xlu0 %1226
    %1228 = vrot.lane.b32.xlu0 %v1069, 40
    %v1229 = vpop.permute.xlu0 %1228
    %1230 = vrot.lane.b32.xlu0 %v1071, 40
    %v1231 = vpop.permute.xlu0 %1230
    %1232 = vrot.lane.b32.xlu0 %v1073, 40
    %v1233 = vpop.permute.xlu0 %1232
    %1234 = vrot.lane.b32.xlu0 %v1075, 40
    %v1235 = vpop.permute.xlu0 %1234
    %v1244 = vmul.f32 %v306, %v1221
    %v1245 = vmul.f32 %v307, %v1223
    %v1246 = vmul.f32 %v308, %v1225
    %v1247 = vmul.f32 %v309, %v1227
    %v1248 = vmul.f32 %v310, %v1229
    %v1249 = vmul.f32 %v311, %v1231
    %v1250 = vmul.f32 %v312, %v1233
    %v1251 = vmul.f32 %v313, %v1235
    %1252 = vrot.lane.b32.xlu0 %v1061, 48
    %v1253 = vpop.permute.xlu0 %1252
    %1254 = vrot.lane.b32.xlu0 %v1063, 48
    %v1255 = vpop.permute.xlu0 %1254
    %1256 = vrot.lane.b32.xlu0 %v1065, 48
    %v1257 = vpop.permute.xlu0 %1256
    %1258 = vrot.lane.b32.xlu0 %v1067, 48
    %v1259 = vpop.permute.xlu0 %1258
    %1260 = vrot.lane.b32.xlu0 %v1069, 48
    %v1261 = vpop.permute.xlu0 %1260
    %1262 = vrot.lane.b32.xlu0 %v1071, 48
    %v1263 = vpop.permute.xlu0 %1262
    %1264 = vrot.lane.b32.xlu0 %v1073, 48
    %v1265 = vpop.permute.xlu0 %1264
    %1266 = vrot.lane.b32.xlu0 %v1075, 48
    %v1267 = vpop.permute.xlu0 %1266
    %v1276 = vmul.f32 %v306, %v1253
    %v1277 = vmul.f32 %v307, %v1255
    %v1278 = vmul.f32 %v308, %v1257
    %v1279 = vmul.f32 %v309, %v1259
    %v1280 = vmul.f32 %v310, %v1261
    %v1281 = vmul.f32 %v311, %v1263
    %v1282 = vmul.f32 %v312, %v1265
    %v1283 = vmul.f32 %v313, %v1267
    %1284 = vrot.lane.b32.xlu0 %v1061, 56
    %v1285 = vpop.permute.xlu0 %1284
    %1286 = vrot.lane.b32.xlu0 %v1063, 56
    %v1287 = vpop.permute.xlu0 %1286
    %1288 = vrot.lane.b32.xlu0 %v1065, 56
    %v1289 = vpop.permute.xlu0 %1288
    %1290 = vrot.lane.b32.xlu0 %v1067, 56
    %v1291 = vpop.permute.xlu0 %1290
    %1292 = vrot.lane.b32.xlu0 %v1069, 56
    %v1293 = vpop.permute.xlu0 %1292
    %1294 = vrot.lane.b32.xlu0 %v1071, 56
    %v1295 = vpop.permute.xlu0 %1294
    %1296 = vrot.lane.b32.xlu0 %v1073, 56
    %v1297 = vpop.permute.xlu0 %1296
    %1298 = vrot.lane.b32.xlu0 %v1075, 56
    %v1299 = vpop.permute.xlu0 %1298
    %v1308 = vmul.f32 %v306, %v1285
    %v1309 = vmul.f32 %v307, %v1287
    %v1310 = vmul.f32 %v308, %v1289
    %v1311 = vmul.f32 %v309, %v1291
    %v1312 = vmul.f32 %v310, %v1293
    %v1313 = vmul.f32 %v311, %v1295
    %v1314 = vmul.f32 %v312, %v1297
    %v1315 = vmul.f32 %v313, %v1299
    %1316 = vrot.lane.b32.xlu0 %v1061, 64
    %v1317 = vpop.permute.xlu0 %1316
    %1318 = vrot.lane.b32.xlu0 %v1063, 64
    %v1319 = vpop.permute.xlu0 %1318
    %1320 = vrot.lane.b32.xlu0 %v1065, 64
    %v1321 = vpop.permute.xlu0 %1320
    %1322 = vrot.lane.b32.xlu0 %v1067, 64
    %v1323 = vpop.permute.xlu0 %1322
    %1324 = vrot.lane.b32.xlu0 %v1069, 64
    %v1325 = vpop.permute.xlu0 %1324
    %1326 = vrot.lane.b32.xlu0 %v1071, 64
    %v1327 = vpop.permute.xlu0 %1326
    %1328 = vrot.lane.b32.xlu0 %v1073, 64
    %v1329 = vpop.permute.xlu0 %1328
    %1330 = vrot.lane.b32.xlu0 %v1075, 64
    %v1331 = vpop.permute.xlu0 %1330
    %v1340 = vmul.f32 %v306, %v1317
    %v1341 = vmul.f32 %v307, %v1319
    %v1342 = vmul.f32 %v308, %v1321
    %v1343 = vmul.f32 %v309, %v1323
    %v1344 = vmul.f32 %v310, %v1325
    %v1345 = vmul.f32 %v311, %v1327
    %v1346 = vmul.f32 %v312, %v1329
    %v1347 = vmul.f32 %v313, %v1331
    %1348 = vrot.lane.b32.xlu0 %v1061, 72
    %v1349 = vpop.permute.xlu0 %1348
    %1350 = vrot.lane.b32.xlu0 %v1063, 72
    %v1351 = vpop.permute.xlu0 %1350
    %1352 = vrot.lane.b32.xlu0 %v1065, 72
    %v1353 = vpop.permute.xlu0 %1352
    %1354 = vrot.lane.b32.xlu0 %v1067, 72
    %v1355 = vpop.permute.xlu0 %1354
    %1356 = vrot.lane.b32.xlu0 %v1069, 72
    %v1357 = vpop.permute.xlu0 %1356
    %1358 = vrot.lane.b32.xlu0 %v1071, 72
    %v1359 = vpop.permute.xlu0 %1358
    %1360 = vrot.lane.b32.xlu0 %v1073, 72
    %v1361 = vpop.permute.xlu0 %1360
    %1362 = vrot.lane.b32.xlu0 %v1075, 72
    %v1363 = vpop.permute.xlu0 %1362
    %v1372 = vmul.f32 %v306, %v1349
    %v1373 = vmul.f32 %v307, %v1351
    %v1374 = vmul.f32 %v308, %v1353
    %v1375 = vmul.f32 %v309, %v1355
    %v1376 = vmul.f32 %v310, %v1357
    %v1377 = vmul.f32 %v311, %v1359
    %v1378 = vmul.f32 %v312, %v1361
    %v1379 = vmul.f32 %v313, %v1363
    %1380 = vrot.lane.b32.xlu0 %v1061, 80
    %v1381 = vpop.permute.xlu0 %1380
    %1382 = vrot.lane.b32.xlu0 %v1063, 80
    %v1383 = vpop.permute.xlu0 %1382
    %1384 = vrot.lane.b32.xlu0 %v1065, 80
    %v1385 = vpop.permute.xlu0 %1384
    %1386 = vrot.lane.b32.xlu0 %v1067, 80
    %v1387 = vpop.permute.xlu0 %1386
    %1388 = vrot.lane.b32.xlu0 %v1069, 80
    %v1389 = vpop.permute.xlu0 %1388
    %1390 = vrot.lane.b32.xlu0 %v1071, 80
    %v1391 = vpop.permute.xlu0 %1390
    %1392 = vrot.lane.b32.xlu0 %v1073, 80
    %v1393 = vpop.permute.xlu0 %1392
    %1394 = vrot.lane.b32.xlu0 %v1075, 80
    %v1395 = vpop.permute.xlu0 %1394
    %v1404 = vmul.f32 %v306, %v1381
    %v1405 = vmul.f32 %v307, %v1383
    %v1406 = vmul.f32 %v308, %v1385
    %v1407 = vmul.f32 %v309, %v1387
    %v1408 = vmul.f32 %v310, %v1389
    %v1409 = vmul.f32 %v311, %v1391
    %v1410 = vmul.f32 %v312, %v1393
    %v1411 = vmul.f32 %v313, %v1395
    %1412 = vrot.lane.b32.xlu0 %v1061, 88
    %v1413 = vpop.permute.xlu0 %1412
    %1414 = vrot.lane.b32.xlu0 %v1063, 88
    %v1415 = vpop.permute.xlu0 %1414
    %1416 = vrot.lane.b32.xlu0 %v1065, 88
    %v1417 = vpop.permute.xlu0 %1416
    %1418 = vrot.lane.b32.xlu0 %v1067, 88
    %v1419 = vpop.permute.xlu0 %1418
    %1420 = vrot.lane.b32.xlu0 %v1069, 88
    %v1421 = vpop.permute.xlu0 %1420
    %1422 = vrot.lane.b32.xlu0 %v1071, 88
    %v1423 = vpop.permute.xlu0 %1422
    %1424 = vrot.lane.b32.xlu0 %v1073, 88
    %v1425 = vpop.permute.xlu0 %1424
    %1426 = vrot.lane.b32.xlu0 %v1075, 88
    %v1427 = vpop.permute.xlu0 %1426
    %v1436 = vmul.f32 %v306, %v1413
    %v1437 = vmul.f32 %v307, %v1415
    %v1438 = vmul.f32 %v308, %v1417
    %v1439 = vmul.f32 %v309, %v1419
    %v1440 = vmul.f32 %v310, %v1421
    %v1441 = vmul.f32 %v311, %v1423
    %v1442 = vmul.f32 %v312, %v1425
    %v1443 = vmul.f32 %v313, %v1427
    %1444 = vrot.lane.b32.xlu0 %v1061, 96
    %v1445 = vpop.permute.xlu0 %1444
    %1446 = vrot.lane.b32.xlu0 %v1063, 96
    %v1447 = vpop.permute.xlu0 %1446
    %1448 = vrot.lane.b32.xlu0 %v1065, 96
    %v1449 = vpop.permute.xlu0 %1448
    %1450 = vrot.lane.b32.xlu0 %v1067, 96
    %v1451 = vpop.permute.xlu0 %1450
    %1452 = vrot.lane.b32.xlu0 %v1069, 96
    %v1453 = vpop.permute.xlu0 %1452
    %1454 = vrot.lane.b32.xlu0 %v1071, 96
    %v1455 = vpop.permute.xlu0 %1454
    %1456 = vrot.lane.b32.xlu0 %v1073, 96
    %v1457 = vpop.permute.xlu0 %1456
    %1458 = vrot.lane.b32.xlu0 %v1075, 96
    %v1459 = vpop.permute.xlu0 %1458
    %v1468 = vmul.f32 %v306, %v1445
    %v1469 = vmul.f32 %v307, %v1447
    %v1470 = vmul.f32 %v308, %v1449
    %v1471 = vmul.f32 %v309, %v1451
    %v1472 = vmul.f32 %v310, %v1453
    %v1473 = vmul.f32 %v311, %v1455
    %v1474 = vmul.f32 %v312, %v1457
    %v1475 = vmul.f32 %v313, %v1459
    %1476 = vrot.lane.b32.xlu0 %v1061, 104
    %v1477 = vpop.permute.xlu0 %1476
    %1478 = vrot.lane.b32.xlu0 %v1063, 104
    %v1479 = vpop.permute.xlu0 %1478
    %1480 = vrot.lane.b32.xlu0 %v1065, 104
    %v1481 = vpop.permute.xlu0 %1480
    %1482 = vrot.lane.b32.xlu0 %v1067, 104
    %v1483 = vpop.permute.xlu0 %1482
    %1484 = vrot.lane.b32.xlu0 %v1069, 104
    %v1485 = vpop.permute.xlu0 %1484
    %1486 = vrot.lane.b32.xlu0 %v1071, 104
    %v1487 = vpop.permute.xlu0 %1486
    %1488 = vrot.lane.b32.xlu0 %v1073, 104
    %v1489 = vpop.permute.xlu0 %1488
    %1490 = vrot.lane.b32.xlu0 %v1075, 104
    %v1491 = vpop.permute.xlu0 %1490
    %v1500 = vmul.f32 %v306, %v1477
    %v1501 = vmul.f32 %v307, %v1479
    %v1502 = vmul.f32 %v308, %v1481
    %v1503 = vmul.f32 %v309, %v1483
    %v1504 = vmul.f32 %v310, %v1485
    %v1505 = vmul.f32 %v311, %v1487
    %v1506 = vmul.f32 %v312, %v1489
    %v1507 = vmul.f32 %v313, %v1491
    %1508 = vrot.lane.b32.xlu0 %v1061, 112
    %v1509 = vpop.permute.xlu0 %1508
    %1510 = vrot.lane.b32.xlu0 %v1063, 112
    %v1511 = vpop.permute.xlu0 %1510
    %1512 = vrot.lane.b32.xlu0 %v1065, 112
    %v1513 = vpop.permute.xlu0 %1512
    %1514 = vrot.lane.b32.xlu0 %v1067, 112
    %v1515 = vpop.permute.xlu0 %1514
    %1516 = vrot.lane.b32.xlu0 %v1069, 112
    %v1517 = vpop.permute.xlu0 %1516
    %1518 = vrot.lane.b32.xlu0 %v1071, 112
    %v1519 = vpop.permute.xlu0 %1518
    %1520 = vrot.lane.b32.xlu0 %v1073, 112
    %v1521 = vpop.permute.xlu0 %1520
    %1522 = vrot.lane.b32.xlu0 %v1075, 112
    %v1523 = vpop.permute.xlu0 %1522
    %v1532 = vmul.f32 %v306, %v1509
    %v1533 = vmul.f32 %v307, %v1511
    %v1534 = vmul.f32 %v308, %v1513
    %v1535 = vmul.f32 %v309, %v1515
    %v1536 = vmul.f32 %v310, %v1517
    %v1537 = vmul.f32 %v311, %v1519
    %v1538 = vmul.f32 %v312, %v1521
    %v1539 = vmul.f32 %v313, %v1523
    %1540 = vrot.lane.b32.xlu0 %v1061, 120
    %v1541 = vpop.permute.xlu0 %1540
    %1542 = vrot.lane.b32.xlu0 %v1063, 120
    %v1543 = vpop.permute.xlu0 %1542
    %1544 = vrot.lane.b32.xlu0 %v1065, 120
    %v1545 = vpop.permute.xlu0 %1544
    %1546 = vrot.lane.b32.xlu0 %v1067, 120
    %v1547 = vpop.permute.xlu0 %1546
    %1548 = vrot.lane.b32.xlu0 %v1069, 120
    %v1549 = vpop.permute.xlu0 %1548
    %1550 = vrot.lane.b32.xlu0 %v1071, 120
    %v1551 = vpop.permute.xlu0 %1550
    %1552 = vrot.lane.b32.xlu0 %v1073, 120
    %v1553 = vpop.permute.xlu0 %1552
    %1554 = vrot.lane.b32.xlu0 %v1075, 120
    %v1555 = vpop.permute.xlu0 %1554
    %v1564 = vmul.f32 %v306, %v1541
    %v1565 = vmul.f32 %v307, %v1543
    %v1566 = vmul.f32 %v308, %v1545
    %v1567 = vmul.f32 %v309, %v1547
    %v1568 = vmul.f32 %v310, %v1549
    %v1569 = vmul.f32 %v311, %v1551
    %v1570 = vmul.f32 %v312, %v1553
    %v1571 = vmul.f32 %v313, %v1555
    %v1572 = vsel %vm48, %v1076, %v1116
    %v1573 = vsel %vm48, %v1077, %v1117
    %v1574 = vsel %vm48, %v1078, %v1118
    %v1575 = vsel %vm48, %v1079, %v1119
    %v1576 = vsel %vm48, %v1080, %v1120
    %v1577 = vsel %vm48, %v1081, %v1121
    %v1578 = vsel %vm48, %v1082, %v1122
    %v1579 = vsel %vm48, %v1083, %v1123
    %vm1580 = vcmask 130048
    %v1581 = vsel %vm1580, %v1572, %v1148
    %v1582 = vsel %vm1580, %v1573, %v1149
    %v1583 = vsel %vm1580, %v1574, %v1150
    %v1584 = vsel %vm1580, %v1575, %v1151
    %v1585 = vsel %vm1580, %v1576, %v1152
    %v1586 = vsel %vm1580, %v1577, %v1153
    %v1587 = vsel %vm1580, %v1578, %v1154
    %v1588 = vsel %vm1580, %v1579, %v1155
    %vm1589 = vcmask 195584
    %v1590 = vsel %vm1589, %v1581, %v1180
    %v1591 = vsel %vm1589, %v1582, %v1181
    %v1592 = vsel %vm1589, %v1583, %v1182
    %v1593 = vsel %vm1589, %v1584, %v1183
    %v1594 = vsel %vm1589, %v1585, %v1184
    %v1595 = vsel %vm1589, %v1586, %v1185
    %v1596 = vsel %vm1589, %v1587, %v1186
    %v1597 = vsel %vm1589, %v1588, %v1187
    %vm1598 = vcmask 261120
    %v1599 = vsel %vm1598, %v1590, %v1212
    %v1600 = vsel %vm1598, %v1591, %v1213
    %v1601 = vsel %vm1598, %v1592, %v1214
    %v1602 = vsel %vm1598, %v1593, %v1215
    %v1603 = vsel %vm1598, %v1594, %v1216
    %v1604 = vsel %vm1598, %v1595, %v1217
    %v1605 = vsel %vm1598, %v1596, %v1218
    %v1606 = vsel %vm1598, %v1597, %v1219
    %vm1607 = vcmask 326656
    %v1608 = vsel %vm1607, %v1599, %v1244
    %v1609 = vsel %vm1607, %v1600, %v1245
    %v1610 = vsel %vm1607, %v1601, %v1246
    %v1611 = vsel %vm1607, %v1602, %v1247
    %v1612 = vsel %vm1607, %v1603, %v1248
    %v1613 = vsel %vm1607, %v1604, %v1249
    %v1614 = vsel %vm1607, %v1605, %v1250
    %v1615 = vsel %vm1607, %v1606, %v1251
    %vm1616 = vcmask 392192
    %v1617 = vsel %vm1616, %v1608, %v1276
    %v1618 = vsel %vm1616, %v1609, %v1277
    %v1619 = vsel %vm1616, %v1610, %v1278
    %v1620 = vsel %vm1616, %v1611, %v1279
    %v1621 = vsel %vm1616, %v1612, %v1280
    %v1622 = vsel %vm1616, %v1613, %v1281
    %v1623 = vsel %vm1616, %v1614, %v1282
    %v1624 = vsel %vm1616, %v1615, %v1283
    %vm1625 = vcmask 457728
    %v1626 = vsel %vm1625, %v1617, %v1308
    %v1627 = vsel %vm1625, %v1618, %v1309
    %v1628 = vsel %vm1625, %v1619, %v1310
    %v1629 = vsel %vm1625, %v1620, %v1311
    %v1630 = vsel %vm1625, %v1621, %v1312
    %v1631 = vsel %vm1625, %v1622, %v1313
    %v1632 = vsel %vm1625, %v1623, %v1314
    %v1633 = vsel %vm1625, %v1624, %v1315
    %v1634 = vsel %vm811, %v1626, %v1340
    %v1635 = vsel %vm811, %v1627, %v1341
    %v1636 = vsel %vm811, %v1628, %v1342
    %v1637 = vsel %vm811, %v1629, %v1343
    %v1638 = vsel %vm811, %v1630, %v1344
    %v1639 = vsel %vm811, %v1631, %v1345
    %v1640 = vsel %vm811, %v1632, %v1346
    %v1641 = vsel %vm811, %v1633, %v1347
    %vm1642 = vcmask 588800
    %v1643 = vsel %vm1642, %v1634, %v1372
    %v1644 = vsel %vm1642, %v1635, %v1373
    %v1645 = vsel %vm1642, %v1636, %v1374
    %v1646 = vsel %vm1642, %v1637, %v1375
    %v1647 = vsel %vm1642, %v1638, %v1376
    %v1648 = vsel %vm1642, %v1639, %v1377
    %v1649 = vsel %vm1642, %v1640, %v1378
    %v1650 = vsel %vm1642, %v1641, %v1379
    %vm1651 = vcmask 654336
    %v1652 = vsel %vm1651, %v1643, %v1404
    %v1653 = vsel %vm1651, %v1644, %v1405
    %v1654 = vsel %vm1651, %v1645, %v1406
    %v1655 = vsel %vm1651, %v1646, %v1407
    %v1656 = vsel %vm1651, %v1647, %v1408
    %v1657 = vsel %vm1651, %v1648, %v1409
    %v1658 = vsel %vm1651, %v1649, %v1410
    %v1659 = vsel %vm1651, %v1650, %v1411
    %vm1660 = vcmask 719872
    %v1661 = vsel %vm1660, %v1652, %v1436
    %v1662 = vsel %vm1660, %v1653, %v1437
    %v1663 = vsel %vm1660, %v1654, %v1438
    %v1664 = vsel %vm1660, %v1655, %v1439
    %v1665 = vsel %vm1660, %v1656, %v1440
    %v1666 = vsel %vm1660, %v1657, %v1441
    %v1667 = vsel %vm1660, %v1658, %v1442
    %v1668 = vsel %vm1660, %v1659, %v1443
    %vm1669 = vcmask 785408
    %v1670 = vsel %vm1669, %v1661, %v1468
    %v1671 = vsel %vm1669, %v1662, %v1469
    %v1672 = vsel %vm1669, %v1663, %v1470
    %v1673 = vsel %vm1669, %v1664, %v1471
    %v1674 = vsel %vm1669, %v1665, %v1472
    %v1675 = vsel %vm1669, %v1666, %v1473
    %v1676 = vsel %vm1669, %v1667, %v1474
    %v1677 = vsel %vm1669, %v1668, %v1475
    %vm1678 = vcmask 850944
    %v1679 = vsel %vm1678, %v1670, %v1500
    %v1680 = vsel %vm1678, %v1671, %v1501
    %v1681 = vsel %vm1678, %v1672, %v1502
    %v1682 = vsel %vm1678, %v1673, %v1503
    %v1683 = vsel %vm1678, %v1674, %v1504
    %v1684 = vsel %vm1678, %v1675, %v1505
    %v1685 = vsel %vm1678, %v1676, %v1506
    %v1686 = vsel %vm1678, %v1677, %v1507
    %vm1687 = vcmask 916480
    %v1688 = vsel %vm1687, %v1679, %v1532
    %v1689 = vsel %vm1687, %v1680, %v1533
    %v1690 = vsel %vm1687, %v1681, %v1534
    %v1691 = vsel %vm1687, %v1682, %v1535
    %v1692 = vsel %vm1687, %v1683, %v1536
    %v1693 = vsel %vm1687, %v1684, %v1537
    %v1694 = vsel %vm1687, %v1685, %v1538
    %v1695 = vsel %vm1687, %v1686, %v1539
    %v1696 = vsel %vm53, %v1688, %v1564
    %v1697 = vsel %vm53, %v1689, %v1565
    %v1698 = vsel %vm53, %v1690, %v1566
    %v1699 = vsel %vm53, %v1691, %v1567
    %v1700 = vsel %vm53, %v1692, %v1568
    %v1701 = vsel %vm53, %v1693, %v1569
    %v1702 = vsel %vm53, %v1694, %v1570
    %v1703 = vsel %vm53, %v1695, %v1571
    %v1704 = vld [vmem:[%s5] sm:$0xff]
    %v1705 = vld [vmem:[%s5 + $0x8] sm:$0xff]
    %v1706 = vld [vmem:[%s5 + $0x10] sm:$0xff]
    %v1707 = vld [vmem:[%s5 + $0x18] sm:$0xff]
    %v1709 = vsel %vm811, %v1704, 0
    %v1712 = vsel %vm811, %v1705, 0
    %v1715 = vsel %vm811, %v1706, 0
    %v1718 = vsel %vm811, %v1707, 0
    %1720 = vmatprep.subr.mxu0 0.0
    %1721 = vmatpush1.msra.mxu0 %v1696
    %1722 = vmatprep.subr.mxu0 0.0
    %1723 = vmatpush1.msra.mxu0 %v1697
    %1724 = vmatprep.subr.mxu0 0.0
    %1725 = vmatpush1.msra.mxu0 %v1698
    %1726 = vmatprep.subr.mxu0 0.0
    %1727 = vmatpush1.msra.mxu0 %v1699
    %1728 = vmatprep.subr.mxu0 0.0
    %1729 = vmatpush1.msra.mxu0 %v1700
    %1730 = vmatprep.subr.mxu0 0.0
    %1731 = vmatpush1.msra.mxu0 %v1701
    %1732 = vmatprep.subr.mxu0 0.0
    %1733 = vmatpush1.msra.mxu0 %v1702
    %1734 = vmatprep.subr.mxu0 0.0
    %1735 = vmatpush1.msra.mxu0 %v1703
    %1736 = vmatprep.subr.mxu0 0.0
    %1737 = vmatpush1.msra.mxu0 0.0
    %1738 = vmatprep.subr.mxu0 0.0
    %1739 = vmatpush1.msra.mxu0 0.0
    %1740 = vmatprep.subr.mxu0 0.0
    %1741 = vmatpush1.msra.mxu0 0.0
    %1742 = vmatprep.subr.mxu0 0.0
    %1743 = vmatpush1.msra.mxu0 0.0
    %1744 = vmatprep.subr.mxu0 0.0
    %1745 = vmatpush1.msra.mxu0 0.0
    %1746 = vmatprep.subr.mxu0 0.0
    %1747 = vmatpush1.msra.mxu0 0.0
    %1748 = vmatprep.subr.mxu0 0.0
    %1749 = vmatpush1.msra.mxu0 0.0
    %1750 = vmatprep.subr.mxu0 0.0
    %1751 = vmatpush1.msra.mxu0 0.0
    %1752 = vmatprep.subr.mxu0 0.0
    %1753 = vmatpush1.msra.mxu0 0.0
    %1754 = vmatprep.subr.mxu0 0.0
    %1755 = vmatpush1.msra.mxu0 0.0
    %1756 = vmatprep.subr.mxu0 0.0
    %1757 = vmatpush1.msra.mxu0 0.0
    %1758 = vmatprep.subr.mxu0 0.0
    %1759 = vmatpush1.msra.mxu0 0.0
    %1760 = vmatprep.subr.mxu0 0.0
    %1761 = vmatpush1.msra.mxu0 0.0
    %1762 = vmatprep.subr.mxu0 0.0
    %1763 = vmatpush1.msra.mxu0 0.0
    %1764 = vmatprep.subr.mxu0 0.0
    %1765 = vmatpush1.msra.mxu0 0.0
    %1766 = vmatprep.subr.mxu0 0.0
    %1767 = vmatpush1.msra.mxu0 0.0
    %1768 = vmatprep.subr.mxu0 0.0
    %1769 = vmatpush1.msra.mxu0 0.0
    %1770 = vmatprep.subr.mxu0 0.0
    %1771 = vmatpush1.msra.mxu0 0.0
    %1772 = vmatprep.subr.mxu0 0.0
    %1773 = vmatpush1.msra.mxu0 0.0
    %1774 = vmatprep.subr.mxu0 0.0
    %1775 = vmatpush1.msra.mxu0 0.0
    %1776 = vmatprep.subr.mxu0 0.0
    %1777 = vmatpush1.msra.mxu0 0.0
    %1778 = vmatprep.subr.mxu0 0.0
    %1779 = vmatpush1.msra.mxu0 0.0
    %1780 = vmatprep.subr.mxu0 0.0
    %1781 = vmatpush1.msra.mxu0 0.0
    %1782 = vmatprep.subr.mxu0 0.0
    %1783 = vmatpush1.msra.mxu0 0.0
    %1784 = vmatprep.mubr.f32.mxu0 0.0
    %1785 = vmatmul.mubr.f32.gmra.mrb[0].mxu0 %v1709
    %v1786 = vpop.f32.mrb[0].mxu0
    %v1787 = vadd.f32 0.0, %v1786
    %v1788 = vpop.f32.mrb[0].mxu0
    %1789 = vmatprep.mubr.f32.mxu0 0.0
    %1790 = vmatmul.mubr.f32.gmra.mrb[0].mxu0 %v1712
    %v1791 = vpop.f32.mrb[0].mxu0
    %v1792 = vadd.f32 0.0, %v1791
    %v1793 = vpop.f32.mrb[0].mxu0
    %1794 = vmatprep.mubr.f32.mxu0 0.0
    %1795 = vmatmul.mubr.f32.gmra.mrb[0].mxu0 %v1715
    %v1796 = vpop.f32.mrb[0].mxu0
    %v1797 = vadd.f32 0.0, %v1796
    %v1798 = vpop.f32.mrb[0].mxu0
    %1799 = vmatprep.mubr.f32.mxu0 0.0
    %1800 = vmatmul.mubr.f32.gmra.mrb[0].mxu0 %v1718
    %v1801 = vpop.f32.mrb[0].mxu0
    %v1802 = vadd.f32 0.0, %v1801
    %v1803 = vpop.f32.mrb[0].mxu0
    %1804 = vdwg.mxu0
    %s1805 = scalar_lea.vmem %s5, 32
    %v1806 = vld [vmem:[%s1805] sm:$0xff]
    %v1807 = vld [vmem:[%s1805 + $0x8] sm:$0xff]
    %v1808 = vld [vmem:[%s1805 + $0x10] sm:$0xff]
    %v1809 = vld [vmem:[%s1805 + $0x18] sm:$0xff]
    %v1811 = vsel %vm811, %v1806, 0
    %v1814 = vsel %vm811, %v1807, 0
    %v1817 = vsel %vm811, %v1808, 0
    %v1820 = vsel %vm811, %v1809, 0
    %1822 = vmatprep.subr.mxu0 0.0
    %1823 = vmatpush1.msra.mxu0 %v1696
    %1824 = vmatprep.subr.mxu0 0.0
    %1825 = vmatpush1.msra.mxu0 %v1697
    %1826 = vmatprep.subr.mxu0 0.0
    %1827 = vmatpush1.msra.mxu0 %v1698
    %1828 = vmatprep.subr.mxu0 0.0
    %1829 = vmatpush1.msra.mxu0 %v1699
    %1830 = vmatprep.subr.mxu0 0.0
    %1831 = vmatpush1.msra.mxu0 %v1700
    %1832 = vmatprep.subr.mxu0 0.0
    %1833 = vmatpush1.msra.mxu0 %v1701
    %1834 = vmatprep.subr.mxu0 0.0
    %1835 = vmatpush1.msra.mxu0 %v1702
    %1836 = vmatprep.subr.mxu0 0.0
    %1837 = vmatpush1.msra.mxu0 %v1703
    %1838 = vmatprep.subr.mxu0 0.0
    %1839 = vmatpush1.msra.mxu0 0.0
    %1840 = vmatprep.subr.mxu0 0.0
    %1841 = vmatpush1.msra.mxu0 0.0
    %1842 = vmatprep.subr.mxu0 0.0
    %1843 = vmatpush1.msra.mxu0 0.0
    %1844 = vmatprep.subr.mxu0 0.0
    %1845 = vmatpush1.msra.mxu0 0.0
    %1846 = vmatprep.subr.mxu0 0.0
    %1847 = vmatpush1.msra.mxu0 0.0
    %1848 = vmatprep.subr.mxu0 0.0
    %1849 = vmatpush1.msra.mxu0 0.0
    %1850 = vmatprep.subr.mxu0 0.0
    %1851 = vmatpush1.msra.mxu0 0.0
    %1852 = vmatprep.subr.mxu0 0.0
    %1853 = vmatpush1.msra.mxu0 0.0
    %1854 = vmatprep.subr.mxu0 0.0
    %1855 = vmatpush1.msra.mxu0 0.0
    %1856 = vmatprep.subr.mxu0 0.0
    %1857 = vmatpush1.msra.mxu0 0.0
    %1858 = vmatprep.subr.mxu0 0.0
    %1859 = vmatpush1.msra.mxu0 0.0
    %1860 = vmatprep.subr.mxu0 0.0
    %1861 = vmatpush1.msra.mxu0 0.0
    %1862 = vmatprep.subr.mxu0 0.0
    %1863 = vmatpush1.msra.mxu0 0.0
    %1864 = vmatprep.subr.mxu0 0.0
    %1865 = vmatpush1.msra.mxu0 0.0
    %1866 = vmatprep.subr.mxu0 0.0
    %1867 = vmatpush1.msra.mxu0 0.0
    %1868 = vmatprep.subr.mxu0 0.0
    %1869 = vmatpush1.msra.mxu0 0.0
    %1870 = vmatprep.subr.mxu0 0.0
    %1871 = vmatpush1.msra.mxu0 0.0
    %1872 = vmatprep.subr.mxu0 0.0
    %1873 = vmatpush1.msra.mxu0 0.0
    %1874 = vmatprep.subr.mxu0 0.0
    %1875 = vmatpush1.msra.mxu0 0.0
    %1876 = vmatprep.subr.mxu0 0.0
    %1877 = vmatpush1.msra.mxu0 0.0
    %1878 = vmatprep.subr.mxu0 0.0
    %1879 = vmatpush1.msra.mxu0 0.0
    %1880 = vmatprep.subr.mxu0 0.0
    %1881 = vmatpush1.msra.mxu0 0.0
    %1882 = vmatprep.subr.mxu0 0.0
    %1883 = vmatpush1.msra.mxu0 0.0
    %1884 = vmatprep.subr.mxu0 0.0
    %1885 = vmatpush1.msra.mxu0 0.0
    %1886 = vmatprep.mubr.f32.mxu0 0.0
    %1887 = vmatmul.mubr.f32.gmra.mrb[0].mxu0 %v1811
    %v1888 = vpop.f32.mrb[0].mxu0
    %v1889 = vadd.f32 0.0, %v1888
    %v1890 = vpop.f32.mrb[0].mxu0
    %1891 = vmatprep.mubr.f32.mxu0 0.0
    %1892 = vmatmul.mubr.f32.gmra.mrb[0].mxu0 %v1814
    %v1893 = vpop.f32.mrb[0].mxu0
    %v1894 = vadd.f32 0.0, %v1893
    %v1895 = vpop.f32.mrb[0].mxu0
    %1896 = vmatprep.mubr.f32.mxu0 0.0
    %1897 = vmatmul.mubr.f32.gmra.mrb[0].mxu0 %v1817
    %v1898 = vpop.f32.mrb[0].mxu0
    %v1899 = vadd.f32 0.0, %v1898
    %v1900 = vpop.f32.mrb[0].mxu0
    %1901 = vmatprep.mubr.f32.mxu0 0.0
    %1902 = vmatmul.mubr.f32.gmra.mrb[0].mxu0 %v1820
    %v1903 = vpop.f32.mrb[0].mxu0
    %v1904 = vadd.f32 0.0, %v1903
    %v1905 = vpop.f32.mrb[0].mxu0
    %1906 = vdwg.mxu0
    %s1907 = scalar_lea.vmem %s5, 64
    %v1908 = vld [vmem:[%s1907] sm:$0xff]
    %v1909 = vld [vmem:[%s1907 + $0x8] sm:$0xff]
    %v1910 = vld [vmem:[%s1907 + $0x10] sm:$0xff]
    %v1911 = vld [vmem:[%s1907 + $0x18] sm:$0xff]
    %v1913 = vsel %vm811, %v1908, 0
    %v1916 = vsel %vm811, %v1909, 0
    %v1919 = vsel %vm811, %v1910, 0
    %v1922 = vsel %vm811, %v1911, 0
    %1924 = vmatprep.subr.mxu0 0.0
    %1925 = vmatpush1.msra.mxu0 %v1696
    %1926 = vmatprep.subr.mxu0 0.0
    %1927 = vmatpush1.msra.mxu0 %v1697
    %1928 = vmatprep.subr.mxu0 0.0
    %1929 = vmatpush1.msra.mxu0 %v1698
    %1930 = vmatprep.subr.mxu0 0.0
    %1931 = vmatpush1.msra.mxu0 %v1699
    %1932 = vmatprep.subr.mxu0 0.0
    %1933 = vmatpush1.msra.mxu0 %v1700
    %1934 = vmatprep.subr.mxu0 0.0
    %1935 = vmatpush1.msra.mxu0 %v1701
    %1936 = vmatprep.subr.mxu0 0.0
    %1937 = vmatpush1.msra.mxu0 %v1702
    %1938 = vmatprep.subr.mxu0 0.0
    %1939 = vmatpush1.msra.mxu0 %v1703
    %1940 = vmatprep.subr.mxu0 0.0
    %1941 = vmatpush1.msra.mxu0 0.0
    %1942 = vmatprep.subr.mxu0 0.0
    %1943 = vmatpush1.msra.mxu0 0.0
    %1944 = vmatprep.subr.mxu0 0.0
    %1945 = vmatpush1.msra.mxu0 0.0
    %1946 = vmatprep.subr.mxu0 0.0
    %1947 = vmatpush1.msra.mxu0 0.0
    %1948 = vmatprep.subr.mxu0 0.0
    %1949 = vmatpush1.msra.mxu0 0.0
    %1950 = vmatprep.subr.mxu0 0.0
    %1951 = vmatpush1.msra.mxu0 0.0
    %1952 = vmatprep.subr.mxu0 0.0
    %1953 = vmatpush1.msra.mxu0 0.0
    %1954 = vmatprep.subr.mxu0 0.0
    %1955 = vmatpush1.msra.mxu0 0.0
    %1956 = vmatprep.subr.mxu0 0.0
    %1957 = vmatpush1.msra.mxu0 0.0
    %1958 = vmatprep.subr.mxu0 0.0
    %1959 = vmatpush1.msra.mxu0 0.0
    %1960 = vmatprep.subr.mxu0 0.0
    %1961 = vmatpush1.msra.mxu0 0.0
    %1962 = vmatprep.subr.mxu0 0.0
    %1963 = vmatpush1.msra.mxu0 0.0
    %1964 = vmatprep.subr.mxu0 0.0
    %1965 = vmatpush1.msra.mxu0 0.0
    %1966 = vmatprep.subr.mxu0 0.0
    %1967 = vmatpush1.msra.mxu0 0.0
    %1968 = vmatprep.subr.mxu0 0.0
    %1969 = vmatpush1.msra.mxu0 0.0
    %1970 = vmatprep.subr.mxu0 0.0
    %1971 = vmatpush1.msra.mxu0 0.0
    %1972 = vmatprep.subr.mxu0 0.0
    %1973 = vmatpush1.msra.mxu0 0.0
    %1974 = vmatprep.subr.mxu0 0.0
    %1975 = vmatpush1.msra.mxu0 0.0
    %1976 = vmatprep.subr.mxu0 0.0
    %1977 = vmatpush1.msra.mxu0 0.0
    %1978 = vmatprep.subr.mxu0 0.0
    %1979 = vmatpush1.msra.mxu0 0.0
    %1980 = vmatprep.subr.mxu0 0.0
    %1981 = vmatpush1.msra.mxu0 0.0
    %1982 = vmatprep.subr.mxu0 0.0
    %1983 = vmatpush1.msra.mxu0 0.0
    %1984 = vmatprep.subr.mxu0 0.0
    %1985 = vmatpush1.msra.mxu0 0.0
    %1986 = vmatprep.subr.mxu0 0.0
    %1987 = vmatpush1.msra.mxu0 0.0
    %1988 = vmatprep.mubr.f32.mxu0 0.0
    %1989 = vmatmul.mubr.f32.gmra.mrb[0].mxu0 %v1913
    %v1990 = vpop.f32.mrb[0].mxu0
    %v1991 = vadd.f32 0.0, %v1990
    %v1992 = vpop.f32.mrb[0].mxu0
    %1993 = vmatprep.mubr.f32.mxu0 0.0
    %1994 = vmatmul.mubr.f32.gmra.mrb[0].mxu0 %v1916
    %v1995 = vpop.f32.mrb[0].mxu0
    %v1996 = vadd.f32 0.0, %v1995
    %v1997 = vpop.f32.mrb[0].mxu0
    %1998 = vmatprep.mubr.f32.mxu0 0.0
    %1999 = vmatmul.mubr.f32.gmra.mrb[0].mxu0 %v1919
    %v2000 = vpop.f32.mrb[0].mxu0
    %v2001 = vadd.f32 0.0, %v2000
    %v2002 = vpop.f32.mrb[0].mxu0
    %2003 = vmatprep.mubr.f32.mxu0 0.0
    %2004 = vmatmul.mubr.f32.gmra.mrb[0].mxu0 %v1922
    %v2005 = vpop.f32.mrb[0].mxu0
    %v2006 = vadd.f32 0.0, %v2005
    %v2007 = vpop.f32.mrb[0].mxu0
    %2008 = vdwg.mxu0
    %2013 = vrot.lane.b32.xlu0 %v1787, 8
    %v2014 = vpop.permute.xlu0 %2013
    %2015 = vrot.lane.b32.xlu0 %v1792, 8
    %v2016 = vpop.permute.xlu0 %2015
    %2017 = vrot.lane.b32.xlu0 %v1797, 8
    %v2018 = vpop.permute.xlu0 %2017
    %2019 = vrot.lane.b32.xlu0 %v1802, 8
    %v2020 = vpop.permute.xlu0 %2019
    %v2025 = vsel %vm48, 0.0, %v2014
    %v2026 = vsel %vm48, 0.0, %v2016
    %v2027 = vsel %vm48, 0.0, %v2018
    %v2028 = vsel %vm48, 0.0, %v2020
    %v2029 = vadd.f32 %v2025, %v1889
    %v2030 = vadd.f32 %v2026, %v1894
    %v2031 = vadd.f32 %v2027, %v1899
    %v2032 = vadd.f32 %v2028, %v1904
    %2037 = vrot.lane.b32.xlu0 %v1991, 120
    %v2038 = vpop.permute.xlu0 %2037
    %2039 = vrot.lane.b32.xlu0 %v1996, 120
    %v2040 = vpop.permute.xlu0 %2039
    %2041 = vrot.lane.b32.xlu0 %v2001, 120
    %v2042 = vpop.permute.xlu0 %2041
    %2043 = vrot.lane.b32.xlu0 %v2006, 120
    %v2044 = vpop.permute.xlu0 %2043
    %v2049 = vsel %vm53, %v2038, 0.0
    %v2050 = vsel %vm53, %v2040, 0.0
    %v2051 = vsel %vm53, %v2042, 0.0
    %v2052 = vsel %vm53, %v2044, 0.0
    %v2053 = vadd.f32 %v2029, %v2049
    %v2054 = vadd.f32 %v2030, %v2050
    %v2055 = vadd.f32 %v2031, %v2051
    %v2056 = vadd.f32 %v2032, %v2052
    %v2057 = vld [vmem:[%s6] sm:$0xff]
    %v2058 = vld [vmem:[%s6 + $0x8] sm:$0xff]
    %v2059 = vld [vmem:[%s6 + $0x10] sm:$0xff]
    %v2060 = vld [vmem:[%s6 + $0x18] sm:$0xff]
    %2062 = vset.pattern.permute.xlu0 0
    %2063 = vperm.xlu0 %2062, %v2057
    %v2064 = vpop.permute.xlu0 %2063
    %2067 = vset.pattern.permute.xlu0 0
    %2068 = vperm.xlu0 %2067, %v2058
    %v2069 = vpop.permute.xlu0 %2068
    %2072 = vset.pattern.permute.xlu0 0
    %2073 = vperm.xlu0 %2072, %v2059
    %v2074 = vpop.permute.xlu0 %2073
    %2077 = vset.pattern.permute.xlu0 0
    %2078 = vperm.xlu0 %2077, %v2060
    %v2079 = vpop.permute.xlu0 %2078
    %v2081 = vadd.f32 %v2053, %v2064
    %v2082 = vadd.f32 %v2054, %v2069
    %v2083 = vadd.f32 %v2055, %v2074
    %v2084 = vadd.f32 %v2056, %v2079
    %v2085 = vmax.f32 %v2081, 0.0
    %v2086 = vmax.f32 %v2082, 0.0
    %v2087 = vmax.f32 %v2083, 0.0
    %v2088 = vmax.f32 %v2084, 0.0
    %2093 = vrot.lane.b32.xlu0 %v2085, 120
    %v2094 = vpop.permute.xlu0 %2093
    %2095 = vrot.lane.b32.xlu0 %v2086, 120
    %v2096 = vpop.permute.xlu0 %2095
    %2097 = vrot.lane.b32.xlu0 %v2087, 120
    %v2098 = vpop.permute.xlu0 %2097
    %2099 = vrot.lane.b32.xlu0 %v2088, 120
    %v2100 = vpop.permute.xlu0 %2099
    %v2105 = vadd.f32 %v2085, %v2094
    %v2106 = vadd.f32 %v2086, %v2096
    %v2107 = vadd.f32 %v2087, %v2098
    %v2108 = vadd.f32 %v2088, %v2100
    %2109 = vrot.lane.b32.xlu0 %v2085, 112
    %v2110 = vpop.permute.xlu0 %2109
    %2111 = vrot.lane.b32.xlu0 %v2086, 112
    %v2112 = vpop.permute.xlu0 %2111
    %2113 = vrot.lane.b32.xlu0 %v2087, 112
    %v2114 = vpop.permute.xlu0 %2113
    %2115 = vrot.lane.b32.xlu0 %v2088, 112
    %v2116 = vpop.permute.xlu0 %2115
    %v2121 = vadd.f32 %v2105, %v2110
    %v2122 = vadd.f32 %v2106, %v2112
    %v2123 = vadd.f32 %v2107, %v2114
    %v2124 = vadd.f32 %v2108, %v2116
    %2125 = vrot.lane.b32.xlu0 %v2085, 104
    %v2126 = vpop.permute.xlu0 %2125
    %2127 = vrot.lane.b32.xlu0 %v2086, 104
    %v2128 = vpop.permute.xlu0 %2127
    %2129 = vrot.lane.b32.xlu0 %v2087, 104
    %v2130 = vpop.permute.xlu0 %2129
    %2131 = vrot.lane.b32.xlu0 %v2088, 104
    %v2132 = vpop.permute.xlu0 %2131
    %v2137 = vadd.f32 %v2121, %v2126
    %v2138 = vadd.f32 %v2122, %v2128
    %v2139 = vadd.f32 %v2123, %v2130
    %v2140 = vadd.f32 %v2124, %v2132
    %2141 = vrot.lane.b32.xlu0 %v2085, 96
    %v2142 = vpop.permute.xlu0 %2141
    %2143 = vrot.lane.b32.xlu0 %v2086, 96
    %v2144 = vpop.permute.xlu0 %2143
    %2145 = vrot.lane.b32.xlu0 %v2087, 96
    %v2146 = vpop.permute.xlu0 %2145
    %2147 = vrot.lane.b32.xlu0 %v2088, 96
    %v2148 = vpop.permute.xlu0 %2147
    %v2153 = vadd.f32 %v2137, %v2142
    %v2154 = vadd.f32 %v2138, %v2144
    %v2155 = vadd.f32 %v2139, %v2146
    %v2156 = vadd.f32 %v2140, %v2148
    %2157 = vrot.lane.b32.xlu0 %v2085, 88
    %v2158 = vpop.permute.xlu0 %2157
    %2159 = vrot.lane.b32.xlu0 %v2086, 88
    %v2160 = vpop.permute.xlu0 %2159
    %2161 = vrot.lane.b32.xlu0 %v2087, 88
    %v2162 = vpop.permute.xlu0 %2161
    %2163 = vrot.lane.b32.xlu0 %v2088, 88
    %v2164 = vpop.permute.xlu0 %2163
    %v2169 = vadd.f32 %v2153, %v2158
    %v2170 = vadd.f32 %v2154, %v2160
    %v2171 = vadd.f32 %v2155, %v2162
    %v2172 = vadd.f32 %v2156, %v2164
    %2173 = vrot.lane.b32.xlu0 %v2085, 80
    %v2174 = vpop.permute.xlu0 %2173
    %2175 = vrot.lane.b32.xlu0 %v2086, 80
    %v2176 = vpop.permute.xlu0 %2175
    %2177 = vrot.lane.b32.xlu0 %v2087, 80
    %v2178 = vpop.permute.xlu0 %2177
    %2179 = vrot.lane.b32.xlu0 %v2088, 80
    %v2180 = vpop.permute.xlu0 %2179
    %v2185 = vadd.f32 %v2169, %v2174
    %v2186 = vadd.f32 %v2170, %v2176
    %v2187 = vadd.f32 %v2171, %v2178
    %v2188 = vadd.f32 %v2172, %v2180
    %2189 = vrot.lane.b32.xlu0 %v2085, 72
    %v2190 = vpop.permute.xlu0 %2189
    %2191 = vrot.lane.b32.xlu0 %v2086, 72
    %v2192 = vpop.permute.xlu0 %2191
    %2193 = vrot.lane.b32.xlu0 %v2087, 72
    %v2194 = vpop.permute.xlu0 %2193
    %2195 = vrot.lane.b32.xlu0 %v2088, 72
    %v2196 = vpop.permute.xlu0 %2195
    %v2201 = vadd.f32 %v2185, %v2190
    %v2202 = vadd.f32 %v2186, %v2192
    %v2203 = vadd.f32 %v2187, %v2194
    %v2204 = vadd.f32 %v2188, %v2196
    %2205 = vrot.lane.b32.xlu0 %v2085, 64
    %v2206 = vpop.permute.xlu0 %2205
    %2207 = vrot.lane.b32.xlu0 %v2086, 64
    %v2208 = vpop.permute.xlu0 %2207
    %2209 = vrot.lane.b32.xlu0 %v2087, 64
    %v2210 = vpop.permute.xlu0 %2209
    %2211 = vrot.lane.b32.xlu0 %v2088, 64
    %v2212 = vpop.permute.xlu0 %2211
    %v2217 = vadd.f32 %v2201, %v2206
    %v2218 = vadd.f32 %v2202, %v2208
    %v2219 = vadd.f32 %v2203, %v2210
    %v2220 = vadd.f32 %v2204, %v2212
    %2221 = vrot.lane.b32.xlu0 %v2085, 56
    %v2222 = vpop.permute.xlu0 %2221
    %2223 = vrot.lane.b32.xlu0 %v2086, 56
    %v2224 = vpop.permute.xlu0 %2223
    %2225 = vrot.lane.b32.xlu0 %v2087, 56
    %v2226 = vpop.permute.xlu0 %2225
    %2227 = vrot.lane.b32.xlu0 %v2088, 56
    %v2228 = vpop.permute.xlu0 %2227
    %v2233 = vadd.f32 %v2217, %v2222
    %v2234 = vadd.f32 %v2218, %v2224
    %v2235 = vadd.f32 %v2219, %v2226
    %v2236 = vadd.f32 %v2220, %v2228
    %2237 = vrot.lane.b32.xlu0 %v2085, 48
    %v2238 = vpop.permute.xlu0 %2237
    %2239 = vrot.lane.b32.xlu0 %v2086, 48
    %v2240 = vpop.permute.xlu0 %2239
    %2241 = vrot.lane.b32.xlu0 %v2087, 48
    %v2242 = vpop.permute.xlu0 %2241
    %2243 = vrot.lane.b32.xlu0 %v2088, 48
    %v2244 = vpop.permute.xlu0 %2243
    %v2249 = vadd.f32 %v2233, %v2238
    %v2250 = vadd.f32 %v2234, %v2240
    %v2251 = vadd.f32 %v2235, %v2242
    %v2252 = vadd.f32 %v2236, %v2244
    %2253 = vrot.lane.b32.xlu0 %v2085, 40
    %v2254 = vpop.permute.xlu0 %2253
    %2255 = vrot.lane.b32.xlu0 %v2086, 40
    %v2256 = vpop.permute.xlu0 %2255
    %2257 = vrot.lane.b32.xlu0 %v2087, 40
    %v2258 = vpop.permute.xlu0 %2257
    %2259 = vrot.lane.b32.xlu0 %v2088, 40
    %v2260 = vpop.permute.xlu0 %2259
    %v2265 = vadd.f32 %v2249, %v2254
    %v2266 = vadd.f32 %v2250, %v2256
    %v2267 = vadd.f32 %v2251, %v2258
    %v2268 = vadd.f32 %v2252, %v2260
    %2269 = vrot.lane.b32.xlu0 %v2085, 32
    %v2270 = vpop.permute.xlu0 %2269
    %2271 = vrot.lane.b32.xlu0 %v2086, 32
    %v2272 = vpop.permute.xlu0 %2271
    %2273 = vrot.lane.b32.xlu0 %v2087, 32
    %v2274 = vpop.permute.xlu0 %2273
    %2275 = vrot.lane.b32.xlu0 %v2088, 32
    %v2276 = vpop.permute.xlu0 %2275
    %v2281 = vadd.f32 %v2265, %v2270
    %v2282 = vadd.f32 %v2266, %v2272
    %v2283 = vadd.f32 %v2267, %v2274
    %v2284 = vadd.f32 %v2268, %v2276
    %2285 = vrot.lane.b32.xlu0 %v2085, 24
    %v2286 = vpop.permute.xlu0 %2285
    %2287 = vrot.lane.b32.xlu0 %v2086, 24
    %v2288 = vpop.permute.xlu0 %2287
    %2289 = vrot.lane.b32.xlu0 %v2087, 24
    %v2290 = vpop.permute.xlu0 %2289
    %2291 = vrot.lane.b32.xlu0 %v2088, 24
    %v2292 = vpop.permute.xlu0 %2291
    %v2297 = vadd.f32 %v2281, %v2286
    %v2298 = vadd.f32 %v2282, %v2288
    %v2299 = vadd.f32 %v2283, %v2290
    %v2300 = vadd.f32 %v2284, %v2292
    %2301 = vrot.lane.b32.xlu0 %v2085, 16
    %v2302 = vpop.permute.xlu0 %2301
    %2303 = vrot.lane.b32.xlu0 %v2086, 16
    %v2304 = vpop.permute.xlu0 %2303
    %2305 = vrot.lane.b32.xlu0 %v2087, 16
    %v2306 = vpop.permute.xlu0 %2305
    %2307 = vrot.lane.b32.xlu0 %v2088, 16
    %v2308 = vpop.permute.xlu0 %2307
    %v2313 = vadd.f32 %v2297, %v2302
    %v2314 = vadd.f32 %v2298, %v2304
    %v2315 = vadd.f32 %v2299, %v2306
    %v2316 = vadd.f32 %v2300, %v2308
    %2317 = vrot.lane.b32.xlu0 %v2085, 8
    %v2318 = vpop.permute.xlu0 %2317
    %2319 = vrot.lane.b32.xlu0 %v2086, 8
    %v2320 = vpop.permute.xlu0 %2319
    %2321 = vrot.lane.b32.xlu0 %v2087, 8
    %v2322 = vpop.permute.xlu0 %2321
    %2323 = vrot.lane.b32.xlu0 %v2088, 8
    %v2324 = vpop.permute.xlu0 %2323
    %v2329 = vadd.f32 %v2313, %v2318
    %v2330 = vadd.f32 %v2314, %v2320
    %v2331 = vadd.f32 %v2315, %v2322
    %v2332 = vadd.f32 %v2316, %v2324
    %v2333 = vmul.f32 %v2329, 0.0625
    %v2334 = vmul.f32 %v2330, 0.0625
    %v2335 = vmul.f32 %v2331, 0.0625
    %v2336 = vmul.f32 %v2332, 0.0625
    %v2337 = vld [vmem:[%s7] sm:$0x3]
    %v2339 = vsel %vm1598, %v2337, 0
    %2341 = vmatprep.subr.mxu0 0.0
    %2342 = vmatpush1.msra.mxu0 %v2333
    %2343 = vmatprep.subr.mxu0 0.0
    %2344 = vmatpush1.msra.mxu0 %v2334
    %2345 = vmatprep.subr.mxu0 0.0
    %2346 = vmatpush1.msra.mxu0 %v2335
    %2347 = vmatprep.subr.mxu0 0.0
    %2348 = vmatpush1.msra.mxu0 %v2336
    %2349 = vmatprep.subr.mxu0 0.0
    %2350 = vmatpush1.msra.mxu0 0.0
    %2351 = vmatprep.subr.mxu0 0.0
    %2352 = vmatpush1.msra.mxu0 0.0
    %2353 = vmatprep.subr.mxu0 0.0
    %2354 = vmatpush1.msra.mxu0 0.0
    %2355 = vmatprep.subr.mxu0 0.0
    %2356 = vmatpush1.msra.mxu0 0.0
    %2357 = vmatprep.subr.mxu0 0.0
    %2358 = vmatpush1.msra.mxu0 0.0
    %2359 = vmatprep.subr.mxu0 0.0
    %2360 = vmatpush1.msra.mxu0 0.0
    %2361 = vmatprep.subr.mxu0 0.0
    %2362 = vmatpush1.msra.mxu0 0.0
    %2363 = vmatprep.subr.mxu0 0.0
    %2364 = vmatpush1.msra.mxu0 0.0
    %2365 = vmatprep.subr.mxu0 0.0
    %2366 = vmatpush1.msra.mxu0 0.0
    %2367 = vmatprep.subr.mxu0 0.0
    %2368 = vmatpush1.msra.mxu0 0.0
    %2369 = vmatprep.subr.mxu0 0.0
    %2370 = vmatpush1.msra.mxu0 0.0
    %2371 = vmatprep.subr.mxu0 0.0
    %2372 = vmatpush1.msra.mxu0 0.0
    %2373 = vmatprep.subr.mxu0 0.0
    %2374 = vmatpush1.msra.mxu0 0.0
    %2375 = vmatprep.subr.mxu0 0.0
    %2376 = vmatpush1.msra.mxu0 0.0
    %2377 = vmatprep.subr.mxu0 0.0
    %2378 = vmatpush1.msra.mxu0 0.0
    %2379 = vmatprep.subr.mxu0 0.0
    %2380 = vmatpush1.msra.mxu0 0.0
    %2381 = vmatprep.subr.mxu0 0.0
    %2382 = vmatpush1.msra.mxu0 0.0
    %2383 = vmatprep.subr.mxu0 0.0
    %2384 = vmatpush1.msra.mxu0 0.0
    %2385 = vmatprep.subr.mxu0 0.0
    %2386 = vmatpush1.msra.mxu0 0.0
    %2387 = vmatprep.subr.mxu0 0.0
    %2388 = vmatpush1.msra.mxu0 0.0
    %2389 = vmatprep.subr.mxu0 0.0
    %2390 = vmatpush1.msra.mxu0 0.0
    %2391 = vmatprep.subr.mxu0 0.0
    %2392 = vmatpush1.msra.mxu0 0.0
    %2393 = vmatprep.subr.mxu0 0.0
    %2394 = vmatpush1.msra.mxu0 0.0
    %2395 = vmatprep.subr.mxu0 0.0
    %2396 = vmatpush1.msra.mxu0 0.0
    %2397 = vmatprep.subr.mxu0 0.0
    %2398 = vmatpush1.msra.mxu0 0.0
    %2399 = vmatprep.subr.mxu0 0.0
    %2400 = vmatpush1.msra.mxu0 0.0
    %2401 = vmatprep.subr.mxu0 0.0
    %2402 = vmatpush1.msra.mxu0 0.0
    %2403 = vmatprep.subr.mxu0 0.0
    %2404 = vmatpush1.msra.mxu0 0.0
    %2405 = vmatprep.mubr.f32.mxu0 0.0
    %2406 = vmatmul.mubr.f32.gmra.mrb[0].mxu0 %v2339
    %v2407 = vpop.f32.mrb[0].mxu0
    %v2408 = vadd.f32 0.0, %v2407
    %v2409 = vpop.f32.mrb[0].mxu0
    %2410 = vdwg.mxu0
    %v2411 = vmax.f32 %v2408, 0.0
    %v2412 = vld [vmem:[%s8] sm:$0xff]
    %v2413 = vld [vmem:[%s8 + $0x8] sm:$0xff]
    %v2414 = vld [vmem:[%s8 + $0x10] sm:$0xff]
    %v2415 = vld [vmem:[%s8 + $0x18] sm:$0xff]
    %vm2416 = vcmask 15360
    %v2418 = vsel %vm2416, %v2412, 0
    %v2421 = vsel %vm2416, %v2413, 0
    %v2424 = vsel %vm2416, %v2414, 0
    %v2427 = vsel %vm2416, %v2415, 0
    %vm2429 = vcmask 1041408
    %v2431 = vsel %vm2429, %v2411, 0
    %2433 = vmatprep.subr.mxu0 0.0
    %2434 = vmatpush1.msra.mxu0 %v2431
    %2435 = vmatprep.subr.mxu0 0.0
    %2436 = vmatpush1.msra.mxu0 0.0
    %2437 = vmatprep.subr.mxu0 0.0
    %2438 = vmatpush1.msra.mxu0 0.0
    %2439 = vmatprep.subr.mxu0 0.0
    %2440 = vmatpush1.msra.mxu0 0.0
    %2441 = vmatprep.subr.mxu0 0.0
    %2442 = vmatpush1.msra.mxu0 0.0
    %2443 = vmatprep.subr.mxu0 0.0
    %2444 = vmatpush1.msra.mxu0 0.0
    %2445 = vmatprep.subr.mxu0 0.0
    %2446 = vmatpush1.msra.mxu0 0.0
    %2447 = vmatprep.subr.mxu0 0.0
    %2448 = vmatpush1.msra.mxu0 0.0
    %2449 = vmatprep.subr.mxu0 0.0
    %2450 = vmatpush1.msra.mxu0 0.0
    %2451 = vmatprep.subr.mxu0 0.0
    %2452 = vmatpush1.msra.mxu0 0.0
    %2453 = vmatprep.subr.mxu0 0.0
    %2454 = vmatpush1.msra.mxu0 0.0
    %2455 = vmatprep.subr.mxu0 0.0
    %2456 = vmatpush1.msra.mxu0 0.0
    %2457 = vmatprep.subr.mxu0 0.0
    %2458 = vmatpush1.msra.mxu0 0.0
    %2459 = vmatprep.subr.mxu0 0.0
    %2460 = vmatpush1.msra.mxu0 0.0
    %2461 = vmatprep.subr.mxu0 0.0
    %2462 = vmatpush1.msra.mxu0 0.0
    %2463 = vmatprep.subr.mxu0 0.0
    %2464 = vmatpush1.msra.mxu0 0.0
    %2465 = vmatprep.subr.mxu0 0.0
    %2466 = vmatpush1.msra.mxu0 0.0
    %2467 = vmatprep.subr.mxu0 0.0
    %2468 = vmatpush1.msra.mxu0 0.0
    %2469 = vmatprep.subr.mxu0 0.0
    %2470 = vmatpush1.msra.mxu0 0.0
    %2471 = vmatprep.subr.mxu0 0.0
    %2472 = vmatpush1.msra.mxu0 0.0
    %2473 = vmatprep.subr.mxu0 0.0
    %2474 = vmatpush1.msra.mxu0 0.0
    %2475 = vmatprep.subr.mxu0 0.0
    %2476 = vmatpush1.msra.mxu0 0.0
    %2477 = vmatprep.subr.mxu0 0.0
    %2478 = vmatpush1.msra.mxu0 0.0
    %2479 = vmatprep.subr.mxu0 0.0
    %2480 = vmatpush1.msra.mxu0 0.0
    %2481 = vmatprep.subr.mxu0 0.0
    %2482 = vmatpush1.msra.mxu0 0.0
    %2483 = vmatprep.subr.mxu0 0.0
    %2484 = vmatpush1.msra.mxu0 0.0
    %2485 = vmatprep.subr.mxu0 0.0
    %2486 = vmatpush1.msra.mxu0 0.0
    %2487 = vmatprep.subr.mxu0 0.0
    %2488 = vmatpush1.msra.mxu0 0.0
    %2489 = vmatprep.subr.mxu0 0.0
    %2490 = vmatpush1.msra.mxu0 0.0
    %2491 = vmatprep.subr.mxu0 0.0
    %2492 = vmatpush1.msra.mxu0 0.0
    %2493 = vmatprep.subr.mxu0 0.0
    %2494 = vmatpush1.msra.mxu0 0.0
    %2495 = vmatprep.subr.mxu0 0.0
    %2496 = vmatpush1.msra.mxu0 0.0
    %2497 = vmatprep.mubr.f32.mxu0 0.0
    %2498 = vmatmul.mubr.f32.gmra.mrb[0].mxu0 %v2418
    %v2499 = vpop.f32.mrb[0].mxu0
    %v2500 = vadd.f32 0.0, %v2499
    %v2501 = vpop.f32.mrb[0].mxu0
    %2502 = vmatprep.mubr.f32.mxu0 0.0
    %2503 = vmatmul.mubr.f32.gmra.mrb[0].mxu0 %v2421
    %v2504 = vpop.f32.mrb[0].mxu0
    %v2505 = vadd.f32 0.0, %v2504
    %v2506 = vpop.f32.mrb[0].mxu0
    %2507 = vmatprep.mubr.f32.mxu0 0.0
    %2508 = vmatmul.mubr.f32.gmra.mrb[0].mxu0 %v2424
    %v2509 = vpop.f32.mrb[0].mxu0
    %v2510 = vadd.f32 0.0, %v2509
    %v2511 = vpop.f32.mrb[0].mxu0
    %2512 = vmatprep.mubr.f32.mxu0 0.0
    %2513 = vmatmul.mubr.f32.gmra.mrb[0].mxu0 %v2427
    %v2514 = vpop.f32.mrb[0].mxu0
    %v2515 = vadd.f32 0.0, %v2514
    %v2516 = vpop.f32.mrb[0].mxu0
    %2517 = vdwg.mxu0
    %v2518 = vxor.u32 %v2500, 2147483648
    %v2519 = vxor.u32 %v2505, 2147483648
    %v2520 = vxor.u32 %v2510, 2147483648
    %v2521 = vxor.u32 %v2515, 2147483648
    %v2522 = vmul.f32 %v2518, 1.442695
    %v2523 = vpow.pop %v2522
    %v2524 = vmul.f32 %v2519, 1.442695
    %v2525 = vpow.pop %v2524
    %v2526 = vmul.f32 %v2520, 1.442695
    %v2527 = vpow.pop %v2526
    %v2528 = vmul.f32 %v2521, 1.442695
    %v2529 = vpow.pop %v2528
    %v2530 = vadd.f32 %v2523, 1.0
    %v2531 = vadd.f32 %v2525, 1.0
    %v2532 = vadd.f32 %v2527, 1.0
    %v2533 = vadd.f32 %v2529, 1.0
    %v2534 = vrcp.pop %v2530
    %v2535 = vmul.f32 1.0, %v2534
    %v2536 = vrcp.pop %v2531
    %v2537 = vmul.f32 1.0, %v2536
    %v2538 = vrcp.pop %v2532
    %v2539 = vmul.f32 1.0, %v2538
    %v2540 = vrcp.pop %v2533
    %v2541 = vmul.f32 1.0, %v2540
    %v2542 = vmul.f32 %v2085, %v2535
    %v2543 = vmul.f32 %v2086, %v2537
    %v2544 = vmul.f32 %v2087, %v2539
    %v2545 = vmul.f32 %v2088, %v2541
    %2550 = vrot.lane.b32.xlu0 %v2535, 8
    %v2551 = vpop.permute.xlu0 %2550
    %2552 = vrot.lane.b32.xlu0 %v2537, 8
    %v2553 = vpop.permute.xlu0 %2552
    %2554 = vrot.lane.b32.xlu0 %v2539, 8
    %v2555 = vpop.permute.xlu0 %2554
    %2556 = vrot.lane.b32.xlu0 %v2541, 8
    %v2557 = vpop.permute.xlu0 %2556
    %v2562 = vmul.f32 %v2085, %v2551
    %v2563 = vmul.f32 %v2086, %v2553
    %v2564 = vmul.f32 %v2087, %v2555
    %v2565 = vmul.f32 %v2088, %v2557
    %2566 = vrot.lane.b32.xlu0 %v2535, 16
    %v2567 = vpop.permute.xlu0 %2566
    %2568 = vrot.lane.b32.xlu0 %v2537, 16
    %v2569 = vpop.permute.xlu0 %2568
    %2570 = vrot.lane.b32.xlu0 %v2539, 16
    %v2571 = vpop.permute.xlu0 %2570
    %2572 = vrot.lane.b32.xlu0 %v2541, 16
    %v2573 = vpop.permute.xlu0 %2572
    %v2578 = vmul.f32 %v2085, %v2567
    %v2579 = vmul.f32 %v2086, %v2569
    %v2580 = vmul.f32 %v2087, %v2571
    %v2581 = vmul.f32 %v2088, %v2573
    %2582 = vrot.lane.b32.xlu0 %v2535, 24
    %v2583 = vpop.permute.xlu0 %2582
    %2584 = vrot.lane.b32.xlu0 %v2537, 24
    %v2585 = vpop.permute.xlu0 %2584
    %2586 = vrot.lane.b32.xlu0 %v2539, 24
    %v2587 = vpop.permute.xlu0 %2586
    %2588 = vrot.lane.b32.xlu0 %v2541, 24
    %v2589 = vpop.permute.xlu0 %2588
    %v2594 = vmul.f32 %v2085, %v2583
    %v2595 = vmul.f32 %v2086, %v2585
    %v2596 = vmul.f32 %v2087, %v2587
    %v2597 = vmul.f32 %v2088, %v2589
    %2598 = vrot.lane.b32.xlu0 %v2535, 32
    %v2599 = vpop.permute.xlu0 %2598
    %2600 = vrot.lane.b32.xlu0 %v2537, 32
    %v2601 = vpop.permute.xlu0 %2600
    %2602 = vrot.lane.b32.xlu0 %v2539, 32
    %v2603 = vpop.permute.xlu0 %2602
    %2604 = vrot.lane.b32.xlu0 %v2541, 32
    %v2605 = vpop.permute.xlu0 %2604
    %v2610 = vmul.f32 %v2085, %v2599
    %v2611 = vmul.f32 %v2086, %v2601
    %v2612 = vmul.f32 %v2087, %v2603
    %v2613 = vmul.f32 %v2088, %v2605
    %2614 = vrot.lane.b32.xlu0 %v2535, 40
    %v2615 = vpop.permute.xlu0 %2614
    %2616 = vrot.lane.b32.xlu0 %v2537, 40
    %v2617 = vpop.permute.xlu0 %2616
    %2618 = vrot.lane.b32.xlu0 %v2539, 40
    %v2619 = vpop.permute.xlu0 %2618
    %2620 = vrot.lane.b32.xlu0 %v2541, 40
    %v2621 = vpop.permute.xlu0 %2620
    %v2626 = vmul.f32 %v2085, %v2615
    %v2627 = vmul.f32 %v2086, %v2617
    %v2628 = vmul.f32 %v2087, %v2619
    %v2629 = vmul.f32 %v2088, %v2621
    %2630 = vrot.lane.b32.xlu0 %v2535, 48
    %v2631 = vpop.permute.xlu0 %2630
    %2632 = vrot.lane.b32.xlu0 %v2537, 48
    %v2633 = vpop.permute.xlu0 %2632
    %2634 = vrot.lane.b32.xlu0 %v2539, 48
    %v2635 = vpop.permute.xlu0 %2634
    %2636 = vrot.lane.b32.xlu0 %v2541, 48
    %v2637 = vpop.permute.xlu0 %2636
    %v2642 = vmul.f32 %v2085, %v2631
    %v2643 = vmul.f32 %v2086, %v2633
    %v2644 = vmul.f32 %v2087, %v2635
    %v2645 = vmul.f32 %v2088, %v2637
    %2646 = vrot.lane.b32.xlu0 %v2535, 56
    %v2647 = vpop.permute.xlu0 %2646
    %2648 = vrot.lane.b32.xlu0 %v2537, 56
    %v2649 = vpop.permute.xlu0 %2648
    %2650 = vrot.lane.b32.xlu0 %v2539, 56
    %v2651 = vpop.permute.xlu0 %2650
    %2652 = vrot.lane.b32.xlu0 %v2541, 56
    %v2653 = vpop.permute.xlu0 %2652
    %v2658 = vmul.f32 %v2085, %v2647
    %v2659 = vmul.f32 %v2086, %v2649
    %v2660 = vmul.f32 %v2087, %v2651
    %v2661 = vmul.f32 %v2088, %v2653
    %2662 = vrot.lane.b32.xlu0 %v2535, 64
    %v2663 = vpop.permute.xlu0 %2662
    %2664 = vrot.lane.b32.xlu0 %v2537, 64
    %v2665 = vpop.permute.xlu0 %2664
    %2666 = vrot.lane.b32.xlu0 %v2539, 64
    %v2667 = vpop.permute.xlu0 %2666
    %2668 = vrot.lane.b32.xlu0 %v2541, 64
    %v2669 = vpop.permute.xlu0 %2668
    %v2674 = vmul.f32 %v2085, %v2663
    %v2675 = vmul.f32 %v2086, %v2665
    %v2676 = vmul.f32 %v2087, %v2667
    %v2677 = vmul.f32 %v2088, %v2669
    %2678 = vrot.lane.b32.xlu0 %v2535, 72
    %v2679 = vpop.permute.xlu0 %2678
    %2680 = vrot.lane.b32.xlu0 %v2537, 72
    %v2681 = vpop.permute.xlu0 %2680
    %2682 = vrot.lane.b32.xlu0 %v2539, 72
    %v2683 = vpop.permute.xlu0 %2682
    %2684 = vrot.lane.b32.xlu0 %v2541, 72
    %v2685 = vpop.permute.xlu0 %2684
    %v2690 = vmul.f32 %v2085, %v2679
    %v2691 = vmul.f32 %v2086, %v2681
    %v2692 = vmul.f32 %v2087, %v2683
    %v2693 = vmul.f32 %v2088, %v2685
    %2694 = vrot.lane.b32.xlu0 %v2535, 80
    %v2695 = vpop.permute.xlu0 %2694
    %2696 = vrot.lane.b32.xlu0 %v2537, 80
    %v2697 = vpop.permute.xlu0 %2696
    %2698 = vrot.lane.b32.xlu0 %v2539, 80
    %v2699 = vpop.permute.xlu0 %2698
    %2700 = vrot.lane.b32.xlu0 %v2541, 80
    %v2701 = vpop.permute.xlu0 %2700
    %v2706 = vmul.f32 %v2085, %v2695
    %v2707 = vmul.f32 %v2086, %v2697
    %v2708 = vmul.f32 %v2087, %v2699
    %v2709 = vmul.f32 %v2088, %v2701
    %2710 = vrot.lane.b32.xlu0 %v2535, 88
    %v2711 = vpop.permute.xlu0 %2710
    %2712 = vrot.lane.b32.xlu0 %v2537, 88
    %v2713 = vpop.permute.xlu0 %2712
    %2714 = vrot.lane.b32.xlu0 %v2539, 88
    %v2715 = vpop.permute.xlu0 %2714
    %2716 = vrot.lane.b32.xlu0 %v2541, 88
    %v2717 = vpop.permute.xlu0 %2716
    %v2722 = vmul.f32 %v2085, %v2711
    %v2723 = vmul.f32 %v2086, %v2713
    %v2724 = vmul.f32 %v2087, %v2715
    %v2725 = vmul.f32 %v2088, %v2717
    %2726 = vrot.lane.b32.xlu0 %v2535, 96
    %v2727 = vpop.permute.xlu0 %2726
    %2728 = vrot.lane.b32.xlu0 %v2537, 96
    %v2729 = vpop.permute.xlu0 %2728
    %2730 = vrot.lane.b32.xlu0 %v2539, 96
    %v2731 = vpop.permute.xlu0 %2730
    %2732 = vrot.lane.b32.xlu0 %v2541, 96
    %v2733 = vpop.permute.xlu0 %2732
    %v2738 = vmul.f32 %v2085, %v2727
    %v2739 = vmul.f32 %v2086, %v2729
    %v2740 = vmul.f32 %v2087, %v2731
    %v2741 = vmul.f32 %v2088, %v2733
    %2742 = vrot.lane.b32.xlu0 %v2535, 104
    %v2743 = vpop.permute.xlu0 %2742
    %2744 = vrot.lane.b32.xlu0 %v2537, 104
    %v2745 = vpop.permute.xlu0 %2744
    %2746 = vrot.lane.b32.xlu0 %v2539, 104
    %v2747 = vpop.permute.xlu0 %2746
    %2748 = vrot.lane.b32.xlu0 %v2541, 104
    %v2749 = vpop.permute.xlu0 %2748
    %v2754 = vmul.f32 %v2085, %v2743
    %v2755 = vmul.f32 %v2086, %v2745
    %v2756 = vmul.f32 %v2087, %v2747
    %v2757 = vmul.f32 %v2088, %v2749
    %2758 = vrot.lane.b32.xlu0 %v2535, 112
    %v2759 = vpop.permute.xlu0 %2758
    %2760 = vrot.lane.b32.xlu0 %v2537, 112
    %v2761 = vpop.permute.xlu0 %2760
    %2762 = vrot.lane.b32.xlu0 %v2539, 112
    %v2763 = vpop.permute.xlu0 %2762
    %2764 = vrot.lane.b32.xlu0 %v2541, 112
    %v2765 = vpop.permute.xlu0 %2764
    %v2770 = vmul.f32 %v2085, %v2759
    %v2771 = vmul.f32 %v2086, %v2761
    %v2772 = vmul.f32 %v2087, %v2763
    %v2773 = vmul.f32 %v2088, %v2765
    %2774 = vrot.lane.b32.xlu0 %v2535, 120
    %v2775 = vpop.permute.xlu0 %2774
    %2776 = vrot.lane.b32.xlu0 %v2537, 120
    %v2777 = vpop.permute.xlu0 %2776
    %2778 = vrot.lane.b32.xlu0 %v2539, 120
    %v2779 = vpop.permute.xlu0 %2778
    %2780 = vrot.lane.b32.xlu0 %v2541, 120
    %v2781 = vpop.permute.xlu0 %2780
    %v2786 = vmul.f32 %v2085, %v2775
    %v2787 = vmul.f32 %v2086, %v2777
    %v2788 = vmul.f32 %v2087, %v2779
    %v2789 = vmul.f32 %v2088, %v2781
    %2794 = vrot.lane.b32.xlu0 %v2562, 120
    %v2795 = vpop.permute.xlu0 %2794
    %2796 = vrot.lane.b32.xlu0 %v2563, 120
    %v2797 = vpop.permute.xlu0 %2796
    %2798 = vrot.lane.b32.xlu0 %v2564, 120
    %v2799 = vpop.permute.xlu0 %2798
    %2800 = vrot.lane.b32.xlu0 %v2565, 120
    %v2801 = vpop.permute.xlu0 %2800
    %2810 = vrot.lane.b32.xlu0 %v2578, 112
    %v2811 = vpop.permute.xlu0 %2810
    %2812 = vrot.lane.b32.xlu0 %v2579, 112
    %v2813 = vpop.permute.xlu0 %2812
    %2814 = vrot.lane.b32.xlu0 %v2580, 112
    %v2815 = vpop.permute.xlu0 %2814
    %2816 = vrot.lane.b32.xlu0 %v2581, 112
    %v2817 = vpop.permute.xlu0 %2816
    %2826 = vrot.lane.b32.xlu0 %v2594, 104
    %v2827 = vpop.permute.xlu0 %2826
    %2828 = vrot.lane.b32.xlu0 %v2595, 104
    %v2829 = vpop.permute.xlu0 %2828
    %2830 = vrot.lane.b32.xlu0 %v2596, 104
    %v2831 = vpop.permute.xlu0 %2830
    %2832 = vrot.lane.b32.xlu0 %v2597, 104
    %v2833 = vpop.permute.xlu0 %2832
    %2842 = vrot.lane.b32.xlu0 %v2610, 96
    %v2843 = vpop.permute.xlu0 %2842
    %2844 = vrot.lane.b32.xlu0 %v2611, 96
    %v2845 = vpop.permute.xlu0 %2844
    %2846 = vrot.lane.b32.xlu0 %v2612, 96
    %v2847 = vpop.permute.xlu0 %2846
    %2848 = vrot.lane.b32.xlu0 %v2613, 96
    %v2849 = vpop.permute.xlu0 %2848
    %2858 = vrot.lane.b32.xlu0 %v2626, 88
    %v2859 = vpop.permute.xlu0 %2858
    %2860 = vrot.lane.b32.xlu0 %v2627, 88
    %v2861 = vpop.permute.xlu0 %2860
    %2862 = vrot.lane.b32.xlu0 %v2628, 88
    %v2863 = vpop.permute.xlu0 %2862
    %2864 = vrot.lane.b32.xlu0 %v2629, 88
    %v2865 = vpop.permute.xlu0 %2864
    %2874 = vrot.lane.b32.xlu0 %v2642, 80
    %v2875 = vpop.permute.xlu0 %2874
    %2876 = vrot.lane.b32.xlu0 %v2643, 80
    %v2877 = vpop.permute.xlu0 %2876
    %2878 = vrot.lane.b32.xlu0 %v2644, 80
    %v2879 = vpop.permute.xlu0 %2878
    %2880 = vrot.lane.b32.xlu0 %v2645, 80
    %v2881 = vpop.permute.xlu0 %2880
    %2890 = vrot.lane.b32.xlu0 %v2658, 72
    %v2891 = vpop.permute.xlu0 %2890
    %2892 = vrot.lane.b32.xlu0 %v2659, 72
    %v2893 = vpop.permute.xlu0 %2892
    %2894 = vrot.lane.b32.xlu0 %v2660, 72
    %v2895 = vpop.permute.xlu0 %2894
    %2896 = vrot.lane.b32.xlu0 %v2661, 72
    %v2897 = vpop.permute.xlu0 %2896
    %2906 = vrot.lane.b32.xlu0 %v2674, 64
    %v2907 = vpop.permute.xlu0 %2906
    %2908 = vrot.lane.b32.xlu0 %v2675, 64
    %v2909 = vpop.permute.xlu0 %2908
    %2910 = vrot.lane.b32.xlu0 %v2676, 64
    %v2911 = vpop.permute.xlu0 %2910
    %2912 = vrot.lane.b32.xlu0 %v2677, 64
    %v2913 = vpop.permute.xlu0 %2912
    %2922 = vrot.lane.b32.xlu0 %v2690, 56
    %v2923 = vpop.permute.xlu0 %2922
    %2924 = vrot.lane.b32.xlu0 %v2691, 56
    %v2925 = vpop.permute.xlu0 %2924
    %2926 = vrot.lane.b32.xlu0 %v2692, 56
    %v2927 = vpop.permute.xlu0 %2926
    %2928 = vrot.lane.b32.xlu0 %v2693, 56
    %v2929 = vpop.permute.xlu0 %2928
    %2938 = vrot.lane.b32.xlu0 %v2706, 48
    %v2939 = vpop.permute.xlu0 %2938
    %2940 = vrot.lane.b32.xlu0 %v2707, 48
    %v2941 = vpop.permute.xlu0 %2940
    %2942 = vrot.lane.b32.xlu0 %v2708, 48
    %v2943 = vpop.permute.xlu0 %2942
    %2944 = vrot.lane.b32.xlu0 %v2709, 48
    %v2945 = vpop.permute.xlu0 %2944
    %2954 = vrot.lane.b32.xlu0 %v2722, 40
    %v2955 = vpop.permute.xlu0 %2954
    %2956 = vrot.lane.b32.xlu0 %v2723, 40
    %v2957 = vpop.permute.xlu0 %2956
    %2958 = vrot.lane.b32.xlu0 %v2724, 40
    %v2959 = vpop.permute.xlu0 %2958
    %2960 = vrot.lane.b32.xlu0 %v2725, 40
    %v2961 = vpop.permute.xlu0 %2960
    %2970 = vrot.lane.b32.xlu0 %v2738, 32
    %v2971 = vpop.permute.xlu0 %2970
    %2972 = vrot.lane.b32.xlu0 %v2739, 32
    %v2973 = vpop.permute.xlu0 %2972
    %2974 = vrot.lane.b32.xlu0 %v2740, 32
    %v2975 = vpop.permute.xlu0 %2974
    %2976 = vrot.lane.b32.xlu0 %v2741, 32
    %v2977 = vpop.permute.xlu0 %2976
    %2986 = vrot.lane.b32.xlu0 %v2754, 24
    %v2987 = vpop.permute.xlu0 %2986
    %2988 = vrot.lane.b32.xlu0 %v2755, 24
    %v2989 = vpop.permute.xlu0 %2988
    %2990 = vrot.lane.b32.xlu0 %v2756, 24
    %v2991 = vpop.permute.xlu0 %2990
    %2992 = vrot.lane.b32.xlu0 %v2757, 24
    %v2993 = vpop.permute.xlu0 %2992
    %3002 = vrot.lane.b32.xlu0 %v2770, 16
    %v3003 = vpop.permute.xlu0 %3002
    %3004 = vrot.lane.b32.xlu0 %v2771, 16
    %v3005 = vpop.permute.xlu0 %3004
    %3006 = vrot.lane.b32.xlu0 %v2772, 16
    %v3007 = vpop.permute.xlu0 %3006
    %3008 = vrot.lane.b32.xlu0 %v2773, 16
    %v3009 = vpop.permute.xlu0 %3008
    %3018 = vrot.lane.b32.xlu0 %v2786, 8
    %v3019 = vpop.permute.xlu0 %3018
    %3020 = vrot.lane.b32.xlu0 %v2787, 8
    %v3021 = vpop.permute.xlu0 %3020
    %3022 = vrot.lane.b32.xlu0 %v2788, 8
    %v3023 = vpop.permute.xlu0 %3022
    %3024 = vrot.lane.b32.xlu0 %v2789, 8
    %v3025 = vpop.permute.xlu0 %3024
    %v3030 = vld [vmem:[%s9] sm:$0xff]
    %v3031 = vld [vmem:[%s9 + $0x8] sm:$0xff]
    %v3032 = vld [vmem:[%s9 + $0x10] sm:$0xff]
    %v3033 = vld [vmem:[%s9 + $0x18] sm:$0xff]
    %v3034 = vld [vmem:[%s10] sm:$0xff]
    %3036 = vset.pattern.permute.xlu0 0
    %3037 = vperm.xlu0 %3036, %v3034
    %v3038 = vpop.permute.xlu0 %3037
    %3040 = vmatprep.subr.mxu0 0.0
    %3041 = vmatpush1.msra.mxu0 %v2542
    %3042 = vmatprep.subr.mxu0 0.0
    %3043 = vmatpush1.msra.mxu0 %v2543
    %3044 = vmatprep.subr.mxu0 0.0
    %3045 = vmatpush1.msra.mxu0 %v2544
    %3046 = vmatprep.subr.mxu0 0.0
    %3047 = vmatpush1.msra.mxu0 %v2545
    %3048 = vmatprep.subr.mxu0 0.0
    %3049 = vmatpush1.msra.mxu0 %v2795
    %3050 = vmatprep.subr.mxu0 0.0
    %3051 = vmatpush1.msra.mxu0 %v2797
    %3052 = vmatprep.subr.mxu0 0.0
    %3053 = vmatpush1.msra.mxu0 %v2799
    %3054 = vmatprep.subr.mxu0 0.0
    %3055 = vmatpush1.msra.mxu0 %v2801
    %3056 = vmatprep.subr.mxu0 0.0
    %3057 = vmatpush1.msra.mxu0 %v2811
    %3058 = vmatprep.subr.mxu0 0.0
    %3059 = vmatpush1.msra.mxu0 %v2813
    %3060 = vmatprep.subr.mxu0 0.0
    %3061 = vmatpush1.msra.mxu0 %v2815
    %3062 = vmatprep.subr.mxu0 0.0
    %3063 = vmatpush1.msra.mxu0 %v2817
    %3064 = vmatprep.subr.mxu0 0.0
    %3065 = vmatpush1.msra.mxu0 %v2827
    %3066 = vmatprep.subr.mxu0 0.0
    %3067 = vmatpush1.msra.mxu0 %v2829
    %3068 = vmatprep.subr.mxu0 0.0
    %3069 = vmatpush1.msra.mxu0 %v2831
    %3070 = vmatprep.subr.mxu0 0.0
    %3071 = vmatpush1.msra.mxu0 %v2833
    %3072 = vmatprep.subr.mxu0 0.0
    %3073 = vmatpush1.msra.mxu0 %v2843
    %3074 = vmatprep.subr.mxu0 0.0
    %3075 = vmatpush1.msra.mxu0 %v2845
    %3076 = vmatprep.subr.mxu0 0.0
    %3077 = vmatpush1.msra.mxu0 %v2847
    %3078 = vmatprep.subr.mxu0 0.0
    %3079 = vmatpush1.msra.mxu0 %v2849
    %3080 = vmatprep.subr.mxu0 0.0
    %3081 = vmatpush1.msra.mxu0 %v2859
    %3082 = vmatprep.subr.mxu0 0.0
    %3083 = vmatpush1.msra.mxu0 %v2861
    %3084 = vmatprep.subr.mxu0 0.0
    %3085 = vmatpush1.msra.mxu0 %v2863
    %3086 = vmatprep.subr.mxu0 0.0
    %3087 = vmatpush1.msra.mxu0 %v2865
    %3088 = vmatprep.subr.mxu0 0.0
    %3089 = vmatpush1.msra.mxu0 %v2875
    %3090 = vmatprep.subr.mxu0 0.0
    %3091 = vmatpush1.msra.mxu0 %v2877
    %3092 = vmatprep.subr.mxu0 0.0
    %3093 = vmatpush1.msra.mxu0 %v2879
    %3094 = vmatprep.subr.mxu0 0.0
    %3095 = vmatpush1.msra.mxu0 %v2881
    %3096 = vmatprep.subr.mxu0 0.0
    %3097 = vmatpush1.msra.mxu0 %v2891
    %3098 = vmatprep.subr.mxu0 0.0
    %3099 = vmatpush1.msra.mxu0 %v2893
    %3100 = vmatprep.subr.mxu0 0.0
    %3101 = vmatpush1.msra.mxu0 %v2895
    %3102 = vmatprep.subr.mxu0 0.0
    %3103 = vmatpush1.msra.mxu0 %v2897
    %3104 = vmatprep.mubr.f32.mxu0 %v3031
    %3105 = vmatmul.mubr.f32.gmra.mrb[0].mxu0 %v3030
    %v3106 = vpop.f32.mrb[0].mxu0
    %v3107 = vadd.f32 %v3038, %v3106
    %v3108 = vpop.f32.mrb[0].mxu0
    %3109 = vdwg.mxu0
    %3110 = vmatprep.subr.mxu0 0.0
    %3111 = vmatpush1.msra.mxu0 %v2907
    %3112 = vmatprep.subr.mxu0 0.0
    %3113 = vmatpush1.msra.mxu0 %v2909
    %3114 = vmatprep.subr.mxu0 0.0
    %3115 = vmatpush1.msra.mxu0 %v2911
    %3116 = vmatprep.subr.mxu0 0.0
    %3117 = vmatpush1.msra.mxu0 %v2913
    %3118 = vmatprep.subr.mxu0 0.0
    %3119 = vmatpush1.msra.mxu0 %v2923
    %3120 = vmatprep.subr.mxu0 0.0
    %3121 = vmatpush1.msra.mxu0 %v2925
    %3122 = vmatprep.subr.mxu0 0.0
    %3123 = vmatpush1.msra.mxu0 %v2927
    %3124 = vmatprep.subr.mxu0 0.0
    %3125 = vmatpush1.msra.mxu0 %v2929
    %3126 = vmatprep.subr.mxu0 0.0
    %3127 = vmatpush1.msra.mxu0 %v2939
    %3128 = vmatprep.subr.mxu0 0.0
    %3129 = vmatpush1.msra.mxu0 %v2941
    %3130 = vmatprep.subr.mxu0 0.0
    %3131 = vmatpush1.msra.mxu0 %v2943
    %3132 = vmatprep.subr.mxu0 0.0
    %3133 = vmatpush1.msra.mxu0 %v2945
    %3134 = vmatprep.subr.mxu0 0.0
    %3135 = vmatpush1.msra.mxu0 %v2955
    %3136 = vmatprep.subr.mxu0 0.0
    %3137 = vmatpush1.msra.mxu0 %v2957
    %3138 = vmatprep.subr.mxu0 0.0
    %3139 = vmatpush1.msra.mxu0 %v2959
    %3140 = vmatprep.subr.mxu0 0.0
    %3141 = vmatpush1.msra.mxu0 %v2961
    %3142 = vmatprep.subr.mxu0 0.0
    %3143 = vmatpush1.msra.mxu0 %v2971
    %3144 = vmatprep.subr.mxu0 0.0
    %3145 = vmatpush1.msra.mxu0 %v2973
    %3146 = vmatprep.subr.mxu0 0.0
    %3147 = vmatpush1.msra.mxu0 %v2975
    %3148 = vmatprep.subr.mxu0 0.0
    %3149 = vmatpush1.msra.mxu0 %v2977
    %3150 = vmatprep.subr.mxu0 0.0
    %3151 = vmatpush1.msra.mxu0 %v2987
    %3152 = vmatprep.subr.mxu0 0.0
    %3153 = vmatpush1.msra.mxu0 %v2989
    %3154 = vmatprep.subr.mxu0 0.0
    %3155 = vmatpush1.msra.mxu0 %v2991
    %3156 = vmatprep.subr.mxu0 0.0
    %3157 = vmatpush1.msra.mxu0 %v2993
    %3158 = vmatprep.subr.mxu0 0.0
    %3159 = vmatpush1.msra.mxu0 %v3003
    %3160 = vmatprep.subr.mxu0 0.0
    %3161 = vmatpush1.msra.mxu0 %v3005
    %3162 = vmatprep.subr.mxu0 0.0
    %3163 = vmatpush1.msra.mxu0 %v3007
    %3164 = vmatprep.subr.mxu0 0.0
    %3165 = vmatpush1.msra.mxu0 %v3009
    %3166 = vmatprep.subr.mxu0 0.0
    %3167 = vmatpush1.msra.mxu0 %v3019
    %3168 = vmatprep.subr.mxu0 0.0
    %3169 = vmatpush1.msra.mxu0 %v3021
    %3170 = vmatprep.subr.mxu0 0.0
    %3171 = vmatpush1.msra.mxu0 %v3023
    %3172 = vmatprep.subr.mxu0 0.0
    %3173 = vmatpush1.msra.mxu0 %v3025
    %3174 = vmatprep.mubr.f32.mxu0 %v3033
    %3175 = vmatmul.mubr.f32.gmra.mrb[0].mxu0 %v3032
    %v3176 = vpop.f32.mrb[0].mxu0
    %v3177 = vadd.f32 %v3107, %v3176
    %v3178 = vpop.f32.mrb[0].mxu0
    %3179 = vdwg.mxu0
    %3180 = vst.msk [vmem:[#allocation2] sm:$0xff] %vm48, %v3177
    // Predicated region
    $region46: #{tpu_custom_call.1} parent=1 // pred_check
      _
    $region47: #{tpu_custom_call.1} parent=1 // pred_check_branch
      %3182 = sbr.rel (0) target = $region49
    $region48: #{tpu_custom_call.1} parent=1 // pred_region
      %s3184 = ssub.s32 128, 128
      %3185 = vsyncadd [#allocation3], %s3184
      %s3187 = sshll.u32 [#allocation2], 4
      %s3188 = int_to_ptr.vmem [resolvable:$true] %s3187
      %3190 = dma.vmem_to_hbm [thread:$0]  %s3188, 128, %s11, [#allocation3]
    $region49: #{tpu_custom_call.1} parent=1 // pred_fallthru
      _
    // Predicated region
    $region50: #{tpu_custom_call.1} parent=1 // pred_check
      _
    $region51: #{tpu_custom_call.1} parent=1 // pred_check_branch
      %3192 = sbr.rel (0) target = $region53
    $region52: #{tpu_custom_call.1} parent=1 // pred_region
      %3193 = dma.done [#allocation3], 128
    $region53: #{tpu_custom_call.1} parent=1 // pred_fallthru
      _
    %3194 = vsyncpa [#allocation3], 1

</llo_original>
